<compile_context>
chip_gen: v5e
topology: v5e:2x2
jax: 0.10.0
libtpu: 0.0.40
codegen_flags: <defaults>
</compile_context>

<pallas_src>
import functools

import jax
import jax.numpy as jnp
from jax.experimental import pallas as pl
from jax.experimental.pallas import tpu as pltpu


def _round_up(x, m):
    return ((x + m - 1) // m) * m


def _pick_tile(n, candidates, min_steps=1):
    """Largest candidate that divides n with at least `min_steps` grid steps."""
    for c in candidates:
        if n % c == 0 and n // c >= min_steps:
            return c
    return candidates[-1]


def _vmem_limit_bytes():
    # Generation-aware VMEM budget: ~half of physical capacity, capped at 64 MiB
    # (v5e/v6e: 128 MiB -> 64 MiB, v7x: 64 MiB/TC -> 32 MiB).  Blocks here are
    # small (<= a few MiB) so this leaves ample headroom for Mosaic scratch.
    cap = 128 * 1024 * 1024
    try:
        cap = int(getattr(pltpu.get_tpu_info(), "vmem_capacity_bytes", cap))
    except Exception:
        pass
    return max(32 * 1024 * 1024, min(cap // 2, 64 * 1024 * 1024))


# ----------------------------- kernel 1: projection -----------------------------
def _gat_proj_kernel(h_ref, wext_ref, z_ref, es_ref, ed_ref, *, hdout, nheads, apply_elu):
    x = h_ref[...].astype(jnp.float32)
    if apply_elu:
        # F.elu (alpha=1) of this layer's input (the ELU between the two GAT
        # layers, fused here).  exp(x)-1 keeps the Mosaic lowering simple.
        x = jnp.where(x > 0, x, jnp.exp(x) - 1.0)
    zext = jnp.dot(x, wext_ref[...], preferred_element_type=jnp.float32)  # [TM, E]
    z_ref[...] = zext[:, :hdout].astype(jnp.bfloat16)          # bf16 for the MXU aggregation
    es_ref[...] = zext[:, hdout:hdout + nheads]                # f32 src attention term
    ed_ref[...] = zext[:, hdout + nheads:]                     # f32 dst attention term


# ------------------ kernel 2: online-softmax edge attention + aggregate ------------------
def _gat_attn_kernel(counts_ref, es_ref, edt_ref, z_ref, adj_ref, out_ref,
                     m_ref, l_ref, acc_ref, *, num_heads, dout):
    j = pl.program_id(0)            # destination tile   (parallel)
    k = pl.program_id(1)            # source chunk       (reduction, inner)
    kc = pl.num_programs(1)

    @pl.when(k == 0)
    def _init():
        m_ref[...] = jnp.full_like(m_ref, -1e30)
        l_ref[...] = jnp.zeros_like(l_ref)
        acc_ref[...] = jnp.zeros_like(acc_ref)

    # Skip (src chunk, dst tile) pairs whose adjacency block has no edges.
    @pl.when(counts_ref[j * kc + k] > 0)
    def _update():
        mask = adj_ref[...] != 0                           # [TS, TD] bool, shared by all heads
        for hh in range(num_heads):                        # static unroll over heads
            es_h = es_ref[:, hh:hh + 1]                    # [TS, 1]  src term
            ed_h = edt_ref[hh:hh + 1, :]                   # [1, TD]  dst term (lane-major)
            raw = es_h + ed_h                              # [TS, TD]
            e = jnp.maximum(raw, 0.01 * raw)               # F.leaky_relu (slope 0.01), 2 VALU passes
            me = jnp.where(mask, e, jnp.float32(-1e30))    # masked scores (f32)

            m_prev = m_ref[hh]                             # [1, TD] running max
            m_new = jnp.maximum(m_prev, jnp.max(me, axis=0, keepdims=True))
            alpha = jnp.exp(m_prev - m_new)                # rescale of previous partials (EUP)
            p = jnp.exp(me - m_new)                        # [TS, TD] (EUP)
            p = jnp.where(mask, p, jnp.float32(0.0))       # exact zero off-graph

            l_ref[hh] = alpha * l_ref[hh] + jnp.sum(p, axis=0, keepdims=True)
            m_ref[hh] = m_new

            # acc[d, v] += sum_u z[u, d] * p[u, v] -- contract over the src axis
            # directly (no transpose materialized); bf16 operands, f32 accumulate.
            z_h = z_ref[:, hh * dout:(hh + 1) * dout]      # [TS, Dout] bf16
            contrib = jax.lax.dot_general(
                z_h, p.astype(jnp.bfloat16),
                dimension_numbers=(((0,), (0,)), ((), ())),
                preferred_element_type=jnp.float32)        # [Dout, TD]
            acc_ref[hh] = acc_ref[hh] * alpha + contrib

    @pl.when(k == kc - 1)
    def _finalize():
        outs = []
        for hh in range(num_heads):
            # Softmax divide folded into a per-destination post-scale on the EUP.
            # max(l, tiny) guards zero-in-degree destinations (-> output 0, no NaN).
            inv = pl.reciprocal(jnp.maximum(l_ref[hh], jnp.float32(1e-20)), approx=True)
            outs.append(acc_ref[hh] * inv)                 # [Dout, TD]
        # Transposed torch.cat(head_outs, dim=1) layout; lane-dense (TD) store.
        out_ref[...] = jnp.concatenate(outs, axis=0).astype(out_ref.dtype)


# ----------------------------------- wrappers -----------------------------------
def gat_multihead_layer(h_p, W, a_src, a_dst, adj_i8, counts, tile_src, tile_dst,
                        *, apply_elu=False):
    """MultiHeadGATLayer with merge='cat' on padded inputs. Returns [Np, H*Dout]."""
    H, Din, Dout = W.shape
    Np = h_p.shape[0]
    E = H * Dout + 2 * H
    vmem = _vmem_limit_bytes()

    # Fold per-head attention vectors into the projection weights so one MXU
    # matmul produces z, e_src and e_dst:  [z|es|ed] = h @ [W | W@a_src | W@a_dst].
    W_cat = jnp.transpose(W, (1, 0, 2)).reshape(Din, H * Dout)        # [Din, H*Dout]
    Wa_src = jnp.einsum("hio,ho->ih", W, a_src[:, :, 0])              # [Din, H]
    Wa_dst = jnp.einsum("hio,ho->ih", W, a_dst[:, :, 0])              # [Din, H]
    W_ext = jnp.concatenate([W_cat, Wa_src, Wa_dst], axis=1).astype(jnp.float32)

    # ---- projection ----
    TM = _pick_tile(Np, (512, 256, 128), min_steps=2)
    z, es, ed = pl.pallas_call(
        functools.partial(_gat_proj_kernel, hdout=H * Dout, nheads=H, apply_elu=apply_elu),
        out_shape=(
            jax.ShapeDtypeStruct((Np, H * Dout), jnp.bfloat16),
            jax.ShapeDtypeStruct((Np, H), jnp.float32),
            jax.ShapeDtypeStruct((Np, H), jnp.float32),
        ),
        grid=(Np // TM,),
        in_specs=[
            pl.BlockSpec((TM, Din), lambda r: (r, 0)),
            pl.BlockSpec((Din, E), lambda r: (0, 0)),
        ],
        out_specs=(
            pl.BlockSpec((TM, H * Dout), lambda r: (r, 0)),
            pl.BlockSpec((TM, H), lambda r: (r, 0)),
            pl.BlockSpec((TM, H), lambda r: (r, 0)),
        ),
        compiler_params=pltpu.CompilerParams(
            dimension_semantics=("parallel",), vmem_limit_bytes=vmem),
    )(h_p, W_ext)

    ed_t = ed.T  # [H, Np] lane-major dst term (cheap wrapper transpose)

    # ---- edge attention + aggregation: (dst tiles) x (src chunks) online softmax ----
    JC = Np // tile_dst
    KC = Np // tile_src
    out_t = pl.pallas_call(
        functools.partial(_gat_attn_kernel, num_heads=H, dout=Dout),
        out_shape=jax.ShapeDtypeStruct((H * Dout, Np), jnp.float32),
        grid_spec=pltpu.PrefetchScalarGridSpec(
            num_scalar_prefetch=1,
            grid=(JC, KC),
            in_specs=[
                pl.BlockSpec((tile_src, H), lambda j, k, c: (k, 0)),          # e_src
                pl.BlockSpec((H, tile_dst), lambda j, k, c: (0, j)),          # e_dst^T
                pl.BlockSpec((tile_src, H * Dout), lambda j, k, c: (k, 0)),   # z (bf16)
                pl.BlockSpec((tile_src, tile_dst), lambda j, k, c: (k, j)),   # adj (int8)
            ],
            out_specs=pl.BlockSpec((H * Dout, tile_dst), lambda j, k, c: (0, j)),
            scratch_shapes=[
                pltpu.VMEM((H, 1, tile_dst), jnp.float32),      # running max
                pltpu.VMEM((H, 1, tile_dst), jnp.float32),      # running denom
                pltpu.VMEM((H, Dout, tile_dst), jnp.float32),   # running accumulator
            ],
        ),
        compiler_params=pltpu.CompilerParams(
            dimension_semantics=("parallel", "arbitrary"),
            vmem_limit_bytes=vmem),
    )(counts, es, ed_t, z, adj_i8)

    return out_t.T  # [Np, H*Dout], torch.cat(head_outs, dim=1) layout


def gat_forward(h, params, adj):
    N = h.shape[0]
    # Pad to a lane-aligned node count with >=2 dst tiles (keeps both v7x TCs busy,
    # keeps every block (8,128)-aligned, and bounds all temporaries to tile size).
    Np = max(_round_up(N, 128), 256)
    pad = Np - N
    h_p = jnp.pad(h.astype(jnp.float32), ((0, pad), (0, 0)))
    # int8 adjacency (4x less HBM/VMEM traffic than f32); padded rows/cols are zero,
    # so padded sources never contribute and padded destinations output 0.
    adj_i8 = jnp.pad((adj != 0).astype(jnp.int8), ((0, pad), (0, pad)))

    tile_dst = _pick_tile(Np, (256, 128), min_steps=2)     # cap 256 for v7x VMEM
    tile_src = _pick_tile(Np, (512, 256, 128), min_steps=1)

    # Per (src chunk, dst tile) edge counts for block skipping (scalar prefetch).
    KC, JC = Np // tile_src, Np // tile_dst
    counts = adj_i8.astype(jnp.int32).reshape(KC, tile_src, JC, tile_dst).sum(axis=(1, 3))
    counts = counts.T.reshape(-1)                          # [JC*KC], indexed j*KC + k

    h1 = gat_multihead_layer(h_p, params["W1"], params["a1_src"], params["a1_dst"],
                             adj_i8, counts, tile_src, tile_dst, apply_elu=False)
    # ELU between layers is fused into the second-layer projection kernel.
    h2 = gat_multihead_layer(h1, params["W2"], params["a2_src"], params["a2_dst"],
                             adj_i8, counts, tile_src, tile_dst, apply_elu=True)
    return h2[:N, :]


# ---------------- pure-JAX reference (mirrors the PyTorch/DGL semantics) ----------------
def _ref_head(h, W, a_src, a_dst, adj):
    z = h @ W
    es = z @ a_src[:, 0]
    ed = z @ a_dst[:, 0]
    e = es[:, None] + ed[None, :]
    e = jnp.where(e > 0, e, 0.01 * e)
    masked = jnp.where(adj > 0, e, -jnp.inf)
    alpha = jax.nn.softmax(masked, axis=0)
    alpha = jnp.where(adj > 0, alpha, 0.0)
    return alpha.T @ z


def _ref_forward(h, params, adj):
    outs = [
        _ref_head(h, params["W1"][i], params["a1_src"][i], params["a1_dst"][i], adj)
        for i in range(params["W1"].shape[0])
    ]
    h1 = jnp.concatenate(outs, axis=1)
    h1 = jax.nn.elu(h1)
    outs2 = [
        _ref_head(h1, params["W2"][i], params["a2_src"][i], params["a2_dst"][i], adj)
        for i in range(params["W2"].shape[0])
    ]
    return jnp.concatenate(outs2, axis=1)


if __name__ == "__main__":
    # Small, deterministic problem: N nodes, GAT(in_dim, hidden_dim, out_dim, num_heads)
    N, in_dim, hidden_dim, out_dim, num_heads = 8, 16, 8, 4, 2

    key = jax.random.PRNGKey(0)
    k_h, k_w1, k_a1, k_w2, k_a2 = jax.random.split(key, 5)

    h = jax.random.normal(k_h, (N, in_dim), dtype=jnp.float32)

    # Synthetic graph: self-loops + ring edges (u -> u+1) + (u -> u+2); in-degree >= 1 everywhere.
    eye = jnp.eye(N, dtype=jnp.float32)
    adj = jnp.clip(eye + jnp.roll(eye, 1, axis=1) + jnp.roll(eye, 2, axis=1), 0.0, 1.0)

    # Layer 1: num_heads heads, in_dim -> hidden_dim
    W1 = 0.2 * jax.random.normal(k_w1, (num_heads, in_dim, hidden_dim), dtype=jnp.float32)
    a1 = 0.2 * jax.random.normal(k_a1, (num_heads, 2 * hidden_dim), dtype=jnp.float32)
    a1_src = a1[:, :hidden_dim, None]
    a1_dst = a1[:, hidden_dim:, None]

    # Layer 2: 1 head, hidden_dim*num_heads -> out_dim
    W2 = 0.2 * jax.random.normal(k_w2, (1, hidden_dim * num_heads, out_dim), dtype=jnp.float32)
    a2 = 0.2 * jax.random.normal(k_a2, (1, 2 * out_dim), dtype=jnp.float32)
    a2_src = a2[:, :out_dim, None]
    a2_dst = a2[:, out_dim:, None]

    params = dict(W1=W1, a1_src=a1_src, a1_dst=a1_dst, W2=W2, a2_src=a2_src, a2_dst=a2_dst)

    out = jax.jit(gat_forward)(h, params, adj)
    out = jax.block_until_ready(out)

    ref = _ref_forward(h, params, adj)
    assert out.shape == (N, out_dim), out.shape
    # bf16 z / bf16 p in the aggregation matmul -> a few 1e-3 of absolute error.
    assert jnp.allclose(out, ref, atol=3e-2, rtol=3e-2), (out, ref)

    print("KERNEL_OK")
</pallas_src>

<mosaic_0001>
module attributes {stable_mosaic.version = 11 : i64} {
  func.func @_gat_proj_kernel(%arg0: i32, %arg1: memref<128x16xf32, #tpu.memory_space<vmem>>, %arg2: memref<16x20xf32, #tpu.memory_space<vmem>>, %arg3: memref<128x16xbf16, #tpu.memory_space<vmem>>, %arg4: memref<128x2xf32, #tpu.memory_space<vmem>>, %arg5: memref<128x2xf32, #tpu.memory_space<vmem>>) attributes {dimension_semantics = [#tpu.dimension_semantics<parallel>], iteration_bounds = array<i64: 2>, scalar_prefetch = 0 : i64, scratch_operands = 0 : i64, tpu.core_type = #tpu.core_type<tc>, window_params = [{transform_indices = @transform_0, window_bounds = array<i64: 128, 16>}, {pipeline_mode = #tpu.pipeline_mode<synchronous>, transform_indices = @transform_1, window_bounds = array<i64: 16, 20>}, {transform_indices = @transform_2, window_bounds = array<i64: 128, 16>}, {transform_indices = @transform_3, window_bounds = array<i64: 128, 2>}, {transform_indices = @transform_4, window_bounds = array<i64: 128, 2>}]} {
    %c0 = arith.constant 0 : index
    %c0_0 = arith.constant 0 : index
    %0 = vector.load %arg1[%c0, %c0_0] : memref<128x16xf32, #tpu.memory_space<vmem>>, vector<128x16xf32>
    %c0_1 = arith.constant 0 : index
    %c0_2 = arith.constant 0 : index
    %1 = vector.load %arg2[%c0_1, %c0_2] : memref<16x20xf32, #tpu.memory_space<vmem>>, vector<16x20xf32>
    %cst = arith.constant dense<0.000000e+00> : vector<128x20xf32>
    %2 = tpu.matmul %0, %1, %cst {dimension_numbers = #tpu.dot_dimension_numbers<[1], [0], [0], [1], [0, 0, 1, 1], [], []>} : vector<128x16xf32>, vector<16x20xf32>, vector<128x20xf32> -> vector<128x20xf32>
    %3 = vector.extract_strided_slice %2 {offsets = [0, 0], sizes = [128, 16], strides = [1, 1]} : vector<128x20xf32> to vector<128x16xf32>
    %4 = arith.truncf %3 : vector<128x16xf32> to vector<128x16xbf16>
    %c0_3 = arith.constant 0 : index
    %c0_4 = arith.constant 0 : index
    %5 = vector.load %arg3[%c0_3, %c0_4] : memref<128x16xbf16, #tpu.memory_space<vmem>>, vector<128x16xbf16>
    tpu.vector_store %arg3[%c0_3, %c0_4], %4 {strides = array<i32>} : memref<128x16xbf16, #tpu.memory_space<vmem>>, vector<128x16xbf16>,
    %6 = vector.extract_strided_slice %2 {offsets = [0, 16], sizes = [128, 2], strides = [1, 1]} : vector<128x20xf32> to vector<128x2xf32>
    %c0_5 = arith.constant 0 : index
    %c0_6 = arith.constant 0 : index
    %7 = vector.load %arg4[%c0_5, %c0_6] : memref<128x2xf32, #tpu.memory_space<vmem>>, vector<128x2xf32>
    tpu.vector_store %arg4[%c0_5, %c0_6], %6 {strides = array<i32>} : memref<128x2xf32, #tpu.memory_space<vmem>>, vector<128x2xf32>,
    %8 = vector.extract_strided_slice %2 {offsets = [0, 18], sizes = [128, 2], strides = [1, 1]} : vector<128x20xf32> to vector<128x2xf32>
    %c0_7 = arith.constant 0 : index
    %c0_8 = arith.constant 0 : index
    %9 = vector.load %arg5[%c0_7, %c0_8] : memref<128x2xf32, #tpu.memory_space<vmem>>, vector<128x2xf32>
    tpu.vector_store %arg5[%c0_7, %c0_8], %8 {strides = array<i32>} : memref<128x2xf32, #tpu.memory_space<vmem>>, vector<128x2xf32>,
    return
  }
  func.func @transform_0(%arg0: i32) -> (i32, i32) {
    %c0_i32 = arith.constant 0 : i32
    %c0_i32_0 = arith.constant 0 : i32
    return %arg0, %c0_i32 : i32, i32
  }
  func.func @transform_1(%arg0: i32) -> (i32, i32) {
    %c0_i32 = arith.constant 0 : i32
    %c0_i32_0 = arith.constant 0 : i32
    %c0_i32_1 = arith.constant 0 : i32
    return %c0_i32, %c0_i32_0 : i32, i32
  }
  func.func @transform_2(%arg0: i32) -> (i32, i32) {
    %c0_i32 = arith.constant 0 : i32
    %c0_i32_0 = arith.constant 0 : i32
    return %arg0, %c0_i32 : i32, i32
  }
  func.func @transform_3(%arg0: i32) -> (i32, i32) {
    %c0_i32 = arith.constant 0 : i32
    %c0_i32_0 = arith.constant 0 : i32
    return %arg0, %c0_i32 : i32, i32
  }
  func.func @transform_4(%arg0: i32) -> (i32, i32) {
    %c0_i32 = arith.constant 0 : i32
    %c0_i32_0 = arith.constant 0 : i32
    return %arg0, %c0_i32 : i32, i32
  }
}

module attributes {stable_mosaic.version = 11 : i64} {
  func.func @_gat_attn_kernel(%arg0: i32, %arg1: i32, %arg2: memref<2xi32, #tpu.memory_space<smem>>, %arg3: memref<256x2xf32, #tpu.memory_space<vmem>>, %arg4: memref<2x128xf32, #tpu.memory_space<vmem>>, %arg5: memref<256x16xbf16, #tpu.memory_space<vmem>>, %arg6: memref<256x128xi8, #tpu.memory_space<vmem>>, %arg7: memref<16x128xf32, #tpu.memory_space<vmem>>, %arg8: memref<2x1x128xf32, #tpu.memory_space<vmem>>, %arg9: memref<2x1x128xf32, #tpu.memory_space<vmem>>, %arg10: memref<2x8x128xf32, #tpu.memory_space<vmem>>) attributes {dimension_semantics = [#tpu.dimension_semantics<parallel>, #tpu.dimension_semantics<arbitrary>], iteration_bounds = array<i64: 2, 1>, scalar_prefetch = 1 : i64, scratch_operands = 3 : i64, tpu.core_type = #tpu.core_type<tc>, window_params = [{transform_indices = @transform_0, window_bounds = array<i64: 256, 2>}, {transform_indices = @transform_1, window_bounds = array<i64: 2, 128>}, {transform_indices = @transform_2, window_bounds = array<i64: 256, 16>}, {transform_indices = @transform_3, window_bounds = array<i64: 256, 128>}, {transform_indices = @transform_4, window_bounds = array<i64: 16, 128>}]} {
    %c0_i32 = arith.constant 0 : i32
    %0 = arith.cmpi eq, %arg1, %c0_i32 : i32
    %1 = arith.extui %0 : i1 to i32
    %c0_i32_0 = arith.constant 0 : i32
    %2 = arith.cmpi ne, %1, %c0_i32_0 : i32
    scf.if %2 {
      %cst = arith.constant -1.000000e+30 : f32
      %13 = vector.broadcast %cst : f32 to vector<2x1x128xf32>
      %c0 = arith.constant 0 : index
      %c0_5 = arith.constant 0 : index
      %c0_6 = arith.constant 0 : index
      %14 = vector.load %arg8[%c0, %c0_5, %c0_6] : memref<2x1x128xf32, #tpu.memory_space<vmem>>, vector<2x1x128xf32>
      tpu.vector_store %arg8[%c0, %c0_5, %c0_6], %13 {strides = array<i32>} : memref<2x1x128xf32, #tpu.memory_space<vmem>>, vector<2x1x128xf32>,
      %cst_7 = arith.constant 0.000000e+00 : f32
      %15 = vector.broadcast %cst_7 : f32 to vector<2x1x128xf32>
      %c0_8 = arith.constant 0 : index
      %c0_9 = arith.constant 0 : index
      %c0_10 = arith.constant 0 : index
      %16 = vector.load %arg9[%c0_8, %c0_9, %c0_10] : memref<2x1x128xf32, #tpu.memory_space<vmem>>, vector<2x1x128xf32>
      tpu.vector_store %arg9[%c0_8, %c0_9, %c0_10], %15 {strides = array<i32>} : memref<2x1x128xf32, #tpu.memory_space<vmem>>, vector<2x1x128xf32>,
      %cst_11 = arith.constant 0.000000e+00 : f32
      %17 = vector.broadcast %cst_11 : f32 to vector<2x8x128xf32>
      %c0_12 = arith.constant 0 : index
      %c0_13 = arith.constant 0 : index
      %c0_14 = arith.constant 0 : index
      %18 = vector.load %arg10[%c0_12, %c0_13, %c0_14] : memref<2x8x128xf32, #tpu.memory_space<vmem>>, vector<2x8x128xf32>
      tpu.vector_store %arg10[%c0_12, %c0_13, %c0_14], %17 {strides = array<i32>} : memref<2x8x128xf32, #tpu.memory_space<vmem>>, vector<2x8x128xf32>,
    } else {
    }
    %c1_i32 = arith.constant 1 : i32
    %3 = arith.muli %arg0, %c1_i32 : i32
    %4 = arith.addi %3, %arg1 : i32
    %5 = arith.index_cast %4 : i32 to index
    %6 = memref.load %arg2[%5] : memref<2xi32, #tpu.memory_space<smem>>
    %c0_i32_1 = arith.constant 0 : i32
    %7 = arith.cmpi sgt, %6, %c0_i32_1 : i32
    %8 = arith.extui %7 : i1 to i32
    %c0_i32_2 = arith.constant 0 : i32
    %9 = arith.cmpi ne, %8, %c0_i32_2 : i32
    scf.if %9 {
      %c0 = arith.constant 0 : index
      %c0_5 = arith.constant 0 : index
      %13 = vector.load %arg6[%c0, %c0_5] : memref<256x128xi8, #tpu.memory_space<vmem>>, vector<256x128xi8>
      %c0_i8 = arith.constant 0 : i8
      %14 = vector.broadcast %c0_i8 : i8 to vector<256x128xi8>
      %15 = arith.cmpi ne, %13, %14 : vector<256x128xi8>
      %c0_6 = arith.constant 0 : index
      %c0_7 = arith.constant 0 : index
      %16 = vector.load %arg3[%c0_6, %c0_7] : memref<256x2xf32, #tpu.memory_space<vmem>>, vector<256x1xf32>
      %c0_8 = arith.constant 0 : index
      %c0_9 = arith.constant 0 : index
      %17 = vector.load %arg4[%c0_8, %c0_9] : memref<2x128xf32, #tpu.memory_space<vmem>>, vector<1x128xf32>
      %18 = vector.broadcast %16 : vector<256x1xf32> to vector<256x128xf32>
      %19 = vector.broadcast %17 : vector<1x128xf32> to vector<256x128xf32>
      %20 = arith.addf %18, %19 : vector<256x128xf32>
      %cst = arith.constant 0.00999999977 : f32
      %21 = vector.broadcast %cst : f32 to vector<256x128xf32>
      %22 = arith.mulf %21, %20 : vector<256x128xf32>
      %23 = arith.maximumf %20, %22 : vector<256x128xf32>
      %cst_10 = arith.constant -1.000000e+30 : f32
      %24 = vector.broadcast %cst_10 : f32 to vector<256x128xf32>
      %25 = arith.select %15, %23, %24 : vector<256x128xi1>, vector<256x128xf32>
      %c0_11 = arith.constant 0 : index
      %c0_12 = arith.constant 0 : index
      %c0_13 = arith.constant 0 : index
      %26 = vector.load %arg8[%c0_11, %c0_12, %c0_13] : memref<2x1x128xf32, #tpu.memory_space<vmem>>, vector<1x1x128xf32>
      %27 = vector.shape_cast %26 : vector<1x1x128xf32> to vector<1x128xf32>
      %cst_14 = arith.constant dense<0xFF800000> : vector<128xf32>
      %28 = vector.multi_reduction <maximumf>, %25, %cst_14 [0] : vector<256x128xf32> to vector<128xf32>
      %29 = vector.shape_cast %28 : vector<128xf32> to vector<1x128xf32>
      %30 = arith.maximumf %27, %29 : vector<1x128xf32>
      %31 = arith.subf %27, %30 : vector<1x128xf32>
      %32 = math.exp %31 : vector<1x128xf32>
      %33 = vector.broadcast %30 : vector<1x128xf32> to vector<256x128xf32>
      %34 = arith.subf %25, %33 : vector<256x128xf32>
      %35 = math.exp %34 : vector<256x128xf32>
      %cst_15 = arith.constant 0.000000e+00 : f32
      %36 = vector.broadcast %cst_15 : f32 to vector<256x128xf32>
      %37 = arith.select %15, %35, %36 : vector<256x128xi1>, vector<256x128xf32>
      %c0_16 = arith.constant 0 : index
      %c0_17 = arith.constant 0 : index
      %c0_18 = arith.constant 0 : index
      %38 = vector.load %arg9[%c0_16, %c0_17, %c0_18] : memref<2x1x128xf32, #tpu.memory_space<vmem>>, vector<1x1x128xf32>
      %39 = vector.shape_cast %38 : vector<1x1x128xf32> to vector<1x128xf32>
      %40 = arith.mulf %32, %39 : vector<1x128xf32>
      %cst_19 = arith.constant dense<0.000000e+00> : vector<128xf32>
      %41 = vector.multi_reduction <add>, %37, %cst_19 [0] : vector<256x128xf32> to vector<128xf32>
      %42 = vector.shape_cast %41 : vector<128xf32> to vector<1x128xf32>
      %43 = arith.addf %40, %42 : vector<1x128xf32>
      %c0_20 = arith.constant 0 : index
      %c0_21 = arith.constant 0 : index
      %c0_22 = arith.constant 0 : index
      %44 = vector.load %arg9[%c0_20, %c0_21, %c0_22] : memref<2x1x128xf32, #tpu.memory_space<vmem>>, vector<1x1x128xf32>
      %45 = vector.shape_cast %44 : vector<1x1x128xf32> to vector<1x128xf32>
      %46 = vector.shape_cast %43 : vector<1x128xf32> to vector<1x1x128xf32>
      tpu.vector_store %arg9[%c0_20, %c0_21, %c0_22], %46 {strides = array<i32>} : memref<2x1x128xf32, #tpu.memory_space<vmem>>, vector<1x1x128xf32>,
      %c0_23 = arith.constant 0 : index
      %c0_24 = arith.constant 0 : index
      %c0_25 = arith.constant 0 : index
      %47 = vector.load %arg8[%c0_23, %c0_24, %c0_25] : memref<2x1x128xf32, #tpu.memory_space<vmem>>, vector<1x1x128xf32>
      %48 = vector.shape_cast %47 : vector<1x1x128xf32> to vector<1x128xf32>
      %49 = vector.shape_cast %30 : vector<1x128xf32> to vector<1x1x128xf32>
      tpu.vector_store %arg8[%c0_23, %c0_24, %c0_25], %49 {strides = array<i32>} : memref<2x1x128xf32, #tpu.memory_space<vmem>>, vector<1x1x128xf32>,
      %c0_26 = arith.constant 0 : index
      %c0_27 = arith.constant 0 : index
      %50 = vector.load %arg5[%c0_26, %c0_27] : memref<256x16xbf16, #tpu.memory_space<vmem>>, vector<256x8xbf16>
      %51 = arith.truncf %37 : vector<256x128xf32> to vector<256x128xbf16>
      %cst_28 = arith.constant dense<0.000000e+00> : vector<8x128xf32>
      %52 = tpu.matmul %50, %51, %cst_28 {dimension_numbers = #tpu.dot_dimension_numbers<[0], [0], [1], [1], [0, 1, 1, 1], [], []>} : vector<256x8xbf16>, vector<256x128xbf16>, vector<8x128xf32> -> vector<8x128xf32>
      %c0_29 = arith.constant 0 : index
      %c0_30 = arith.constant 0 : index
      %c0_31 = arith.constant 0 : index
      %53 = vector.load %arg10[%c0_29, %c0_30, %c0_31] : memref<2x8x128xf32, #tpu.memory_space<vmem>>, vector<1x8x128xf32>
      %54 = vector.shape_cast %53 : vector<1x8x128xf32> to vector<8x128xf32>
      %55 = vector.broadcast %32 : vector<1x128xf32> to vector<8x128xf32>
      %56 = arith.mulf %54, %55 : vector<8x128xf32>
      %57 = arith.addf %56, %52 : vector<8x128xf32>
      %c0_32 = arith.constant 0 : index
      %c0_33 = arith.constant 0 : index
      %c0_34 = arith.constant 0 : index
      %58 = vector.load %arg10[%c0_32, %c0_33, %c0_34] : memref<2x8x128xf32, #tpu.memory_space<vmem>>, vector<1x8x128xf32>
      %59 = vector.shape_cast %58 : vector<1x8x128xf32> to vector<8x128xf32>
      %60 = vector.shape_cast %57 : vector<8x128xf32> to vector<1x8x128xf32>
      tpu.vector_store %arg10[%c0_32, %c0_33, %c0_34], %60 {strides = array<i32>} : memref<2x8x128xf32, #tpu.memory_space<vmem>>, vector<1x8x128xf32>,
      %c0_35 = arith.constant 0 : index
      %c1 = arith.constant 1 : index
      %61 = vector.load %arg3[%c0_35, %c1] : memref<256x2xf32, #tpu.memory_space<vmem>>, vector<256x1xf32>
      %c1_36 = arith.constant 1 : index
      %c0_37 = arith.constant 0 : index
      %62 = vector.load %arg4[%c1_36, %c0_37] : memref<2x128xf32, #tpu.memory_space<vmem>>, vector<1x128xf32>
      %63 = vector.broadcast %61 : vector<256x1xf32> to vector<256x128xf32>
      %64 = vector.broadcast %62 : vector<1x128xf32> to vector<256x128xf32>
      %65 = arith.addf %63, %64 : vector<256x128xf32>
      %cst_38 = arith.constant 0.00999999977 : f32
      %66 = vector.broadcast %cst_38 : f32 to vector<256x128xf32>
      %67 = arith.mulf %66, %65 : vector<256x128xf32>
      %68 = arith.maximumf %65, %67 : vector<256x128xf32>
      %cst_39 = arith.constant -1.000000e+30 : f32
      %69 = vector.broadcast %cst_39 : f32 to vector<256x128xf32>
      %70 = arith.select %15, %68, %69 : vector<256x128xi1>, vector<256x128xf32>
      %c1_40 = arith.constant 1 : index
      %c0_41 = arith.constant 0 : index
      %c0_42 = arith.constant 0 : index
      %71 = vector.load %arg8[%c1_40, %c0_41, %c0_42] : memref<2x1x128xf32, #tpu.memory_space<vmem>>, vector<1x1x128xf32>
      %72 = vector.shape_cast %71 : vector<1x1x128xf32> to vector<1x128xf32>
      %cst_43 = arith.constant dense<0xFF800000> : vector<128xf32>
      %73 = vector.multi_reduction <maximumf>, %70, %cst_43 [0] : vector<256x128xf32> to vector<128xf32>
      %74 = vector.shape_cast %73 : vector<128xf32> to vector<1x128xf32>
      %75 = arith.maximumf %72, %74 : vector<1x128xf32>
      %76 = arith.subf %72, %75 : vector<1x128xf32>
      %77 = math.exp %76 : vector<1x128xf32>
      %78 = vector.broadcast %75 : vector<1x128xf32> to vector<256x128xf32>
      %79 = arith.subf %70, %78 : vector<256x128xf32>
      %80 = math.exp %79 : vector<256x128xf32>
      %cst_44 = arith.constant 0.000000e+00 : f32
      %81 = vector.broadcast %cst_44 : f32 to vector<256x128xf32>
      %82 = arith.select %15, %80, %81 : vector<256x128xi1>, vector<256x128xf32>
      %c1_45 = arith.constant 1 : index
      %c0_46 = arith.constant 0 : index
      %c0_47 = arith.constant 0 : index
      %83 = vector.load %arg9[%c1_45, %c0_46, %c0_47] : memref<2x1x128xf32, #tpu.memory_space<vmem>>, vector<1x1x128xf32>
      %84 = vector.shape_cast %83 : vector<1x1x128xf32> to vector<1x128xf32>
      %85 = arith.mulf %77, %84 : vector<1x128xf32>
      %cst_48 = arith.constant dense<0.000000e+00> : vector<128xf32>
      %86 = vector.multi_reduction <add>, %82, %cst_48 [0] : vector<256x128xf32> to vector<128xf32>
      %87 = vector.shape_cast %86 : vector<128xf32> to vector<1x128xf32>
      %88 = arith.addf %85, %87 : vector<1x128xf32>
      %c1_49 = arith.constant 1 : index
      %c0_50 = arith.constant 0 : index
      %c0_51 = arith.constant 0 : index
      %89 = vector.load %arg9[%c1_49, %c0_50, %c0_51] : memref<2x1x128xf32, #tpu.memory_space<vmem>>, vector<1x1x128xf32>
      %90 = vector.shape_cast %89 : vector<1x1x128xf32> to vector<1x128xf32>
      %91 = vector.shape_cast %88 : vector<1x128xf32> to vector<1x1x128xf32>
      tpu.vector_store %arg9[%c1_49, %c0_50, %c0_51], %91 {strides = array<i32>} : memref<2x1x128xf32, #tpu.memory_space<vmem>>, vector<1x1x128xf32>,
      %c1_52 = arith.constant 1 : index
      %c0_53 = arith.constant 0 : index
      %c0_54 = arith.constant 0 : index
      %92 = vector.load %arg8[%c1_52, %c0_53, %c0_54] : memref<2x1x128xf32, #tpu.memory_space<vmem>>, vector<1x1x128xf32>
      %93 = vector.shape_cast %92 : vector<1x1x128xf32> to vector<1x128xf32>
      %94 = vector.shape_cast %75 : vector<1x128xf32> to vector<1x1x128xf32>
      tpu.vector_store %arg8[%c1_52, %c0_53, %c0_54], %94 {strides = array<i32>} : memref<2x1x128xf32, #tpu.memory_space<vmem>>, vector<1x1x128xf32>,
      %c0_55 = arith.constant 0 : index
      %c8 = arith.constant 8 : index
      %95 = vector.load %arg5[%c0_55, %c8] : memref<256x16xbf16, #tpu.memory_space<vmem>>, vector<256x8xbf16>
      %96 = arith.truncf %82 : vector<256x128xf32> to vector<256x128xbf16>
      %cst_56 = arith.constant dense<0.000000e+00> : vector<8x128xf32>
      %97 = tpu.matmul %95, %96, %cst_56 {dimension_numbers = #tpu.dot_dimension_numbers<[0], [0], [1], [1], [0, 1, 1, 1], [], []>} : vector<256x8xbf16>, vector<256x128xbf16>, vector<8x128xf32> -> vector<8x128xf32>
      %c1_57 = arith.constant 1 : index
      %c0_58 = arith.constant 0 : index
      %c0_59 = arith.constant 0 : index
      %98 = vector.load %arg10[%c1_57, %c0_58, %c0_59] : memref<2x8x128xf32, #tpu.memory_space<vmem>>, vector<1x8x128xf32>
      %99 = vector.shape_cast %98 : vector<1x8x128xf32> to vector<8x128xf32>
      %100 = vector.broadcast %77 : vector<1x128xf32> to vector<8x128xf32>
      %101 = arith.mulf %99, %100 : vector<8x128xf32>
      %102 = arith.addf %101, %97 : vector<8x128xf32>
      %c1_60 = arith.constant 1 : index
      %c0_61 = arith.constant 0 : index
      %c0_62 = arith.constant 0 : index
      %103 = vector.load %arg10[%c1_60, %c0_61, %c0_62] : memref<2x8x128xf32, #tpu.memory_space<vmem>>, vector<1x8x128xf32>
      %104 = vector.shape_cast %103 : vector<1x8x128xf32> to vector<8x128xf32>
      %105 = vector.shape_cast %102 : vector<8x128xf32> to vector<1x8x128xf32>
      tpu.vector_store %arg10[%c1_60, %c0_61, %c0_62], %105 {strides = array<i32>} : memref<2x8x128xf32, #tpu.memory_space<vmem>>, vector<1x8x128xf32>,
    } else {
    }
    %c0_i32_3 = arith.constant 0 : i32
    %10 = arith.cmpi eq, %arg1, %c0_i32_3 : i32
    %11 = arith.extui %10 : i1 to i32
    %c0_i32_4 = arith.constant 0 : i32
    %12 = arith.cmpi ne, %11, %c0_i32_4 : i32
    scf.if %12 {
      %c0 = arith.constant 0 : index
      %c0_5 = arith.constant 0 : index
      %c0_6 = arith.constant 0 : index
      %13 = vector.load %arg9[%c0, %c0_5, %c0_6] : memref<2x1x128xf32, #tpu.memory_space<vmem>>, vector<1x1x128xf32>
      %14 = vector.shape_cast %13 : vector<1x1x128xf32> to vector<1x128xf32>
      %cst = arith.constant 9.99999968E-21 : f32
      %15 = vector.broadcast %cst : f32 to vector<1x128xf32>
      %16 = arith.maximumf %14, %15 : vector<1x128xf32>
      %17 = tpu.reciprocal %16 {approx = true} : vector<1x128xf32> -> vector<1x128xf32>
      %c0_7 = arith.constant 0 : index
      %c0_8 = arith.constant 0 : index
      %c0_9 = arith.constant 0 : index
      %18 = vector.load %arg10[%c0_7, %c0_8, %c0_9] : memref<2x8x128xf32, #tpu.memory_space<vmem>>, vector<1x8x128xf32>
      %19 = vector.shape_cast %18 : vector<1x8x128xf32> to vector<8x128xf32>
      %20 = vector.broadcast %17 : vector<1x128xf32> to vector<8x128xf32>
      %21 = arith.mulf %19, %20 : vector<8x128xf32>
      %c1 = arith.constant 1 : index
      %c0_10 = arith.constant 0 : index
      %c0_11 = arith.constant 0 : index
      %22 = vector.load %arg9[%c1, %c0_10, %c0_11] : memref<2x1x128xf32, #tpu.memory_space<vmem>>, vector<1x1x128xf32>
      %23 = vector.shape_cast %22 : vector<1x1x128xf32> to vector<1x128xf32>
      %cst_12 = arith.constant 9.99999968E-21 : f32
      %24 = vector.broadcast %cst_12 : f32 to vector<1x128xf32>
      %25 = arith.maximumf %23, %24 : vector<1x128xf32>
      %26 = tpu.reciprocal %25 {approx = true} : vector<1x128xf32> -> vector<1x128xf32>
      %c1_13 = arith.constant 1 : index
      %c0_14 = arith.constant 0 : index
      %c0_15 = arith.constant 0 : index
      %27 = vector.load %arg10[%c1_13, %c0_14, %c0_15] : memref<2x8x128xf32, #tpu.memory_space<vmem>>, vector<1x8x128xf32>
      %28 = vector.shape_cast %27 : vector<1x8x128xf32> to vector<8x128xf32>
      %29 = vector.broadcast %26 : vector<1x128xf32> to vector<8x128xf32>
      %30 = arith.mulf %28, %29 : vector<8x128xf32>
      %31 = tpu.concatenate %21, %30 in 0 : vector<8x128xf32>, vector<8x128xf32> -> vector<16x128xf32>
      %c0_16 = arith.constant 0 : index
      %c0_17 = arith.constant 0 : index
      %32 = vector.load %arg7[%c0_16, %c0_17] : memref<16x128xf32, #tpu.memory_space<vmem>>, vector<16x128xf32>
      tpu.vector_store %arg7[%c0_16, %c0_17], %31 {strides = array<i32>} : memref<16x128xf32, #tpu.memory_space<vmem>>, vector<16x128xf32>,
    } else {
    }
    return
  }
  func.func @transform_0(%arg0: i32, %arg1: i32, %arg2: memref<2xi32, #tpu.memory_space<smem>>) -> (i32, i32) {
    %c0_i32 = arith.constant 0 : i32
    %c0_i32_0 = arith.constant 0 : i32
    return %arg1, %c0_i32 : i32, i32
  }
  func.func @transform_1(%arg0: i32, %arg1: i32, %arg2: memref<2xi32, #tpu.memory_space<smem>>) -> (i32, i32) {
    %c0_i32 = arith.constant 0 : i32
    %c0_i32_0 = arith.constant 0 : i32
    return %c0_i32, %arg0 : i32, i32
  }
  func.func @transform_2(%arg0: i32, %arg1: i32, %arg2: memref<2xi32, #tpu.memory_space<smem>>) -> (i32, i32) {
    %c0_i32 = arith.constant 0 : i32
    %c0_i32_0 = arith.constant 0 : i32
    return %arg1, %c0_i32 : i32, i32
  }
  func.func @transform_3(%arg0: i32, %arg1: i32, %arg2: memref<2xi32, #tpu.memory_space<smem>>) -> (i32, i32) {
    %c0_i32 = arith.constant 0 : i32
    return %arg1, %arg0 : i32, i32
  }
  func.func @transform_4(%arg0: i32, %arg1: i32, %arg2: memref<2xi32, #tpu.memory_space<smem>>) -> (i32, i32) {
    %c0_i32 = arith.constant 0 : i32
    %c0_i32_0 = arith.constant 0 : i32
    return %c0_i32, %arg0 : i32, i32
  }
}

module attributes {stable_mosaic.version = 11 : i64} {
  func.func @_gat_proj_kernel(%arg0: i32, %arg1: memref<128x16xf32, #tpu.memory_space<vmem>>, %arg2: memref<16x6xf32, #tpu.memory_space<vmem>>, %arg3: memref<128x4xbf16, #tpu.memory_space<vmem>>, %arg4: memref<128x1xf32, #tpu.memory_space<vmem>>, %arg5: memref<128x1xf32, #tpu.memory_space<vmem>>) attributes {dimension_semantics = [#tpu.dimension_semantics<parallel>], iteration_bounds = array<i64: 2>, scalar_prefetch = 0 : i64, scratch_operands = 0 : i64, tpu.core_type = #tpu.core_type<tc>, window_params = [{transform_indices = @transform_0, window_bounds = array<i64: 128, 16>}, {pipeline_mode = #tpu.pipeline_mode<synchronous>, transform_indices = @transform_1, window_bounds = array<i64: 16, 6>}, {transform_indices = @transform_2, window_bounds = array<i64: 128, 4>}, {transform_indices = @transform_3, window_bounds = array<i64: 128, 1>}, {transform_indices = @transform_4, window_bounds = array<i64: 128, 1>}]} {
    %c0 = arith.constant 0 : index
    %c0_0 = arith.constant 0 : index
    %0 = vector.load %arg1[%c0, %c0_0] : memref<128x16xf32, #tpu.memory_space<vmem>>, vector<128x16xf32>
    %cst = arith.constant 0.000000e+00 : f32
    %1 = vector.broadcast %cst : f32 to vector<128x16xf32>
    %2 = arith.cmpf ogt, %0, %1 : vector<128x16xf32>
    %3 = math.exp %0 : vector<128x16xf32>
    %cst_1 = arith.constant 1.000000e+00 : f32
    %4 = vector.broadcast %cst_1 : f32 to vector<128x16xf32>
    %5 = arith.subf %3, %4 : vector<128x16xf32>
    %6 = arith.select %2, %0, %5 : vector<128x16xi1>, vector<128x16xf32>
    %c0_2 = arith.constant 0 : index
    %c0_3 = arith.constant 0 : index
    %7 = vector.load %arg2[%c0_2, %c0_3] : memref<16x6xf32, #tpu.memory_space<vmem>>, vector<16x6xf32>
    %cst_4 = arith.constant dense<0.000000e+00> : vector<128x6xf32>
    %8 = tpu.matmul %6, %7, %cst_4 {dimension_numbers = #tpu.dot_dimension_numbers<[1], [0], [0], [1], [0, 0, 1, 1], [], []>} : vector<128x16xf32>, vector<16x6xf32>, vector<128x6xf32> -> vector<128x6xf32>
    %9 = vector.extract_strided_slice %8 {offsets = [0, 0], sizes = [128, 4], strides = [1, 1]} : vector<128x6xf32> to vector<128x4xf32>
    %10 = arith.truncf %9 : vector<128x4xf32> to vector<128x4xbf16>
    %c0_5 = arith.constant 0 : index
    %c0_6 = arith.constant 0 : index
    %11 = vector.load %arg3[%c0_5, %c0_6] : memref<128x4xbf16, #tpu.memory_space<vmem>>, vector<128x4xbf16>
    tpu.vector_store %arg3[%c0_5, %c0_6], %10 {strides = array<i32>} : memref<128x4xbf16, #tpu.memory_space<vmem>>, vector<128x4xbf16>,
    %12 = vector.extract_strided_slice %8 {offsets = [0, 4], sizes = [128, 1], strides = [1, 1]} : vector<128x6xf32> to vector<128x1xf32>
    %c0_7 = arith.constant 0 : index
    %c0_8 = arith.constant 0 : index
    %13 = vector.load %arg4[%c0_7, %c0_8] : memref<128x1xf32, #tpu.memory_space<vmem>>, vector<128x1xf32>
    tpu.vector_store %arg4[%c0_7, %c0_8], %12 {strides = array<i32>} : memref<128x1xf32, #tpu.memory_space<vmem>>, vector<128x1xf32>,
    %14 = vector.extract_strided_slice %8 {offsets = [0, 5], sizes = [128, 1], strides = [1, 1]} : vector<128x6xf32> to vector<128x1xf32>
    %c0_9 = arith.constant 0 : index
    %c0_10 = arith.constant 0 : index
    %15 = vector.load %arg5[%c0_9, %c0_10] : memref<128x1xf32, #tpu.memory_space<vmem>>, vector<128x1xf32>
    tpu.vector_store %arg5[%c0_9, %c0_10], %14 {strides = array<i32>} : memref<128x1xf32, #tpu.memory_space<vmem>>, vector<128x1xf32>,
    return
  }
  func.func @transform_0(%arg0: i32) -> (i32, i32) {
    %c0_i32 = arith.constant 0 : i32
    %c0_i32_0 = arith.constant 0 : i32
    return %arg0, %c0_i32 : i32, i32
  }
  func.func @transform_1(%arg0: i32) -> (i32, i32) {
    %c0_i32 = arith.constant 0 : i32
    %c0_i32_0 = arith.constant 0 : i32
    %c0_i32_1 = arith.constant 0 : i32
    return %c0_i32, %c0_i32_0 : i32, i32
  }
  func.func @transform_2(%arg0: i32) -> (i32, i32) {
    %c0_i32 = arith.constant 0 : i32
    %c0_i32_0 = arith.constant 0 : i32
    return %arg0, %c0_i32 : i32, i32
  }
  func.func @transform_3(%arg0: i32) -> (i32, i32) {
    %c0_i32 = arith.constant 0 : i32
    %c0_i32_0 = arith.constant 0 : i32
    return %arg0, %c0_i32 : i32, i32
  }
  func.func @transform_4(%arg0: i32) -> (i32, i32) {
    %c0_i32 = arith.constant 0 : i32
    %c0_i32_0 = arith.constant 0 : i32
    return %arg0, %c0_i32 : i32, i32
  }
}

module attributes {stable_mosaic.version = 11 : i64} {
  func.func @_gat_attn_kernel(%arg0: i32, %arg1: i32, %arg2: memref<2xi32, #tpu.memory_space<smem>>, %arg3: memref<256x1xf32, #tpu.memory_space<vmem>>, %arg4: memref<1x128xf32, #tpu.memory_space<vmem>>, %arg5: memref<256x4xbf16, #tpu.memory_space<vmem>>, %arg6: memref<256x128xi8, #tpu.memory_space<vmem>>, %arg7: memref<4x128xf32, #tpu.memory_space<vmem>>, %arg8: memref<1x1x128xf32, #tpu.memory_space<vmem>>, %arg9: memref<1x1x128xf32, #tpu.memory_space<vmem>>, %arg10: memref<1x4x128xf32, #tpu.memory_space<vmem>>) attributes {dimension_semantics = [#tpu.dimension_semantics<parallel>, #tpu.dimension_semantics<arbitrary>], iteration_bounds = array<i64: 2, 1>, scalar_prefetch = 1 : i64, scratch_operands = 3 : i64, tpu.core_type = #tpu.core_type<tc>, window_params = [{transform_indices = @transform_0, window_bounds = array<i64: 256, 1>}, {transform_indices = @transform_1, window_bounds = array<i64: 1, 128>}, {transform_indices = @transform_2, window_bounds = array<i64: 256, 4>}, {transform_indices = @transform_3, window_bounds = array<i64: 256, 128>}, {transform_indices = @transform_4, window_bounds = array<i64: 4, 128>}]} {
    %c0_i32 = arith.constant 0 : i32
    %0 = arith.cmpi eq, %arg1, %c0_i32 : i32
    %1 = arith.extui %0 : i1 to i32
    %c0_i32_0 = arith.constant 0 : i32
    %2 = arith.cmpi ne, %1, %c0_i32_0 : i32
    scf.if %2 {
      %cst = arith.constant -1.000000e+30 : f32
      %13 = vector.broadcast %cst : f32 to vector<1x1x128xf32>
      %c0 = arith.constant 0 : index
      %c0_5 = arith.constant 0 : index
      %c0_6 = arith.constant 0 : index
      %14 = vector.load %arg8[%c0, %c0_5, %c0_6] : memref<1x1x128xf32, #tpu.memory_space<vmem>>, vector<1x1x128xf32>
      tpu.vector_store %arg8[%c0, %c0_5, %c0_6], %13 {strides = array<i32>} : memref<1x1x128xf32, #tpu.memory_space<vmem>>, vector<1x1x128xf32>,
      %cst_7 = arith.constant 0.000000e+00 : f32
      %15 = vector.broadcast %cst_7 : f32 to vector<1x1x128xf32>
      %c0_8 = arith.constant 0 : index
      %c0_9 = arith.constant 0 : index
      %c0_10 = arith.constant 0 : index
      %16 = vector.load %arg9[%c0_8, %c0_9, %c0_10] : memref<1x1x128xf32, #tpu.memory_space<vmem>>, vector<1x1x128xf32>
      tpu.vector_store %arg9[%c0_8, %c0_9, %c0_10], %15 {strides = array<i32>} : memref<1x1x128xf32, #tpu.memory_space<vmem>>, vector<1x1x128xf32>,
      %cst_11 = arith.constant 0.000000e+00 : f32
      %17 = vector.broadcast %cst_11 : f32 to vector<1x4x128xf32>
      %c0_12 = arith.constant 0 : index
      %c0_13 = arith.constant 0 : index
      %c0_14 = arith.constant 0 : index
      %18 = vector.load %arg10[%c0_12, %c0_13, %c0_14] : memref<1x4x128xf32, #tpu.memory_space<vmem>>, vector<1x4x128xf32>
      tpu.vector_store %arg10[%c0_12, %c0_13, %c0_14], %17 {strides = array<i32>} : memref<1x4x128xf32, #tpu.memory_space<vmem>>, vector<1x4x128xf32>,
    } else {
    }
    %c1_i32 = arith.constant 1 : i32
    %3 = arith.muli %arg0, %c1_i32 : i32
    %4 = arith.addi %3, %arg1 : i32
    %5 = arith.index_cast %4 : i32 to index
    %6 = memref.load %arg2[%5] : memref<2xi32, #tpu.memory_space<smem>>
    %c0_i32_1 = arith.constant 0 : i32
    %7 = arith.cmpi sgt, %6, %c0_i32_1 : i32
    %8 = arith.extui %7 : i1 to i32
    %c0_i32_2 = arith.constant 0 : i32
    %9 = arith.cmpi ne, %8, %c0_i32_2 : i32
    scf.if %9 {
      %c0 = arith.constant 0 : index
      %c0_5 = arith.constant 0 : index
      %13 = vector.load %arg6[%c0, %c0_5] : memref<256x128xi8, #tpu.memory_space<vmem>>, vector<256x128xi8>
      %c0_i8 = arith.constant 0 : i8
      %14 = vector.broadcast %c0_i8 : i8 to vector<256x128xi8>
      %15 = arith.cmpi ne, %13, %14 : vector<256x128xi8>
      %c0_6 = arith.constant 0 : index
      %c0_7 = arith.constant 0 : index
      %16 = vector.load %arg3[%c0_6, %c0_7] : memref<256x1xf32, #tpu.memory_space<vmem>>, vector<256x1xf32>
      %c0_8 = arith.constant 0 : index
      %c0_9 = arith.constant 0 : index
      %17 = vector.load %arg4[%c0_8, %c0_9] : memref<1x128xf32, #tpu.memory_space<vmem>>, vector<1x128xf32>
      %18 = vector.broadcast %16 : vector<256x1xf32> to vector<256x128xf32>
      %19 = vector.broadcast %17 : vector<1x128xf32> to vector<256x128xf32>
      %20 = arith.addf %18, %19 : vector<256x128xf32>
      %cst = arith.constant 0.00999999977 : f32
      %21 = vector.broadcast %cst : f32 to vector<256x128xf32>
      %22 = arith.mulf %21, %20 : vector<256x128xf32>
      %23 = arith.maximumf %20, %22 : vector<256x128xf32>
      %cst_10 = arith.constant -1.000000e+30 : f32
      %24 = vector.broadcast %cst_10 : f32 to vector<256x128xf32>
      %25 = arith.select %15, %23, %24 : vector<256x128xi1>, vector<256x128xf32>
      %c0_11 = arith.constant 0 : index
      %c0_12 = arith.constant 0 : index
      %c0_13 = arith.constant 0 : index
      %26 = vector.load %arg8[%c0_11, %c0_12, %c0_13] : memref<1x1x128xf32, #tpu.memory_space<vmem>>, vector<1x1x128xf32>
      %27 = vector.shape_cast %26 : vector<1x1x128xf32> to vector<1x128xf32>
      %cst_14 = arith.constant dense<0xFF800000> : vector<128xf32>
      %28 = vector.multi_reduction <maximumf>, %25, %cst_14 [0] : vector<256x128xf32> to vector<128xf32>
      %29 = vector.shape_cast %28 : vector<128xf32> to vector<1x128xf32>
      %30 = arith.maximumf %27, %29 : vector<1x128xf32>
      %31 = arith.subf %27, %30 : vector<1x128xf32>
      %32 = math.exp %31 : vector<1x128xf32>
      %33 = vector.broadcast %30 : vector<1x128xf32> to vector<256x128xf32>
      %34 = arith.subf %25, %33 : vector<256x128xf32>
      %35 = math.exp %34 : vector<256x128xf32>
      %cst_15 = arith.constant 0.000000e+00 : f32
      %36 = vector.broadcast %cst_15 : f32 to vector<256x128xf32>
      %37 = arith.select %15, %35, %36 : vector<256x128xi1>, vector<256x128xf32>
      %c0_16 = arith.constant 0 : index
      %c0_17 = arith.constant 0 : index
      %c0_18 = arith.constant 0 : index
      %38 = vector.load %arg9[%c0_16, %c0_17, %c0_18] : memref<1x1x128xf32, #tpu.memory_space<vmem>>, vector<1x1x128xf32>
      %39 = vector.shape_cast %38 : vector<1x1x128xf32> to vector<1x128xf32>
      %40 = arith.mulf %32, %39 : vector<1x128xf32>
      %cst_19 = arith.constant dense<0.000000e+00> : vector<128xf32>
      %41 = vector.multi_reduction <add>, %37, %cst_19 [0] : vector<256x128xf32> to vector<128xf32>
      %42 = vector.shape_cast %41 : vector<128xf32> to vector<1x128xf32>
      %43 = arith.addf %40, %42 : vector<1x128xf32>
      %c0_20 = arith.constant 0 : index
      %c0_21 = arith.constant 0 : index
      %c0_22 = arith.constant 0 : index
      %44 = vector.load %arg9[%c0_20, %c0_21, %c0_22] : memref<1x1x128xf32, #tpu.memory_space<vmem>>, vector<1x1x128xf32>
      %45 = vector.shape_cast %44 : vector<1x1x128xf32> to vector<1x128xf32>
      %46 = vector.shape_cast %43 : vector<1x128xf32> to vector<1x1x128xf32>
      tpu.vector_store %arg9[%c0_20, %c0_21, %c0_22], %46 {strides = array<i32>} : memref<1x1x128xf32, #tpu.memory_space<vmem>>, vector<1x1x128xf32>,
      %c0_23 = arith.constant 0 : index
      %c0_24 = arith.constant 0 : index
      %c0_25 = arith.constant 0 : index
      %47 = vector.load %arg8[%c0_23, %c0_24, %c0_25] : memref<1x1x128xf32, #tpu.memory_space<vmem>>, vector<1x1x128xf32>
      %48 = vector.shape_cast %47 : vector<1x1x128xf32> to vector<1x128xf32>
      %49 = vector.shape_cast %30 : vector<1x128xf32> to vector<1x1x128xf32>
      tpu.vector_store %arg8[%c0_23, %c0_24, %c0_25], %49 {strides = array<i32>} : memref<1x1x128xf32, #tpu.memory_space<vmem>>, vector<1x1x128xf32>,
      %c0_26 = arith.constant 0 : index
      %c0_27 = arith.constant 0 : index
      %50 = vector.load %arg5[%c0_26, %c0_27] : memref<256x4xbf16, #tpu.memory_space<vmem>>, vector<256x4xbf16>
      %51 = arith.truncf %37 : vector<256x128xf32> to vector<256x128xbf16>
      %cst_28 = arith.constant dense<0.000000e+00> : vector<4x128xf32>
      %52 = tpu.matmul %50, %51, %cst_28 {dimension_numbers = #tpu.dot_dimension_numbers<[0], [0], [1], [1], [0, 1, 1, 1], [], []>} : vector<256x4xbf16>, vector<256x128xbf16>, vector<4x128xf32> -> vector<4x128xf32>
      %c0_29 = arith.constant 0 : index
      %c0_30 = arith.constant 0 : index
      %c0_31 = arith.constant 0 : index
      %53 = vector.load %arg10[%c0_29, %c0_30, %c0_31] : memref<1x4x128xf32, #tpu.memory_space<vmem>>, vector<1x4x128xf32>
      %54 = vector.shape_cast %53 : vector<1x4x128xf32> to vector<4x128xf32>
      %55 = vector.broadcast %32 : vector<1x128xf32> to vector<4x128xf32>
      %56 = arith.mulf %54, %55 : vector<4x128xf32>
      %57 = arith.addf %56, %52 : vector<4x128xf32>
      %c0_32 = arith.constant 0 : index
      %c0_33 = arith.constant 0 : index
      %c0_34 = arith.constant 0 : index
      %58 = vector.load %arg10[%c0_32, %c0_33, %c0_34] : memref<1x4x128xf32, #tpu.memory_space<vmem>>, vector<1x4x128xf32>
      %59 = vector.shape_cast %58 : vector<1x4x128xf32> to vector<4x128xf32>
      %60 = vector.shape_cast %57 : vector<4x128xf32> to vector<1x4x128xf32>
      tpu.vector_store %arg10[%c0_32, %c0_33, %c0_34], %60 {strides = array<i32>} : memref<1x4x128xf32, #tpu.memory_space<vmem>>, vector<1x4x128xf32>,
    } else {
    }
    %c0_i32_3 = arith.constant 0 : i32
    %10 = arith.cmpi eq, %arg1, %c0_i32_3 : i32
    %11 = arith.extui %10 : i1 to i32
    %c0_i32_4 = arith.constant 0 : i32
    %12 = arith.cmpi ne, %11, %c0_i32_4 : i32
    scf.if %12 {
      %c0 = arith.constant 0 : index
      %c0_5 = arith.constant 0 : index
      %c0_6 = arith.constant 0 : index
      %13 = vector.load %arg9[%c0, %c0_5, %c0_6] : memref<1x1x128xf32, #tpu.memory_space<vmem>>, vector<1x1x128xf32>
      %14 = vector.shape_cast %13 : vector<1x1x128xf32> to vector<1x128xf32>
      %cst = arith.constant 9.99999968E-21 : f32
      %15 = vector.broadcast %cst : f32 to vector<1x128xf32>
      %16 = arith.maximumf %14, %15 : vector<1x128xf32>
      %17 = tpu.reciprocal %16 {approx = true} : vector<1x128xf32> -> vector<1x128xf32>
      %c0_7 = arith.constant 0 : index
      %c0_8 = arith.constant 0 : index
      %c0_9 = arith.constant 0 : index
      %18 = vector.load %arg10[%c0_7, %c0_8, %c0_9] : memref<1x4x128xf32, #tpu.memory_space<vmem>>, vector<1x4x128xf32>
      %19 = vector.shape_cast %18 : vector<1x4x128xf32> to vector<4x128xf32>
      %20 = vector.broadcast %17 : vector<1x128xf32> to vector<4x128xf32>
      %21 = arith.mulf %19, %20 : vector<4x128xf32>
      %c0_10 = arith.constant 0 : index
      %c0_11 = arith.constant 0 : index
      %22 = vector.load %arg7[%c0_10, %c0_11] : memref<4x128xf32, #tpu.memory_space<vmem>>, vector<4x128xf32>
      tpu.vector_store %arg7[%c0_10, %c0_11], %21 {strides = array<i32>} : memref<4x128xf32, #tpu.memory_space<vmem>>, vector<4x128xf32>,
    } else {
    }
    return
  }
  func.func @transform_0(%arg0: i32, %arg1: i32, %arg2: memref<2xi32, #tpu.memory_space<smem>>) -> (i32, i32) {
    %c0_i32 = arith.constant 0 : i32
    %c0_i32_0 = arith.constant 0 : i32
    return %arg1, %c0_i32 : i32, i32
  }
  func.func @transform_1(%arg0: i32, %arg1: i32, %arg2: memref<2xi32, #tpu.memory_space<smem>>) -> (i32, i32) {
    %c0_i32 = arith.constant 0 : i32
    %c0_i32_0 = arith.constant 0 : i32
    return %c0_i32, %arg0 : i32, i32
  }
  func.func @transform_2(%arg0: i32, %arg1: i32, %arg2: memref<2xi32, #tpu.memory_space<smem>>) -> (i32, i32) {
    %c0_i32 = arith.constant 0 : i32
    %c0_i32_0 = arith.constant 0 : i32
    return %arg1, %c0_i32 : i32, i32
  }
  func.func @transform_3(%arg0: i32, %arg1: i32, %arg2: memref<2xi32, #tpu.memory_space<smem>>) -> (i32, i32) {
    %c0_i32 = arith.constant 0 : i32
    return %arg1, %arg0 : i32, i32
  }
  func.func @transform_4(%arg0: i32, %arg1: i32, %arg2: memref<2xi32, #tpu.memory_space<smem>>) -> (i32, i32) {
    %c0_i32 = arith.constant 0 : i32
    %c0_i32_0 = arith.constant 0 : i32
    return %c0_i32, %arg0 : i32, i32
  }
}

</mosaic_0001>

<llo_original>
// kernel: gat_forward.4
$region0: #{gat_forward.4}
  #allocation0 [shape = 'u32[]', space=smem, size = 0x4, offset = 0x4, fixed_abs, tag = 'smem constant byte address 0x4 - core index']
  #allocation1 [shape = 'u32[72,128]{1,0:T(1,128)}', space=vmem, size = 0x9000, scoped, tag = 'internal scratch']
  %s0 = inlined_call_operand.vmem [shape: f32[256,16], index: 0, kind: input, shape index: {}]
  %s1 = inlined_call_operand.vmem [shape: f32[16,20], index: 1, kind: input, shape index: {}]
  %s2 = inlined_call_operand.vmem [shape: bf16[256,16], index: 2, kind: output, shape index: {0}]
  %s3 = inlined_call_operand.vmem [shape: f32[256,2], index: 3, kind: output, shape index: {1}]
  %s4 = inlined_call_operand.vmem [shape: f32[256,2], index: 4, kind: output, shape index: {2}]
  %5 = xla_tuple %s2, %s3, %s4
  %s6 = sld [smem:[#allocation0]]
  $region57: #{gat_forward.4} parent=0
    _
  %s8 = ssub.s32 1, %s6
  %s9 = scalar_select 0, %s8, %s6
  loop: start=0, step=1, limit=4
  $region2: #{gat_forward.4} parent=0 // loop_pre_header
    _
  $region3: #{gat_forward.4} parent=0 // loop_header
    %s11 = sphi 0, %s15
    %p12 = scmp.ge.s32.totalorder %s11, 4
    %s21 = sphi 0, %s23
    %s24 = sphi 0, %s21
    %s25 = sphi 0, %s24
    %s41 = sphi 0, %s25
    %s45 = sphi 0, %s45
    %s47 = sphi 0, %s45
    %s48 = sphi 0, %s47
    %s62 = sphi 0, %s48
    %s68 = sphi 0, %s70
    %s71 = sphi 0, %s68
    %s72 = sphi 0, %s71
    %s88 = sphi 0, %s72
    %s94 = sphi 0, %s96
    %s97 = sphi 0, %s94
    %s98 = sphi 0, %s97
    %s114 = sphi 0, %s98
    %s120 = sphi 0, %s122
    %s123 = sphi 0, %s120
    %s124 = sphi 0, %s123
    %s140 = sphi 0, %s124
  $region4: #{gat_forward.4} parent=0 // loop_header_branch
    %14 = sbr.rel (%p12) target = $region8
  $region5: #{gat_forward.4} parent=0 // loop_body
    %s16 = ssub.s32 %s11, 1
    %s17 = ssub.s32 %s11, 2
    %s18 = sadd.s32 %s11, 1
    %s19 = ssub.s32 %s11, %s18
    %p20 = scmp.eq.s32.totalorder %s19, 0
    %s22 = sadd.s32 %s21, 1
    %s23 = scalar_select %p20, %s21, %s22
    %p26 = pneg %p20
    %p27 = scmp.eq.s32.totalorder %s11, 1
    %p28 = por %p26, %p27
    %p29 = scmp.ne.s32.totalorder %s21, %s24
    %p30 = scmp.eq.s32.totalorder %s11, 0
    %p31 = por %p29, %p30
    %p32 = scmp.ne.s32.totalorder %s21, %s24
    %p33 = scmp.eq.s32.totalorder %s16, 1
    %p34 = por %p32, %p33
    %p35 = scmp.ne.s32.totalorder %s24, %s25
    %p36 = scmp.eq.s32.totalorder %s16, 0
    %p37 = por %p35, %p36
    %p38 = scmp.ne.s32.totalorder %s24, %s25
    %p39 = scmp.eq.s32.totalorder %s17, 1
    %p40 = por %p38, %p39
    %p42 = scmp.ne.s32.totalorder %s25, %s41
    %p43 = scmp.eq.s32.totalorder %s17, 0
    %p44 = por %p42, %p43
    %s46 = sadd.s32 %s45, 1
    %p49 = scmp.eq.s32.totalorder %s11, 1
    %p50 = scmp.ne.s32.totalorder %s45, %s47
    %p51 = scmp.eq.s32.totalorder %s11, 0
    %p52 = por %p50, %p51
    %p53 = scmp.ne.s32.totalorder %s45, %s47
    %p54 = scmp.eq.s32.totalorder %s16, 1
    %p55 = por %p53, %p54
    %p56 = scmp.ne.s32.totalorder %s47, %s48
    %p57 = scmp.eq.s32.totalorder %s16, 0
    %p58 = por %p56, %p57
    %p59 = scmp.ne.s32.totalorder %s47, %s48
    %p60 = scmp.eq.s32.totalorder %s17, 1
    %p61 = por %p59, %p60
    %p63 = scmp.ne.s32.totalorder %s48, %s62
    %p64 = scmp.eq.s32.totalorder %s17, 0
    %p65 = por %p63, %p64
    %s66 = ssub.s32 %s11, %s18
    %p67 = scmp.eq.s32.totalorder %s66, 0
    %s69 = sadd.s32 %s68, 1
    %s70 = scalar_select %p67, %s68, %s69
    %p73 = pneg %p67
    %p74 = scmp.eq.s32.totalorder %s11, 1
    %p75 = por %p73, %p74
    %p76 = scmp.ne.s32.totalorder %s68, %s71
    %p77 = scmp.eq.s32.totalorder %s11, 0
    %p78 = por %p76, %p77
    %p79 = scmp.ne.s32.totalorder %s68, %s71
    %p80 = scmp.eq.s32.totalorder %s16, 1
    %p81 = por %p79, %p80
    %p82 = scmp.ne.s32.totalorder %s71, %s72
    %p83 = scmp.eq.s32.totalorder %s16, 0
    %p84 = por %p82, %p83
    %p85 = scmp.ne.s32.totalorder %s71, %s72
    %p86 = scmp.eq.s32.totalorder %s17, 1
    %p87 = por %p85, %p86
    %p89 = scmp.ne.s32.totalorder %s72, %s88
    %p90 = scmp.eq.s32.totalorder %s17, 0
    %p91 = por %p89, %p90
    %s92 = ssub.s32 %s11, %s18
    %p93 = scmp.eq.s32.totalorder %s92, 0
    %s95 = sadd.s32 %s94, 1
    %s96 = scalar_select %p93, %s94, %s95
    %p99 = pneg %p93
    %p100 = scmp.eq.s32.totalorder %s11, 1
    %p101 = por %p99, %p100
    %p102 = scmp.ne.s32.totalorder %s94, %s97
    %p103 = scmp.eq.s32.totalorder %s11, 0
    %p104 = por %p102, %p103
    %p105 = scmp.ne.s32.totalorder %s94, %s97
    %p106 = scmp.eq.s32.totalorder %s16, 1
    %p107 = por %p105, %p106
    %p108 = scmp.ne.s32.totalorder %s97, %s98
    %p109 = scmp.eq.s32.totalorder %s16, 0
    %p110 = por %p108, %p109
    %p111 = scmp.ne.s32.totalorder %s97, %s98
    %p112 = scmp.eq.s32.totalorder %s17, 1
    %p113 = por %p111, %p112
    %p115 = scmp.ne.s32.totalorder %s98, %s114
    %p116 = scmp.eq.s32.totalorder %s17, 0
    %p117 = por %p115, %p116
    %s118 = ssub.s32 %s11, %s18
    %p119 = scmp.eq.s32.totalorder %s118, 0
    %s121 = sadd.s32 %s120, 1
    %s122 = scalar_select %p119, %s120, %s121
    %p125 = pneg %p119
    %p126 = scmp.eq.s32.totalorder %s11, 1
    %p127 = por %p125, %p126
    %p128 = scmp.ne.s32.totalorder %s120, %s123
    %p129 = scmp.eq.s32.totalorder %s11, 0
    %p130 = por %p128, %p129
    %p131 = scmp.ne.s32.totalorder %s120, %s123
    %p132 = scmp.eq.s32.totalorder %s16, 1
    %p133 = por %p131, %p132
    %p134 = scmp.ne.s32.totalorder %s123, %s124
    %p135 = scmp.eq.s32.totalorder %s16, 0
    %p136 = por %p134, %p135
    %p137 = scmp.ne.s32.totalorder %s123, %s124
    %p138 = scmp.eq.s32.totalorder %s17, 1
    %p139 = por %p137, %p138
    %p141 = scmp.ne.s32.totalorder %s124, %s140
    %p142 = scmp.eq.s32.totalorder %s17, 0
    %p143 = por %p141, %p142
    %p144 = scmp.le.s32.totalorder 1, %s11
    %p145 = scmp.lt.s32.totalorder %s11, 3
    %p146 = pnand %p144, %p145
    %p147 = pneg %p146
    // Predicated region
    $region9: #{gat_forward.4} parent=5 // pred_check
      _
    $region10: #{gat_forward.4} parent=5 // pred_check_branch
      %149 = sbr.rel (%p146) target = $region12
    $region11: #{gat_forward.4} parent=5 // pred_region
      %s150 = ssub.s32 %s11, 1
      // Predicated region
      $region13: #{gat_forward.4} parent=11 // pred_check
        %p151 = pneg %p58
      $region14: #{gat_forward.4} parent=11 // pred_check_branch
        %153 = sbr.rel (%p151) target = $region16
      $region15: #{gat_forward.4} parent=11 // pred_region
        _
      $region16: #{gat_forward.4} parent=11 // pred_fallthru
        _
    $region12: #{gat_forward.4} parent=5 // pred_fallthru
      _
    %p154 = scmp.lt.s32.totalorder %s11, 2
    // Predicated region
    $region17: #{gat_forward.4} parent=5 // pred_check
      %p155 = pneg %p154
    $region18: #{gat_forward.4} parent=5 // pred_check_branch
      %157 = sbr.rel (%p155) target = $region20
    $region19: #{gat_forward.4} parent=5 // pred_region
      // Predicated region
      $region21: #{gat_forward.4} parent=19 // pred_check
        %p158 = pneg %p31
      $region22: #{gat_forward.4} parent=19 // pred_check_branch
        %160 = sbr.rel (%p158) target = $region24
      $region23: #{gat_forward.4} parent=19 // pred_region
        %s161 = smul.u32 16, %s11
        %p162 = scmp.lt.s32.totalorder %s161, 31
        %s163 = scalar_select %p162, %s161, 31
        %s164 = smul.addr %s163, 8
        %s165 = scalar_lea.vmem %s0, %s164
        %s166 = smul.u32 16, %s11
      $region24: #{gat_forward.4} parent=19 // pred_fallthru
        _
    $region20: #{gat_forward.4} parent=5 // pred_fallthru
      _
    %p167 = scmp.le.s32.totalorder 1, %s11
    %p168 = scmp.lt.s32.totalorder %s11, 3
    %p169 = pnand %p167, %p168
    %p170 = pneg %p169
    // Predicated region
    $region25: #{gat_forward.4} parent=5 // pred_check
      _
    $region26: #{gat_forward.4} parent=5 // pred_check_branch
      %172 = sbr.rel (%p169) target = $region28
    $region27: #{gat_forward.4} parent=5 // pred_region
      %s173 = ssub.s32 %s11, 1
      %s174 = smul.u32 16, %s16
      %p175 = scmp.lt.s32.totalorder %s174, 31
      %s176 = scalar_select %p175, %s174, 31
      %s177 = smul.addr %s176, 8
      %s178 = scalar_lea.vmem %s0, %s177
      %p179 = pneg %p37
      %p180 = pneg %p34
      %p181 = pneg %p58
      %p182 = pneg %p55
      %p183 = pneg %p84
      %p184 = pneg %p81
      %s185 = smul.u32 16, %s16
      %p186 = scmp.lt.s32.totalorder %s185, 31
      %s187 = scalar_select %p186, %s185, 31
      %s188 = smul.addr %s187, 4
      %s189 = scalar_lea.vmem %s2, %s188
      %p190 = pneg %p110
      %p191 = pneg %p107
      %s192 = smul.u32 16, %s16
      %p193 = scmp.lt.s32.totalorder %s192, 31
      %s194 = scalar_select %p193, %s192, 31
      %s195 = smul.addr %s194, 8
      %s196 = scalar_lea.vmem %s3, %s195
      %p197 = pneg %p136
      %p198 = pneg %p133
      %s199 = smul.u32 16, %s16
      %p200 = scmp.lt.s32.totalorder %s199, 31
      %s201 = scalar_select %p200, %s199, 31
      %s202 = smul.addr %s201, 8
      %s203 = scalar_lea.vmem %s4, %s202
      %s204 = smul.u32 16, %s16
      %p205 = scmp.lt.s32.totalorder %s204, 31
      %s206 = scalar_select %p205, %s204, 31
      %s207 = smul.addr %s206, 8
      %s208 = scalar_lea.vmem %s0, %s207
      %s209 = smul.u32 16, %s16
      %s210 = smul.u32 16, %s16
      %p211 = scmp.lt.s32.totalorder %s210, 31
      %s212 = scalar_select %p211, %s210, 31
      %s213 = smul.addr %s212, 4
      %s214 = scalar_lea.vmem %s2, %s213
      %s215 = smul.u32 16, %s16
      %s216 = smul.u32 16, %s16
      %p217 = scmp.lt.s32.totalorder %s216, 31
      %s218 = scalar_select %p217, %s216, 31
      %s219 = smul.addr %s218, 8
      %s220 = scalar_lea.vmem %s3, %s219
      %s221 = smul.u32 16, %s16
      %s222 = smul.u32 16, %s16
      %p223 = scmp.lt.s32.totalorder %s222, 31
      %s224 = scalar_select %p223, %s222, 31
      %s225 = smul.addr %s224, 8
      %s226 = scalar_lea.vmem %s4, %s225
      %s227 = smul.u32 16, %s16
      %v228 = vld [vmem:[%s208] sm:$0xff]
      %v229 = vld [vmem:[%s208 + $0x8] sm:$0xff]
      %v230 = vld [vmem:[%s208 + $0x10] sm:$0xff]
      %v231 = vld [vmem:[%s208 + $0x18] sm:$0xff]
      %v232 = vld [vmem:[%s208 + $0x20] sm:$0xff]
      %v233 = vld [vmem:[%s208 + $0x28] sm:$0xff]
      %v234 = vld [vmem:[%s208 + $0x30] sm:$0xff]
      %v235 = vld [vmem:[%s208 + $0x38] sm:$0xff]
      %v236 = vld [vmem:[%s208 + $0x40] sm:$0xff]
      %v237 = vld [vmem:[%s208 + $0x48] sm:$0xff]
      %v238 = vld [vmem:[%s208 + $0x50] sm:$0xff]
      %v239 = vld [vmem:[%s208 + $0x58] sm:$0xff]
      %v240 = vld [vmem:[%s208 + $0x60] sm:$0xff]
      %v241 = vld [vmem:[%s208 + $0x68] sm:$0xff]
      %v242 = vld [vmem:[%s208 + $0x70] sm:$0xff]
      %v243 = vld [vmem:[%s208 + $0x78] sm:$0xff]
      %v244 = vld [vmem:[%s1] sm:$0xff]
      %v245 = vld [vmem:[%s1 + $0x8] sm:$0xff]
      %vm246 = vcmask 130048
      %v248 = vsel %vm246, %v228, 0
      %v251 = vsel %vm246, %v229, 0
      %v254 = vsel %vm246, %v230, 0
      %v257 = vsel %vm246, %v231, 0
      %v260 = vsel %vm246, %v232, 0
      %v263 = vsel %vm246, %v233, 0
      %v266 = vsel %vm246, %v234, 0
      %v269 = vsel %vm246, %v235, 0
      %v272 = vsel %vm246, %v236, 0
      %v275 = vsel %vm246, %v237, 0
      %v278 = vsel %vm246, %v238, 0
      %v281 = vsel %vm246, %v239, 0
      %v284 = vsel %vm246, %v240, 0
      %v287 = vsel %vm246, %v241, 0
      %v290 = vsel %vm246, %v242, 0
      %v293 = vsel %vm246, %v243, 0
      %295 = vmatpush.msra.mxu0 0.0
      %296 = vmatpush.msra.mxu0 0.0
      %297 = vmatpush.msra.mxu0 0.0
      %298 = vmatpush.msra.mxu0 0.0
      %299 = vmatpush.msra.mxu0 0.0
      %300 = vmatpush.msra.mxu0 0.0
      %301 = vmatpush.msra.mxu0 0.0
      %302 = vmatpush.msra.mxu0 0.0
      %303 = vmatpush.msra.mxu0 0.0
      %304 = vmatpush.msra.mxu0 0.0
      %305 = vmatpush.msra.mxu0 0.0
      %306 = vmatpush.msra.mxu0 0.0
      %307 = vmatpush.msra.mxu0 0.0
      %308 = vmatpush.msra.mxu0 0.0
      %309 = vmatpush.msra.mxu0 %v245
      %310 = vmatpush.msra.mxu0 %v244
      %311 = vmatmul.f32.gmra.mxu0 %v248
      %v312 = vpop.f32.mrf.mxu0
      %v313 = vadd.f32 0.0, %v312
      %314 = vmatmul.f32.gmra.mxu0 %v251
      %v315 = vpop.f32.mrf.mxu0
      %v316 = vadd.f32 0.0, %v315
      %317 = vmatmul.f32.gmra.mxu0 %v254
      %v318 = vpop.f32.mrf.mxu0
      %v319 = vadd.f32 0.0, %v318
      %320 = vmatmul.f32.gmra.mxu0 %v257
      %v321 = vpop.f32.mrf.mxu0
      %v322 = vadd.f32 0.0, %v321
      %323 = vmatmul.f32.gmra.mxu0 %v260
      %v324 = vpop.f32.mrf.mxu0
      %v325 = vadd.f32 0.0, %v324
      %326 = vmatmul.f32.gmra.mxu0 %v263
      %v327 = vpop.f32.mrf.mxu0
      %v328 = vadd.f32 0.0, %v327
      %329 = vmatmul.f32.gmra.mxu0 %v266
      %v330 = vpop.f32.mrf.mxu0
      %v331 = vadd.f32 0.0, %v330
      %332 = vmatmul.f32.gmra.mxu0 %v269
      %v333 = vpop.f32.mrf.mxu0
      %v334 = vadd.f32 0.0, %v333
      %335 = vmatmul.f32.gmra.mxu0 %v272
      %v336 = vpop.f32.mrf.mxu0
      %v337 = vadd.f32 0.0, %v336
      %338 = vmatmul.f32.gmra.mxu0 %v275
      %v339 = vpop.f32.mrf.mxu0
      %v340 = vadd.f32 0.0, %v339
      %341 = vmatmul.f32.gmra.mxu0 %v278
      %v342 = vpop.f32.mrf.mxu0
      %v343 = vadd.f32 0.0, %v342
      %344 = vmatmul.f32.gmra.mxu0 %v281
      %v345 = vpop.f32.mrf.mxu0
      %v346 = vadd.f32 0.0, %v345
      %347 = vmatmul.f32.gmra.mxu0 %v284
      %v348 = vpop.f32.mrf.mxu0
      %v349 = vadd.f32 0.0, %v348
      %350 = vmatmul.f32.gmra.mxu0 %v287
      %v351 = vpop.f32.mrf.mxu0
      %v352 = vadd.f32 0.0, %v351
      %353 = vmatmul.f32.gmra.mxu0 %v290
      %v354 = vpop.f32.mrf.mxu0
      %v355 = vadd.f32 0.0, %v354
      %356 = vmatmul.f32.gmra.mxu0 %v293
      %v357 = vpop.f32.mrf.mxu0
      %v358 = vadd.f32 0.0, %v357
      %359 = vdwg.mxu0
      %v360 = vpack.c.bf16 %v313, %v313
      %v361 = vpack.c.bf16 %v316, %v316
      %v362 = vpack.c.bf16 %v319, %v319
      %v363 = vpack.c.bf16 %v322, %v322
      %v364 = vpack.c.bf16 %v325, %v325
      %v365 = vpack.c.bf16 %v328, %v328
      %v366 = vpack.c.bf16 %v331, %v331
      %v367 = vpack.c.bf16 %v334, %v334
      %v368 = vpack.c.bf16 %v337, %v337
      %v369 = vpack.c.bf16 %v340, %v340
      %v370 = vpack.c.bf16 %v343, %v343
      %v371 = vpack.c.bf16 %v346, %v346
      %v372 = vpack.c.bf16 %v349, %v349
      %v373 = vpack.c.bf16 %v352, %v352
      %v374 = vpack.c.bf16 %v355, %v355
      %v375 = vpack.c.bf16 %v358, %v358
      %vm376 = vcmask 125952
      %377 = vst.msk [vmem:[%s214] sm:$0xf] %vm376, %v360
      %378 = vst.msk [vmem:[%s214 + $0x4] sm:$0xf] %vm376, %v361
      %379 = vst.msk [vmem:[%s214 + $0x8] sm:$0xf] %vm376, %v362
      %380 = vst.msk [vmem:[%s214 + $0xc] sm:$0xf] %vm376, %v363
      %381 = vst.msk [vmem:[%s214 + $0x10] sm:$0xf] %vm376, %v364
      %382 = vst.msk [vmem:[%s214 + $0x14] sm:$0xf] %vm376, %v365
      %383 = vst.msk [vmem:[%s214 + $0x18] sm:$0xf] %vm376, %v366
      %384 = vst.msk [vmem:[%s214 + $0x1c] sm:$0xf] %vm376, %v367
      %385 = vst.msk [vmem:[%s214 + $0x20] sm:$0xf] %vm376, %v368
      %386 = vst.msk [vmem:[%s214 + $0x24] sm:$0xf] %vm376, %v369
      %387 = vst.msk [vmem:[%s214 + $0x28] sm:$0xf] %vm376, %v370
      %388 = vst.msk [vmem:[%s214 + $0x2c] sm:$0xf] %vm376, %v371
      %389 = vst.msk [vmem:[%s214 + $0x30] sm:$0xf] %vm376, %v372
      %390 = vst.msk [vmem:[%s214 + $0x34] sm:$0xf] %vm376, %v373
      %391 = vst.msk [vmem:[%s214 + $0x38] sm:$0xf] %vm376, %v374
      %392 = vst.msk [vmem:[%s214 + $0x3c] sm:$0xf] %vm376, %v375
      %409 = vrot.lane.b32.xlu0 %v313, 112
      %v410 = vpop.permute.xlu0 %409
      %411 = vrot.lane.b32.xlu0 %v316, 112
      %v412 = vpop.permute.xlu0 %411
      %413 = vrot.lane.b32.xlu0 %v319, 112
      %v414 = vpop.permute.xlu0 %413
      %415 = vrot.lane.b32.xlu0 %v322, 112
      %v416 = vpop.permute.xlu0 %415
      %417 = vrot.lane.b32.xlu0 %v325, 112
      %v418 = vpop.permute.xlu0 %417
      %419 = vrot.lane.b32.xlu0 %v328, 112
      %v420 = vpop.permute.xlu0 %419
      %421 = vrot.lane.b32.xlu0 %v331, 112
      %v422 = vpop.permute.xlu0 %421
      %423 = vrot.lane.b32.xlu0 %v334, 112
      %v424 = vpop.permute.xlu0 %423
      %425 = vrot.lane.b32.xlu0 %v337, 112
      %v426 = vpop.permute.xlu0 %425
      %427 = vrot.lane.b32.xlu0 %v340, 112
      %v428 = vpop.permute.xlu0 %427
      %429 = vrot.lane.b32.xlu0 %v343, 112
      %v430 = vpop.permute.xlu0 %429
      %431 = vrot.lane.b32.xlu0 %v346, 112
      %v432 = vpop.permute.xlu0 %431
      %433 = vrot.lane.b32.xlu0 %v349, 112
      %v434 = vpop.permute.xlu0 %433
      %435 = vrot.lane.b32.xlu0 %v352, 112
      %v436 = vpop.permute.xlu0 %435
      %437 = vrot.lane.b32.xlu0 %v355, 112
      %v438 = vpop.permute.xlu0 %437
      %439 = vrot.lane.b32.xlu0 %v358, 112
      %v440 = vpop.permute.xlu0 %439
      %vm457 = vcmask 15360
      %458 = vst.msk [vmem:[%s220] sm:$0xff] %vm457, %v410
      %459 = vst.msk [vmem:[%s220 + $0x8] sm:$0xff] %vm457, %v412
      %460 = vst.msk [vmem:[%s220 + $0x10] sm:$0xff] %vm457, %v414
      %461 = vst.msk [vmem:[%s220 + $0x18] sm:$0xff] %vm457, %v416
      %462 = vst.msk [vmem:[%s220 + $0x20] sm:$0xff] %vm457, %v418
      %463 = vst.msk [vmem:[%s220 + $0x28] sm:$0xff] %vm457, %v420
      %464 = vst.msk [vmem:[%s220 + $0x30] sm:$0xff] %vm457, %v422
      %465 = vst.msk [vmem:[%s220 + $0x38] sm:$0xff] %vm457, %v424
      %466 = vst.msk [vmem:[%s220 + $0x40] sm:$0xff] %vm457, %v426
      %467 = vst.msk [vmem:[%s220 + $0x48] sm:$0xff] %vm457, %v428
      %468 = vst.msk [vmem:[%s220 + $0x50] sm:$0xff] %vm457, %v430
      %469 = vst.msk [vmem:[%s220 + $0x58] sm:$0xff] %vm457, %v432
      %470 = vst.msk [vmem:[%s220 + $0x60] sm:$0xff] %vm457, %v434
      %471 = vst.msk [vmem:[%s220 + $0x68] sm:$0xff] %vm457, %v436
      %472 = vst.msk [vmem:[%s220 + $0x70] sm:$0xff] %vm457, %v438
      %473 = vst.msk [vmem:[%s220 + $0x78] sm:$0xff] %vm457, %v440
      %474 = vrot.lane.b32.xlu0 %v313, 110
      %v475 = vpop.permute.xlu0 %474
      %476 = vrot.lane.b32.xlu0 %v316, 110
      %v477 = vpop.permute.xlu0 %476
      %478 = vrot.lane.b32.xlu0 %v319, 110
      %v479 = vpop.permute.xlu0 %478
      %480 = vrot.lane.b32.xlu0 %v322, 110
      %v481 = vpop.permute.xlu0 %480
      %482 = vrot.lane.b32.xlu0 %v325, 110
      %v483 = vpop.permute.xlu0 %482
      %484 = vrot.lane.b32.xlu0 %v328, 110
      %v485 = vpop.permute.xlu0 %484
      %486 = vrot.lane.b32.xlu0 %v331, 110
      %v487 = vpop.permute.xlu0 %486
      %488 = vrot.lane.b32.xlu0 %v334, 110
      %v489 = vpop.permute.xlu0 %488
      %490 = vrot.lane.b32.xlu0 %v337, 110
      %v491 = vpop.permute.xlu0 %490
      %492 = vrot.lane.b32.xlu0 %v340, 110
      %v493 = vpop.permute.xlu0 %492
      %494 = vrot.lane.b32.xlu0 %v343, 110
      %v495 = vpop.permute.xlu0 %494
      %496 = vrot.lane.b32.xlu0 %v346, 110
      %v497 = vpop.permute.xlu0 %496
      %498 = vrot.lane.b32.xlu0 %v349, 110
      %v499 = vpop.permute.xlu0 %498
      %500 = vrot.lane.b32.xlu0 %v352, 110
      %v501 = vpop.permute.xlu0 %500
      %502 = vrot.lane.b32.xlu0 %v355, 110
      %v503 = vpop.permute.xlu0 %502
      %504 = vrot.lane.b32.xlu0 %v358, 110
      %v505 = vpop.permute.xlu0 %504
      %522 = vst.msk [vmem:[%s226] sm:$0xff] %vm457, %v475
      %523 = vst.msk [vmem:[%s226 + $0x8] sm:$0xff] %vm457, %v477
      %524 = vst.msk [vmem:[%s226 + $0x10] sm:$0xff] %vm457, %v479
      %525 = vst.msk [vmem:[%s226 + $0x18] sm:$0xff] %vm457, %v481
      %526 = vst.msk [vmem:[%s226 + $0x20] sm:$0xff] %vm457, %v483
      %527 = vst.msk [vmem:[%s226 + $0x28] sm:$0xff] %vm457, %v485
      %528 = vst.msk [vmem:[%s226 + $0x30] sm:$0xff] %vm457, %v487
      %529 = vst.msk [vmem:[%s226 + $0x38] sm:$0xff] %vm457, %v489
      %530 = vst.msk [vmem:[%s226 + $0x40] sm:$0xff] %vm457, %v491
      %531 = vst.msk [vmem:[%s226 + $0x48] sm:$0xff] %vm457, %v493
      %532 = vst.msk [vmem:[%s226 + $0x50] sm:$0xff] %vm457, %v495
      %533 = vst.msk [vmem:[%s226 + $0x58] sm:$0xff] %vm457, %v497
      %534 = vst.msk [vmem:[%s226 + $0x60] sm:$0xff] %vm457, %v499
      %535 = vst.msk [vmem:[%s226 + $0x68] sm:$0xff] %vm457, %v501
      %536 = vst.msk [vmem:[%s226 + $0x70] sm:$0xff] %vm457, %v503
      %537 = vst.msk [vmem:[%s226 + $0x78] sm:$0xff] %vm457, %v505
      %s538 = smul.u32 16, %s16
      %p539 = scmp.lt.s32.totalorder %s538, 31
      %s540 = scalar_select %p539, %s538, 31
      %s541 = smul.addr %s540, 4
      %s542 = scalar_lea.vmem %s2, %s541
      %s543 = smul.u32 16, %s16
      %p544 = scmp.lt.s32.totalorder %s543, 31
      %s545 = scalar_select %p544, %s543, 31
      %s546 = smul.addr %s545, 8
      %s547 = scalar_lea.vmem %s3, %s546
      %s548 = smul.u32 16, %s16
      %p549 = scmp.lt.s32.totalorder %s548, 31
      %s550 = scalar_select %p549, %s548, 31
      %s551 = smul.addr %s550, 8
      %s552 = scalar_lea.vmem %s4, %s551
      // Predicated region
      $region29: #{gat_forward.4} parent=27 // pred_check
        %p553 = pneg %p81
      $region30: #{gat_forward.4} parent=27 // pred_check_branch
        %555 = sbr.rel (%p553) target = $region32
      $region31: #{gat_forward.4} parent=27 // pred_region
        %s556 = smul.u32 16, %s16
      $region32: #{gat_forward.4} parent=27 // pred_fallthru
        _
      // Predicated region
      $region33: #{gat_forward.4} parent=27 // pred_check
        %p557 = pneg %p107
      $region34: #{gat_forward.4} parent=27 // pred_check_branch
        %559 = sbr.rel (%p557) target = $region36
      $region35: #{gat_forward.4} parent=27 // pred_region
        %s560 = smul.u32 16, %s16
      $region36: #{gat_forward.4} parent=27 // pred_fallthru
        _
      // Predicated region
      $region37: #{gat_forward.4} parent=27 // pred_check
        %p561 = pneg %p133
      $region38: #{gat_forward.4} parent=27 // pred_check_branch
        %563 = sbr.rel (%p561) target = $region40
      $region39: #{gat_forward.4} parent=27 // pred_region
        %s564 = smul.u32 16, %s16
      $region40: #{gat_forward.4} parent=27 // pred_fallthru
        _
    $region28: #{gat_forward.4} parent=5 // pred_fallthru
      _
    %p565 = scmp.le.s32.totalorder 2, %s11
    // Predicated region
    $region41: #{gat_forward.4} parent=5 // pred_check
      %p566 = pneg %p565
    $region42: #{gat_forward.4} parent=5 // pred_check_branch
      %568 = sbr.rel (%p566) target = $region44
    $region43: #{gat_forward.4} parent=5 // pred_region
      %s569 = ssub.s32 %s11, 2
      // Predicated region
      $region45: #{gat_forward.4} parent=43 // pred_check
        %p570 = pneg %p87
      $region46: #{gat_forward.4} parent=43 // pred_check_branch
        %572 = sbr.rel (%p570) target = $region48
      $region47: #{gat_forward.4} parent=43 // pred_region
        %s573 = smul.u32 16, %s17
        %p574 = scmp.lt.s32.totalorder %s573, 31
        %s575 = scalar_select %p574, %s573, 31
        %s576 = smul.addr %s575, 4
        %s577 = scalar_lea.vmem %s2, %s576
      $region48: #{gat_forward.4} parent=43 // pred_fallthru
        _
      // Predicated region
      $region49: #{gat_forward.4} parent=43 // pred_check
        %p578 = pneg %p113
      $region50: #{gat_forward.4} parent=43 // pred_check_branch
        %580 = sbr.rel (%p578) target = $region52
      $region51: #{gat_forward.4} parent=43 // pred_region
        %s581 = smul.u32 16, %s17
        %p582 = scmp.lt.s32.totalorder %s581, 31
        %s583 = scalar_select %p582, %s581, 31
        %s584 = smul.addr %s583, 8
        %s585 = scalar_lea.vmem %s3, %s584
      $region52: #{gat_forward.4} parent=43 // pred_fallthru
        _
      // Predicated region
      $region53: #{gat_forward.4} parent=43 // pred_check
        %p586 = pneg %p139
      $region54: #{gat_forward.4} parent=43 // pred_check_branch
        %588 = sbr.rel (%p586) target = $region56
      $region55: #{gat_forward.4} parent=43 // pred_region
        %s589 = smul.u32 16, %s17
        %p590 = scmp.lt.s32.totalorder %s589, 31
        %s591 = scalar_select %p590, %s589, 31
        %s592 = smul.addr %s591, 8
        %s593 = scalar_lea.vmem %s4, %s592
      $region56: #{gat_forward.4} parent=43 // pred_fallthru
        _
    $region44: #{gat_forward.4} parent=5 // pred_fallthru
      _
  $region6: #{gat_forward.4} parent=0 // loop_footer
    %s15 = sadd.s32 1, %s11
  $region7: #{gat_forward.4} parent=0 // loop_footer_branch
    %10 = sbr.rel target = $region3
  $region8: #{gat_forward.4} parent=0 // loop_exit
    _

// kernel: gat_forward.6
$region0: #{gat_forward.6}
  #allocation0 [shape = 'u32[]', space=smem, size = 0x4, offset = 0x4, fixed_abs, tag = 'smem constant byte address 0x4 - core index']
  #allocation1 [shape = 'u32[72,128]{1,0:T(1,128)}', space=vmem, size = 0x9000, scoped, tag = 'internal scratch']
  %s0 = inlined_call_operand.vmem [shape: f32[256,16], index: 0, kind: input, shape index: {}]
  %s1 = inlined_call_operand.vmem [shape: f32[16,6], index: 1, kind: input, shape index: {}]
  %s2 = inlined_call_operand.vmem [shape: bf16[256,4], index: 2, kind: output, shape index: {0}]
  %s3 = inlined_call_operand.vmem [shape: f32[256,1], index: 3, kind: output, shape index: {1}]
  %s4 = inlined_call_operand.vmem [shape: f32[256,1], index: 4, kind: output, shape index: {2}]
  %5 = xla_tuple %s2, %s3, %s4
  %s6 = sld [smem:[#allocation0]]
  $region57: #{gat_forward.6} parent=0
    _
  %s8 = ssub.s32 1, %s6
  %s9 = scalar_select 0, %s8, %s6
  loop: start=0, step=1, limit=4
  $region2: #{gat_forward.6} parent=0 // loop_pre_header
    _
  $region3: #{gat_forward.6} parent=0 // loop_header
    %s11 = sphi 0, %s15
    %p12 = scmp.ge.s32.totalorder %s11, 4
    %s21 = sphi 0, %s23
    %s24 = sphi 0, %s21
    %s25 = sphi 0, %s24
    %s41 = sphi 0, %s25
    %s45 = sphi 0, %s45
    %s47 = sphi 0, %s45
    %s48 = sphi 0, %s47
    %s62 = sphi 0, %s48
    %s68 = sphi 0, %s70
    %s71 = sphi 0, %s68
    %s72 = sphi 0, %s71
    %s88 = sphi 0, %s72
    %s94 = sphi 0, %s96
    %s97 = sphi 0, %s94
    %s98 = sphi 0, %s97
    %s114 = sphi 0, %s98
    %s120 = sphi 0, %s122
    %s123 = sphi 0, %s120
    %s124 = sphi 0, %s123
    %s140 = sphi 0, %s124
  $region4: #{gat_forward.6} parent=0 // loop_header_branch
    %14 = sbr.rel (%p12) target = $region8
  $region5: #{gat_forward.6} parent=0 // loop_body
    %s16 = ssub.s32 %s11, 1
    %s17 = ssub.s32 %s11, 2
    %s18 = sadd.s32 %s11, 1
    %s19 = ssub.s32 %s11, %s18
    %p20 = scmp.eq.s32.totalorder %s19, 0
    %s22 = sadd.s32 %s21, 1
    %s23 = scalar_select %p20, %s21, %s22
    %p26 = pneg %p20
    %p27 = scmp.eq.s32.totalorder %s11, 1
    %p28 = por %p26, %p27
    %p29 = scmp.ne.s32.totalorder %s21, %s24
    %p30 = scmp.eq.s32.totalorder %s11, 0
    %p31 = por %p29, %p30
    %p32 = scmp.ne.s32.totalorder %s21, %s24
    %p33 = scmp.eq.s32.totalorder %s16, 1
    %p34 = por %p32, %p33
    %p35 = scmp.ne.s32.totalorder %s24, %s25
    %p36 = scmp.eq.s32.totalorder %s16, 0
    %p37 = por %p35, %p36
    %p38 = scmp.ne.s32.totalorder %s24, %s25
    %p39 = scmp.eq.s32.totalorder %s17, 1
    %p40 = por %p38, %p39
    %p42 = scmp.ne.s32.totalorder %s25, %s41
    %p43 = scmp.eq.s32.totalorder %s17, 0
    %p44 = por %p42, %p43
    %s46 = sadd.s32 %s45, 1
    %p49 = scmp.eq.s32.totalorder %s11, 1
    %p50 = scmp.ne.s32.totalorder %s45, %s47
    %p51 = scmp.eq.s32.totalorder %s11, 0
    %p52 = por %p50, %p51
    %p53 = scmp.ne.s32.totalorder %s45, %s47
    %p54 = scmp.eq.s32.totalorder %s16, 1
    %p55 = por %p53, %p54
    %p56 = scmp.ne.s32.totalorder %s47, %s48
    %p57 = scmp.eq.s32.totalorder %s16, 0
    %p58 = por %p56, %p57
    %p59 = scmp.ne.s32.totalorder %s47, %s48
    %p60 = scmp.eq.s32.totalorder %s17, 1
    %p61 = por %p59, %p60
    %p63 = scmp.ne.s32.totalorder %s48, %s62
    %p64 = scmp.eq.s32.totalorder %s17, 0
    %p65 = por %p63, %p64
    %s66 = ssub.s32 %s11, %s18
    %p67 = scmp.eq.s32.totalorder %s66, 0
    %s69 = sadd.s32 %s68, 1
    %s70 = scalar_select %p67, %s68, %s69
    %p73 = pneg %p67
    %p74 = scmp.eq.s32.totalorder %s11, 1
    %p75 = por %p73, %p74
    %p76 = scmp.ne.s32.totalorder %s68, %s71
    %p77 = scmp.eq.s32.totalorder %s11, 0
    %p78 = por %p76, %p77
    %p79 = scmp.ne.s32.totalorder %s68, %s71
    %p80 = scmp.eq.s32.totalorder %s16, 1
    %p81 = por %p79, %p80
    %p82 = scmp.ne.s32.totalorder %s71, %s72
    %p83 = scmp.eq.s32.totalorder %s16, 0
    %p84 = por %p82, %p83
    %p85 = scmp.ne.s32.totalorder %s71, %s72
    %p86 = scmp.eq.s32.totalorder %s17, 1
    %p87 = por %p85, %p86
    %p89 = scmp.ne.s32.totalorder %s72, %s88
    %p90 = scmp.eq.s32.totalorder %s17, 0
    %p91 = por %p89, %p90
    %s92 = ssub.s32 %s11, %s18
    %p93 = scmp.eq.s32.totalorder %s92, 0
    %s95 = sadd.s32 %s94, 1
    %s96 = scalar_select %p93, %s94, %s95
    %p99 = pneg %p93
    %p100 = scmp.eq.s32.totalorder %s11, 1
    %p101 = por %p99, %p100
    %p102 = scmp.ne.s32.totalorder %s94, %s97
    %p103 = scmp.eq.s32.totalorder %s11, 0
    %p104 = por %p102, %p103
    %p105 = scmp.ne.s32.totalorder %s94, %s97
    %p106 = scmp.eq.s32.totalorder %s16, 1
    %p107 = por %p105, %p106
    %p108 = scmp.ne.s32.totalorder %s97, %s98
    %p109 = scmp.eq.s32.totalorder %s16, 0
    %p110 = por %p108, %p109
    %p111 = scmp.ne.s32.totalorder %s97, %s98
    %p112 = scmp.eq.s32.totalorder %s17, 1
    %p113 = por %p111, %p112
    %p115 = scmp.ne.s32.totalorder %s98, %s114
    %p116 = scmp.eq.s32.totalorder %s17, 0
    %p117 = por %p115, %p116
    %s118 = ssub.s32 %s11, %s18
    %p119 = scmp.eq.s32.totalorder %s118, 0
    %s121 = sadd.s32 %s120, 1
    %s122 = scalar_select %p119, %s120, %s121
    %p125 = pneg %p119
    %p126 = scmp.eq.s32.totalorder %s11, 1
    %p127 = por %p125, %p126
    %p128 = scmp.ne.s32.totalorder %s120, %s123
    %p129 = scmp.eq.s32.totalorder %s11, 0
    %p130 = por %p128, %p129
    %p131 = scmp.ne.s32.totalorder %s120, %s123
    %p132 = scmp.eq.s32.totalorder %s16, 1
    %p133 = por %p131, %p132
    %p134 = scmp.ne.s32.totalorder %s123, %s124
    %p135 = scmp.eq.s32.totalorder %s16, 0
    %p136 = por %p134, %p135
    %p137 = scmp.ne.s32.totalorder %s123, %s124
    %p138 = scmp.eq.s32.totalorder %s17, 1
    %p139 = por %p137, %p138
    %p141 = scmp.ne.s32.totalorder %s124, %s140
    %p142 = scmp.eq.s32.totalorder %s17, 0
    %p143 = por %p141, %p142
    %p144 = scmp.le.s32.totalorder 1, %s11
    %p145 = scmp.lt.s32.totalorder %s11, 3
    %p146 = pnand %p144, %p145
    %p147 = pneg %p146
    // Predicated region
    $region9: #{gat_forward.6} parent=5 // pred_check
      _
    $region10: #{gat_forward.6} parent=5 // pred_check_branch
      %149 = sbr.rel (%p146) target = $region12
    $region11: #{gat_forward.6} parent=5 // pred_region
      %s150 = ssub.s32 %s11, 1
      // Predicated region
      $region13: #{gat_forward.6} parent=11 // pred_check
        %p151 = pneg %p58
      $region14: #{gat_forward.6} parent=11 // pred_check_branch
        %153 = sbr.rel (%p151) target = $region16
      $region15: #{gat_forward.6} parent=11 // pred_region
        _
      $region16: #{gat_forward.6} parent=11 // pred_fallthru
        _
    $region12: #{gat_forward.6} parent=5 // pred_fallthru
      _
    %p154 = scmp.lt.s32.totalorder %s11, 2
    // Predicated region
    $region17: #{gat_forward.6} parent=5 // pred_check
      %p155 = pneg %p154
    $region18: #{gat_forward.6} parent=5 // pred_check_branch
      %157 = sbr.rel (%p155) target = $region20
    $region19: #{gat_forward.6} parent=5 // pred_region
      // Predicated region
      $region21: #{gat_forward.6} parent=19 // pred_check
        %p158 = pneg %p31
      $region22: #{gat_forward.6} parent=19 // pred_check_branch
        %160 = sbr.rel (%p158) target = $region24
      $region23: #{gat_forward.6} parent=19 // pred_region
        %s161 = smul.u32 16, %s11
        %p162 = scmp.lt.s32.totalorder %s161, 31
        %s163 = scalar_select %p162, %s161, 31
        %s164 = smul.addr %s163, 8
        %s165 = scalar_lea.vmem %s0, %s164
        %s166 = smul.u32 16, %s11
      $region24: #{gat_forward.6} parent=19 // pred_fallthru
        _
    $region20: #{gat_forward.6} parent=5 // pred_fallthru
      _
    %p167 = scmp.le.s32.totalorder 1, %s11
    %p168 = scmp.lt.s32.totalorder %s11, 3
    %p169 = pnand %p167, %p168
    %p170 = pneg %p169
    // Predicated region
    $region25: #{gat_forward.6} parent=5 // pred_check
      _
    $region26: #{gat_forward.6} parent=5 // pred_check_branch
      %172 = sbr.rel (%p169) target = $region28
    $region27: #{gat_forward.6} parent=5 // pred_region
      %s173 = ssub.s32 %s11, 1
      %s174 = smul.u32 16, %s16
      %p175 = scmp.lt.s32.totalorder %s174, 31
      %s176 = scalar_select %p175, %s174, 31
      %s177 = smul.addr %s176, 8
      %s178 = scalar_lea.vmem %s0, %s177
      %p179 = pneg %p37
      %p180 = pneg %p34
      %p181 = pneg %p58
      %p182 = pneg %p55
      %p183 = pneg %p84
      %p184 = pneg %p81
      %s185 = smul.u32 16, %s16
      %p186 = scmp.lt.s32.totalorder %s185, 31
      %s187 = scalar_select %p186, %s185, 31
      %s188 = smul.addr %s187, 4
      %s189 = scalar_lea.vmem %s2, %s188
      %p190 = pneg %p110
      %p191 = pneg %p107
      %s192 = smul.u32 16, %s16
      %p193 = scmp.lt.s32.totalorder %s192, 31
      %s194 = scalar_select %p193, %s192, 31
      %s195 = smul.addr %s194, 8
      %s196 = scalar_lea.vmem %s3, %s195
      %p197 = pneg %p136
      %p198 = pneg %p133
      %s199 = smul.u32 16, %s16
      %p200 = scmp.lt.s32.totalorder %s199, 31
      %s201 = scalar_select %p200, %s199, 31
      %s202 = smul.addr %s201, 8
      %s203 = scalar_lea.vmem %s4, %s202
      %s204 = smul.u32 16, %s16
      %p205 = scmp.lt.s32.totalorder %s204, 31
      %s206 = scalar_select %p205, %s204, 31
      %s207 = smul.addr %s206, 8
      %s208 = scalar_lea.vmem %s0, %s207
      %s209 = smul.u32 16, %s16
      %s210 = smul.u32 16, %s16
      %p211 = scmp.lt.s32.totalorder %s210, 31
      %s212 = scalar_select %p211, %s210, 31
      %s213 = smul.addr %s212, 4
      %s214 = scalar_lea.vmem %s2, %s213
      %s215 = smul.u32 16, %s16
      %s216 = smul.u32 16, %s16
      %p217 = scmp.lt.s32.totalorder %s216, 31
      %s218 = scalar_select %p217, %s216, 31
      %s219 = smul.addr %s218, 8
      %s220 = scalar_lea.vmem %s3, %s219
      %s221 = smul.u32 16, %s16
      %s222 = smul.u32 16, %s16
      %p223 = scmp.lt.s32.totalorder %s222, 31
      %s224 = scalar_select %p223, %s222, 31
      %s225 = smul.addr %s224, 8
      %s226 = scalar_lea.vmem %s4, %s225
      %s227 = smul.u32 16, %s16
      %v228 = vld [vmem:[%s208] sm:$0xff]
      %v229 = vld [vmem:[%s208 + $0x8] sm:$0xff]
      %v230 = vld [vmem:[%s208 + $0x10] sm:$0xff]
      %v231 = vld [vmem:[%s208 + $0x18] sm:$0xff]
      %v232 = vld [vmem:[%s208 + $0x20] sm:$0xff]
      %v233 = vld [vmem:[%s208 + $0x28] sm:$0xff]
      %v234 = vld [vmem:[%s208 + $0x30] sm:$0xff]
      %v235 = vld [vmem:[%s208 + $0x38] sm:$0xff]
      %v236 = vld [vmem:[%s208 + $0x40] sm:$0xff]
      %v237 = vld [vmem:[%s208 + $0x48] sm:$0xff]
      %v238 = vld [vmem:[%s208 + $0x50] sm:$0xff]
      %v239 = vld [vmem:[%s208 + $0x58] sm:$0xff]
      %v240 = vld [vmem:[%s208 + $0x60] sm:$0xff]
      %v241 = vld [vmem:[%s208 + $0x68] sm:$0xff]
      %v242 = vld [vmem:[%s208 + $0x70] sm:$0xff]
      %v243 = vld [vmem:[%s208 + $0x78] sm:$0xff]
      %vm244 = vcmp.gt.f32.partialorder %v228, 0.0
      %vm245 = vcmp.gt.f32.partialorder %v229, 0.0
      %vm246 = vcmp.gt.f32.partialorder %v230, 0.0
      %vm247 = vcmp.gt.f32.partialorder %v231, 0.0
      %vm248 = vcmp.gt.f32.partialorder %v232, 0.0
      %vm249 = vcmp.gt.f32.partialorder %v233, 0.0
      %vm250 = vcmp.gt.f32.partialorder %v234, 0.0
      %vm251 = vcmp.gt.f32.partialorder %v235, 0.0
      %vm252 = vcmp.gt.f32.partialorder %v236, 0.0
      %vm253 = vcmp.gt.f32.partialorder %v237, 0.0
      %vm254 = vcmp.gt.f32.partialorder %v238, 0.0
      %vm255 = vcmp.gt.f32.partialorder %v239, 0.0
      %vm256 = vcmp.gt.f32.partialorder %v240, 0.0
      %vm257 = vcmp.gt.f32.partialorder %v241, 0.0
      %vm258 = vcmp.gt.f32.partialorder %v242, 0.0
      %vm259 = vcmp.gt.f32.partialorder %v243, 0.0
      %v260 = vmul.f32 %v228, 1.442695
      %v261 = vpow.pop %v260
      %v262 = vmul.f32 %v229, 1.442695
      %v263 = vpow.pop %v262
      %v264 = vmul.f32 %v230, 1.442695
      %v265 = vpow.pop %v264
      %v266 = vmul.f32 %v231, 1.442695
      %v267 = vpow.pop %v266
      %v268 = vmul.f32 %v232, 1.442695
      %v269 = vpow.pop %v268
      %v270 = vmul.f32 %v233, 1.442695
      %v271 = vpow.pop %v270
      %v272 = vmul.f32 %v234, 1.442695
      %v273 = vpow.pop %v272
      %v274 = vmul.f32 %v235, 1.442695
      %v275 = vpow.pop %v274
      %v276 = vmul.f32 %v236, 1.442695
      %v277 = vpow.pop %v276
      %v278 = vmul.f32 %v237, 1.442695
      %v279 = vpow.pop %v278
      %v280 = vmul.f32 %v238, 1.442695
      %v281 = vpow.pop %v280
      %v282 = vmul.f32 %v239, 1.442695
      %v283 = vpow.pop %v282
      %v284 = vmul.f32 %v240, 1.442695
      %v285 = vpow.pop %v284
      %v286 = vmul.f32 %v241, 1.442695
      %v287 = vpow.pop %v286
      %v288 = vmul.f32 %v242, 1.442695
      %v289 = vpow.pop %v288
      %v290 = vmul.f32 %v243, 1.442695
      %v291 = vpow.pop %v290
      %v292 = vsub.f32 %v261, 1.0
      %v293 = vsub.f32 %v263, 1.0
      %v294 = vsub.f32 %v265, 1.0
      %v295 = vsub.f32 %v267, 1.0
      %v296 = vsub.f32 %v269, 1.0
      %v297 = vsub.f32 %v271, 1.0
      %v298 = vsub.f32 %v273, 1.0
      %v299 = vsub.f32 %v275, 1.0
      %v300 = vsub.f32 %v277, 1.0
      %v301 = vsub.f32 %v279, 1.0
      %v302 = vsub.f32 %v281, 1.0
      %v303 = vsub.f32 %v283, 1.0
      %v304 = vsub.f32 %v285, 1.0
      %v305 = vsub.f32 %v287, 1.0
      %v306 = vsub.f32 %v289, 1.0
      %v307 = vsub.f32 %v291, 1.0
      %v308 = vsel %vm244, %v228, %v292
      %v309 = vsel %vm245, %v229, %v293
      %v310 = vsel %vm246, %v230, %v294
      %v311 = vsel %vm247, %v231, %v295
      %v312 = vsel %vm248, %v232, %v296
      %v313 = vsel %vm249, %v233, %v297
      %v314 = vsel %vm250, %v234, %v298
      %v315 = vsel %vm251, %v235, %v299
      %v316 = vsel %vm252, %v236, %v300
      %v317 = vsel %vm253, %v237, %v301
      %v318 = vsel %vm254, %v238, %v302
      %v319 = vsel %vm255, %v239, %v303
      %v320 = vsel %vm256, %v240, %v304
      %v321 = vsel %vm257, %v241, %v305
      %v322 = vsel %vm258, %v242, %v306
      %v323 = vsel %vm259, %v243, %v307
      %v324 = vld [vmem:[%s1] sm:$0xff]
      %v325 = vld [vmem:[%s1 + $0x8] sm:$0xff]
      %vm326 = vcmask 130048
      %v328 = vsel %vm326, %v308, 0
      %v331 = vsel %vm326, %v309, 0
      %v334 = vsel %vm326, %v310, 0
      %v337 = vsel %vm326, %v311, 0
      %v340 = vsel %vm326, %v312, 0
      %v343 = vsel %vm326, %v313, 0
      %v346 = vsel %vm326, %v314, 0
      %v349 = vsel %vm326, %v315, 0
      %v352 = vsel %vm326, %v316, 0
      %v355 = vsel %vm326, %v317, 0
      %v358 = vsel %vm326, %v318, 0
      %v361 = vsel %vm326, %v319, 0
      %v364 = vsel %vm326, %v320, 0
      %v367 = vsel %vm326, %v321, 0
      %v370 = vsel %vm326, %v322, 0
      %v373 = vsel %vm326, %v323, 0
      %375 = vmatpush.msra.mxu0 0.0
      %376 = vmatpush.msra.mxu0 0.0
      %377 = vmatpush.msra.mxu0 0.0
      %378 = vmatpush.msra.mxu0 0.0
      %379 = vmatpush.msra.mxu0 0.0
      %380 = vmatpush.msra.mxu0 0.0
      %381 = vmatpush.msra.mxu0 0.0
      %382 = vmatpush.msra.mxu0 0.0
      %383 = vmatpush.msra.mxu0 0.0
      %384 = vmatpush.msra.mxu0 0.0
      %385 = vmatpush.msra.mxu0 0.0
      %386 = vmatpush.msra.mxu0 0.0
      %387 = vmatpush.msra.mxu0 0.0
      %388 = vmatpush.msra.mxu0 0.0
      %389 = vmatpush.msra.mxu0 %v325
      %390 = vmatpush.msra.mxu0 %v324
      %391 = vmatmul.f32.gmra.mxu0 %v328
      %v392 = vpop.f32.mrf.mxu0
      %v393 = vadd.f32 0.0, %v392
      %394 = vmatmul.f32.gmra.mxu0 %v331
      %v395 = vpop.f32.mrf.mxu0
      %v396 = vadd.f32 0.0, %v395
      %397 = vmatmul.f32.gmra.mxu0 %v334
      %v398 = vpop.f32.mrf.mxu0
      %v399 = vadd.f32 0.0, %v398
      %400 = vmatmul.f32.gmra.mxu0 %v337
      %v401 = vpop.f32.mrf.mxu0
      %v402 = vadd.f32 0.0, %v401
      %403 = vmatmul.f32.gmra.mxu0 %v340
      %v404 = vpop.f32.mrf.mxu0
      %v405 = vadd.f32 0.0, %v404
      %406 = vmatmul.f32.gmra.mxu0 %v343
      %v407 = vpop.f32.mrf.mxu0
      %v408 = vadd.f32 0.0, %v407
      %409 = vmatmul.f32.gmra.mxu0 %v346
      %v410 = vpop.f32.mrf.mxu0
      %v411 = vadd.f32 0.0, %v410
      %412 = vmatmul.f32.gmra.mxu0 %v349
      %v413 = vpop.f32.mrf.mxu0
      %v414 = vadd.f32 0.0, %v413
      %415 = vmatmul.f32.gmra.mxu0 %v352
      %v416 = vpop.f32.mrf.mxu0
      %v417 = vadd.f32 0.0, %v416
      %418 = vmatmul.f32.gmra.mxu0 %v355
      %v419 = vpop.f32.mrf.mxu0
      %v420 = vadd.f32 0.0, %v419
      %421 = vmatmul.f32.gmra.mxu0 %v358
      %v422 = vpop.f32.mrf.mxu0
      %v423 = vadd.f32 0.0, %v422
      %424 = vmatmul.f32.gmra.mxu0 %v361
      %v425 = vpop.f32.mrf.mxu0
      %v426 = vadd.f32 0.0, %v425
      %427 = vmatmul.f32.gmra.mxu0 %v364
      %v428 = vpop.f32.mrf.mxu0
      %v429 = vadd.f32 0.0, %v428
      %430 = vmatmul.f32.gmra.mxu0 %v367
      %v431 = vpop.f32.mrf.mxu0
      %v432 = vadd.f32 0.0, %v431
      %433 = vmatmul.f32.gmra.mxu0 %v370
      %v434 = vpop.f32.mrf.mxu0
      %v435 = vadd.f32 0.0, %v434
      %436 = vmatmul.f32.gmra.mxu0 %v373
      %v437 = vpop.f32.mrf.mxu0
      %v438 = vadd.f32 0.0, %v437
      %439 = vdwg.mxu0
      %v440 = vpack.c.bf16 %v393, %v393
      %v441 = vpack.c.bf16 %v396, %v396
      %v442 = vpack.c.bf16 %v399, %v399
      %v443 = vpack.c.bf16 %v402, %v402
      %v444 = vpack.c.bf16 %v405, %v405
      %v445 = vpack.c.bf16 %v408, %v408
      %v446 = vpack.c.bf16 %v411, %v411
      %v447 = vpack.c.bf16 %v414, %v414
      %v448 = vpack.c.bf16 %v417, %v417
      %v449 = vpack.c.bf16 %v420, %v420
      %v450 = vpack.c.bf16 %v423, %v423
      %v451 = vpack.c.bf16 %v426, %v426
      %v452 = vpack.c.bf16 %v429, %v429
      %v453 = vpack.c.bf16 %v432, %v432
      %v454 = vpack.c.bf16 %v435, %v435
      %v455 = vpack.c.bf16 %v438, %v438
      %vm456 = vcmask 27648
      %457 = vst.msk [vmem:[%s214] sm:$0xf] %vm456, %v440
      %458 = vst.msk [vmem:[%s214 + $0x4] sm:$0xf] %vm456, %v441
      %459 = vst.msk [vmem:[%s214 + $0x8] sm:$0xf] %vm456, %v442
      %460 = vst.msk [vmem:[%s214 + $0xc] sm:$0xf] %vm456, %v443
      %461 = vst.msk [vmem:[%s214 + $0x10] sm:$0xf] %vm456, %v444
      %462 = vst.msk [vmem:[%s214 + $0x14] sm:$0xf] %vm456, %v445
      %463 = vst.msk [vmem:[%s214 + $0x18] sm:$0xf] %vm456, %v446
      %464 = vst.msk [vmem:[%s214 + $0x1c] sm:$0xf] %vm456, %v447
      %465 = vst.msk [vmem:[%s214 + $0x20] sm:$0xf] %vm456, %v448
      %466 = vst.msk [vmem:[%s214 + $0x24] sm:$0xf] %vm456, %v449
      %467 = vst.msk [vmem:[%s214 + $0x28] sm:$0xf] %vm456, %v450
      %468 = vst.msk [vmem:[%s214 + $0x2c] sm:$0xf] %vm456, %v451
      %469 = vst.msk [vmem:[%s214 + $0x30] sm:$0xf] %vm456, %v452
      %470 = vst.msk [vmem:[%s214 + $0x34] sm:$0xf] %vm456, %v453
      %471 = vst.msk [vmem:[%s214 + $0x38] sm:$0xf] %vm456, %v454
      %472 = vst.msk [vmem:[%s214 + $0x3c] sm:$0xf] %vm456, %v455
      %489 = vrot.lane.b32.xlu0 %v393, 124
      %v490 = vpop.permute.xlu0 %489
      %491 = vrot.lane.b32.xlu0 %v396, 124
      %v492 = vpop.permute.xlu0 %491
      %493 = vrot.lane.b32.xlu0 %v399, 124
      %v494 = vpop.permute.xlu0 %493
      %495 = vrot.lane.b32.xlu0 %v402, 124
      %v496 = vpop.permute.xlu0 %495
      %497 = vrot.lane.b32.xlu0 %v405, 124
      %v498 = vpop.permute.xlu0 %497
      %499 = vrot.lane.b32.xlu0 %v408, 124
      %v500 = vpop.permute.xlu0 %499
      %501 = vrot.lane.b32.xlu0 %v411, 124
      %v502 = vpop.permute.xlu0 %501
      %503 = vrot.lane.b32.xlu0 %v414, 124
      %v504 = vpop.permute.xlu0 %503
      %505 = vrot.lane.b32.xlu0 %v417, 124
      %v506 = vpop.permute.xlu0 %505
      %507 = vrot.lane.b32.xlu0 %v420, 124
      %v508 = vpop.permute.xlu0 %507
      %509 = vrot.lane.b32.xlu0 %v423, 124
      %v510 = vpop.permute.xlu0 %509
      %511 = vrot.lane.b32.xlu0 %v426, 124
      %v512 = vpop.permute.xlu0 %511
      %513 = vrot.lane.b32.xlu0 %v429, 124
      %v514 = vpop.permute.xlu0 %513
      %515 = vrot.lane.b32.xlu0 %v432, 124
      %v516 = vpop.permute.xlu0 %515
      %517 = vrot.lane.b32.xlu0 %v435, 124
      %v518 = vpop.permute.xlu0 %517
      %519 = vrot.lane.b32.xlu0 %v438, 124
      %v520 = vpop.permute.xlu0 %519
      %vm537 = vcmask 7168
      %538 = vst.msk [vmem:[%s220] sm:$0xff] %vm537, %v490
      %539 = vst.msk [vmem:[%s220 + $0x8] sm:$0xff] %vm537, %v492
      %540 = vst.msk [vmem:[%s220 + $0x10] sm:$0xff] %vm537, %v494
      %541 = vst.msk [vmem:[%s220 + $0x18] sm:$0xff] %vm537, %v496
      %542 = vst.msk [vmem:[%s220 + $0x20] sm:$0xff] %vm537, %v498
      %543 = vst.msk [vmem:[%s220 + $0x28] sm:$0xff] %vm537, %v500
      %544 = vst.msk [vmem:[%s220 + $0x30] sm:$0xff] %vm537, %v502
      %545 = vst.msk [vmem:[%s220 + $0x38] sm:$0xff] %vm537, %v504
      %546 = vst.msk [vmem:[%s220 + $0x40] sm:$0xff] %vm537, %v506
      %547 = vst.msk [vmem:[%s220 + $0x48] sm:$0xff] %vm537, %v508
      %548 = vst.msk [vmem:[%s220 + $0x50] sm:$0xff] %vm537, %v510
      %549 = vst.msk [vmem:[%s220 + $0x58] sm:$0xff] %vm537, %v512
      %550 = vst.msk [vmem:[%s220 + $0x60] sm:$0xff] %vm537, %v514
      %551 = vst.msk [vmem:[%s220 + $0x68] sm:$0xff] %vm537, %v516
      %552 = vst.msk [vmem:[%s220 + $0x70] sm:$0xff] %vm537, %v518
      %553 = vst.msk [vmem:[%s220 + $0x78] sm:$0xff] %vm537, %v520
      %554 = vrot.lane.b32.xlu0 %v393, 123
      %v555 = vpop.permute.xlu0 %554
      %556 = vrot.lane.b32.xlu0 %v396, 123
      %v557 = vpop.permute.xlu0 %556
      %558 = vrot.lane.b32.xlu0 %v399, 123
      %v559 = vpop.permute.xlu0 %558
      %560 = vrot.lane.b32.xlu0 %v402, 123
      %v561 = vpop.permute.xlu0 %560
      %562 = vrot.lane.b32.xlu0 %v405, 123
      %v563 = vpop.permute.xlu0 %562
      %564 = vrot.lane.b32.xlu0 %v408, 123
      %v565 = vpop.permute.xlu0 %564
      %566 = vrot.lane.b32.xlu0 %v411, 123
      %v567 = vpop.permute.xlu0 %566
      %568 = vrot.lane.b32.xlu0 %v414, 123
      %v569 = vpop.permute.xlu0 %568
      %570 = vrot.lane.b32.xlu0 %v417, 123
      %v571 = vpop.permute.xlu0 %570
      %572 = vrot.lane.b32.xlu0 %v420, 123
      %v573 = vpop.permute.xlu0 %572
      %574 = vrot.lane.b32.xlu0 %v423, 123
      %v575 = vpop.permute.xlu0 %574
      %576 = vrot.lane.b32.xlu0 %v426, 123
      %v577 = vpop.permute.xlu0 %576
      %578 = vrot.lane.b32.xlu0 %v429, 123
      %v579 = vpop.permute.xlu0 %578
      %580 = vrot.lane.b32.xlu0 %v432, 123
      %v581 = vpop.permute.xlu0 %580
      %582 = vrot.lane.b32.xlu0 %v435, 123
      %v583 = vpop.permute.xlu0 %582
      %584 = vrot.lane.b32.xlu0 %v438, 123
      %v585 = vpop.permute.xlu0 %584
      %602 = vst.msk [vmem:[%s226] sm:$0xff] %vm537, %v555
      %603 = vst.msk [vmem:[%s226 + $0x8] sm:$0xff] %vm537, %v557
      %604 = vst.msk [vmem:[%s226 + $0x10] sm:$0xff] %vm537, %v559
      %605 = vst.msk [vmem:[%s226 + $0x18] sm:$0xff] %vm537, %v561
      %606 = vst.msk [vmem:[%s226 + $0x20] sm:$0xff] %vm537, %v563
      %607 = vst.msk [vmem:[%s226 + $0x28] sm:$0xff] %vm537, %v565
      %608 = vst.msk [vmem:[%s226 + $0x30] sm:$0xff] %vm537, %v567
      %609 = vst.msk [vmem:[%s226 + $0x38] sm:$0xff] %vm537, %v569
      %610 = vst.msk [vmem:[%s226 + $0x40] sm:$0xff] %vm537, %v571
      %611 = vst.msk [vmem:[%s226 + $0x48] sm:$0xff] %vm537, %v573
      %612 = vst.msk [vmem:[%s226 + $0x50] sm:$0xff] %vm537, %v575
      %613 = vst.msk [vmem:[%s226 + $0x58] sm:$0xff] %vm537, %v577
      %614 = vst.msk [vmem:[%s226 + $0x60] sm:$0xff] %vm537, %v579
      %615 = vst.msk [vmem:[%s226 + $0x68] sm:$0xff] %vm537, %v581
      %616 = vst.msk [vmem:[%s226 + $0x70] sm:$0xff] %vm537, %v583
      %617 = vst.msk [vmem:[%s226 + $0x78] sm:$0xff] %vm537, %v585
      %s618 = smul.u32 16, %s16
      %p619 = scmp.lt.s32.totalorder %s618, 31
      %s620 = scalar_select %p619, %s618, 31
      %s621 = smul.addr %s620, 4
      %s622 = scalar_lea.vmem %s2, %s621
      %s623 = smul.u32 16, %s16
      %p624 = scmp.lt.s32.totalorder %s623, 31
      %s625 = scalar_select %p624, %s623, 31
      %s626 = smul.addr %s625, 8
      %s627 = scalar_lea.vmem %s3, %s626
      %s628 = smul.u32 16, %s16
      %p629 = scmp.lt.s32.totalorder %s628, 31
      %s630 = scalar_select %p629, %s628, 31
      %s631 = smul.addr %s630, 8
      %s632 = scalar_lea.vmem %s4, %s631
      // Predicated region
      $region29: #{gat_forward.6} parent=27 // pred_check
        %p633 = pneg %p81
      $region30: #{gat_forward.6} parent=27 // pred_check_branch
        %635 = sbr.rel (%p633) target = $region32
      $region31: #{gat_forward.6} parent=27 // pred_region
        %s636 = smul.u32 16, %s16
      $region32: #{gat_forward.6} parent=27 // pred_fallthru
        _
      // Predicated region
      $region33: #{gat_forward.6} parent=27 // pred_check
        %p637 = pneg %p107
      $region34: #{gat_forward.6} parent=27 // pred_check_branch
        %639 = sbr.rel (%p637) target = $region36
      $region35: #{gat_forward.6} parent=27 // pred_region
        %s640 = smul.u32 16, %s16
      $region36: #{gat_forward.6} parent=27 // pred_fallthru
        _
      // Predicated region
      $region37: #{gat_forward.6} parent=27 // pred_check
        %p641 = pneg %p133
      $region38: #{gat_forward.6} parent=27 // pred_check_branch
        %643 = sbr.rel (%p641) target = $region40
      $region39: #{gat_forward.6} parent=27 // pred_region
        %s644 = smul.u32 16, %s16
      $region40: #{gat_forward.6} parent=27 // pred_fallthru
        _
    $region28: #{gat_forward.6} parent=5 // pred_fallthru
      _
    %p645 = scmp.le.s32.totalorder 2, %s11
    // Predicated region
    $region41: #{gat_forward.6} parent=5 // pred_check
      %p646 = pneg %p645
    $region42: #{gat_forward.6} parent=5 // pred_check_branch
      %648 = sbr.rel (%p646) target = $region44
    $region43: #{gat_forward.6} parent=5 // pred_region
      %s649 = ssub.s32 %s11, 2
      // Predicated region
      $region45: #{gat_forward.6} parent=43 // pred_check
        %p650 = pneg %p87
      $region46: #{gat_forward.6} parent=43 // pred_check_branch
        %652 = sbr.rel (%p650) target = $region48
      $region47: #{gat_forward.6} parent=43 // pred_region
        %s653 = smul.u32 16, %s17
        %p654 = scmp.lt.s32.totalorder %s653, 31
        %s655 = scalar_select %p654, %s653, 31
        %s656 = smul.addr %s655, 4
        %s657 = scalar_lea.vmem %s2, %s656
      $region48: #{gat_forward.6} parent=43 // pred_fallthru
        _
      // Predicated region
      $region49: #{gat_forward.6} parent=43 // pred_check
        %p658 = pneg %p113
      $region50: #{gat_forward.6} parent=43 // pred_check_branch
        %660 = sbr.rel (%p658) target = $region52
      $region51: #{gat_forward.6} parent=43 // pred_region
        %s661 = smul.u32 16, %s17
        %p662 = scmp.lt.s32.totalorder %s661, 31
        %s663 = scalar_select %p662, %s661, 31
        %s664 = smul.addr %s663, 8
        %s665 = scalar_lea.vmem %s3, %s664
      $region52: #{gat_forward.6} parent=43 // pred_fallthru
        _
      // Predicated region
      $region53: #{gat_forward.6} parent=43 // pred_check
        %p666 = pneg %p139
      $region54: #{gat_forward.6} parent=43 // pred_check_branch
        %668 = sbr.rel (%p666) target = $region56
      $region55: #{gat_forward.6} parent=43 // pred_region
        %s669 = smul.u32 16, %s17
        %p670 = scmp.lt.s32.totalorder %s669, 31
        %s671 = scalar_select %p670, %s669, 31
        %s672 = smul.addr %s671, 8
        %s673 = scalar_lea.vmem %s4, %s672
      $region56: #{gat_forward.6} parent=43 // pred_fallthru
        _
    $region44: #{gat_forward.6} parent=5 // pred_fallthru
      _
  $region6: #{gat_forward.6} parent=0 // loop_footer
    %s15 = sadd.s32 1, %s11
  $region7: #{gat_forward.6} parent=0 // loop_footer_branch
    %10 = sbr.rel target = $region3
  $region8: #{gat_forward.6} parent=0 // loop_exit
    _

// kernel: gat_forward.5
$region0: #{gat_forward.5}
  #allocation0 [shape = 'u32[]', space=smem, size = 0x4, offset = 0x4, fixed_abs, tag = 'smem constant byte address 0x4 - core index']
  #allocation1 [shape = 'u32[72,128]{1,0:T(1,128)}', space=vmem, size = 0x9000, scoped, tag = 'internal scratch']
  #allocation2 [shape = 'f32[2,1,128]{2,1,0:T(1,128)}', space=vmem, size = 0x400, scoped, tag = 'scratch operand']
  #allocation3 [shape = 'f32[2,1,128]{2,1,0:T(1,128)}', space=vmem, size = 0x400, scoped, tag = 'scratch operand']
  #allocation4 [shape = 'f32[2,8,128]{2,1,0:T(8,128)}', space=vmem, size = 0x2000, scoped, tag = 'scratch operand']
  #allocation5 [shape = 's32[1]{0}', space=sflag, size = 0x4, scoped, tag = 'scoped memory for gat_forward.5']
  #allocation6 [shape = 'u8[512]{0}', space=smem, size = 0x200, scoped, tag = 'prefetched SMEM operand 0']
  %s0 = inlined_call_operand.vmem [shape: s32[2], index: 0, kind: input, shape index: {}]
  %s1 = inlined_call_operand.vmem [shape: f32[256,2], index: 1, kind: input, shape index: {}]
  %s2 = inlined_call_operand.vmem [shape: f32[2,256], index: 2, kind: input, shape index: {}]
  %s3 = inlined_call_operand.vmem [shape: bf16[256,16], index: 3, kind: input, shape index: {}]
  %s4 = inlined_call_operand.vmem [shape: s8[256,256], index: 4, kind: input, shape index: {}]
  %s5 = inlined_call_operand.vmem [shape: f32[16,256], index: 5, kind: output, shape index: {}]
  %s6 = sld [smem:[#allocation0]]
  $region133: #{gat_forward.5} parent=0
    _
  %s8 = ssub.s32 1, %s6
  %s9 = scalar_select 0, %s8, %s6
  %s11 = sshll.u32 %s0, 4
  %s12 = int_to_ptr.vmem [resolvable:$true] %s11
  %14 = dma.vmem_to_smem %s12, 16, [#allocation6], [#allocation5]
  %16 = dma.done [#allocation5], 16
  %17 = sfence
  $region1: #{gat_forward.5} parent=0
    #allocation7 [shape = 'u8[65536]{0}', space=vmem, size = 0x10000, scoped, tag = 'input window, operand 4']
    #allocation8 [shape = 'u8[16384]{0}', space=vmem, size = 0x4000, scoped, tag = 'output window, operand 0']
    loop: start=0, step=1, limit=4
    $region2: #{gat_forward.5} parent=1 // loop_pre_header
      _
    $region3: #{gat_forward.5} parent=1 // loop_header
      %s19 = sphi 0, %s23
      %p20 = scmp.ge.s32.totalorder %s19, 4
      %s26 = sphi 0, %s38
      %s27 = sphi 0, %s34
      %s28 = sphi 0, %s26
      %s29 = sphi 0, %s27
      %s30 = sphi 0, %s28
      %s31 = sphi 0, %s29
      %s41 = sphi 0, %s43
      %s44 = sphi 0, %s41
      %s45 = sphi 0, %s44
      %s61 = sphi 0, %s45
      %s67 = sphi 0, %s69
      %s70 = sphi 0, %s67
      %s71 = sphi 0, %s70
      %s87 = sphi 0, %s71
      %s93 = sphi 0, %s95
      %s96 = sphi 0, %s93
      %s97 = sphi 0, %s96
      %s113 = sphi 0, %s97
      %s121 = sphi 0, %s123
      %s124 = sphi 0, %s121
      %s125 = sphi 0, %s124
      %s141 = sphi 0, %s125
      %s147 = sphi 0, %s149
      %s150 = sphi 0, %s147
      %s151 = sphi 0, %s150
      %s167 = sphi 0, %s151
    $region4: #{gat_forward.5} parent=1 // loop_header_branch
      %22 = sbr.rel (%p20) target = $region8
    $region5: #{gat_forward.5} parent=1 // loop_body
      %s24 = ssub.s32 %s19, 1
      %s25 = ssub.s32 %s19, 2
      %s32 = sadd.s32 1, %s27
      %p33 = scmp.ge.s32.totalorder %s32, 1
      %s34 = scalar_select %p33, 0, %s32
      %s35 = sadd.s32 1, %s26
      %s36 = scalar_select %p33, %s35, %s26
      %p37 = scmp.ge.s32.totalorder %s36, 2
      %s38 = scalar_select %p37, 0, %s36
      %s39 = ssub.s32 %s27, %s34
      %p40 = scmp.eq.s32.totalorder %s39, 0
      %s42 = sadd.s32 %s41, 1
      %s43 = scalar_select %p40, %s41, %s42
      %p46 = pneg %p40
      %p47 = scmp.eq.s32.totalorder %s19, 1
      %p48 = por %p46, %p47
      %p49 = scmp.ne.s32.totalorder %s41, %s44
      %p50 = scmp.eq.s32.totalorder %s19, 0
      %p51 = por %p49, %p50
      %p52 = scmp.ne.s32.totalorder %s41, %s44
      %p53 = scmp.eq.s32.totalorder %s24, 1
      %p54 = por %p52, %p53
      %p55 = scmp.ne.s32.totalorder %s44, %s45
      %p56 = scmp.eq.s32.totalorder %s24, 0
      %p57 = por %p55, %p56
      %p58 = scmp.ne.s32.totalorder %s44, %s45
      %p59 = scmp.eq.s32.totalorder %s25, 1
      %p60 = por %p58, %p59
      %p62 = scmp.ne.s32.totalorder %s45, %s61
      %p63 = scmp.eq.s32.totalorder %s25, 0
      %p64 = por %p62, %p63
      %s65 = ssub.s32 %s26, %s38
      %p66 = scmp.eq.s32.totalorder %s65, 0
      %s68 = sadd.s32 %s67, 1
      %s69 = scalar_select %p66, %s67, %s68
      %p72 = pneg %p66
      %p73 = scmp.eq.s32.totalorder %s19, 1
      %p74 = por %p72, %p73
      %p75 = scmp.ne.s32.totalorder %s67, %s70
      %p76 = scmp.eq.s32.totalorder %s19, 0
      %p77 = por %p75, %p76
      %p78 = scmp.ne.s32.totalorder %s67, %s70
      %p79 = scmp.eq.s32.totalorder %s24, 1
      %p80 = por %p78, %p79
      %p81 = scmp.ne.s32.totalorder %s70, %s71
      %p82 = scmp.eq.s32.totalorder %s24, 0
      %p83 = por %p81, %p82
      %p84 = scmp.ne.s32.totalorder %s70, %s71
      %p85 = scmp.eq.s32.totalorder %s25, 1
      %p86 = por %p84, %p85
      %p88 = scmp.ne.s32.totalorder %s71, %s87
      %p89 = scmp.eq.s32.totalorder %s25, 0
      %p90 = por %p88, %p89
      %s91 = ssub.s32 %s27, %s34
      %p92 = scmp.eq.s32.totalorder %s91, 0
      %s94 = sadd.s32 %s93, 1
      %s95 = scalar_select %p92, %s93, %s94
      %p98 = pneg %p92
      %p99 = scmp.eq.s32.totalorder %s19, 1
      %p100 = por %p98, %p99
      %p101 = scmp.ne.s32.totalorder %s93, %s96
      %p102 = scmp.eq.s32.totalorder %s19, 0
      %p103 = por %p101, %p102
      %p104 = scmp.ne.s32.totalorder %s93, %s96
      %p105 = scmp.eq.s32.totalorder %s24, 1
      %p106 = por %p104, %p105
      %p107 = scmp.ne.s32.totalorder %s96, %s97
      %p108 = scmp.eq.s32.totalorder %s24, 0
      %p109 = por %p107, %p108
      %p110 = scmp.ne.s32.totalorder %s96, %s97
      %p111 = scmp.eq.s32.totalorder %s25, 1
      %p112 = por %p110, %p111
      %p114 = scmp.ne.s32.totalorder %s97, %s113
      %p115 = scmp.eq.s32.totalorder %s25, 0
      %p116 = por %p114, %p115
      %s117 = ssub.s32 %s27, %s34
      %s118 = ssub.s32 %s26, %s38
      %s119 = sor.u32 %s117, %s118
      %p120 = scmp.eq.s32.totalorder %s119, 0
      %s122 = sadd.s32 %s121, 1
      %s123 = scalar_select %p120, %s121, %s122
      %p126 = pneg %p120
      %p127 = scmp.eq.s32.totalorder %s19, 1
      %p128 = por %p126, %p127
      %p129 = scmp.ne.s32.totalorder %s121, %s124
      %p130 = scmp.eq.s32.totalorder %s19, 0
      %p131 = por %p129, %p130
      %p132 = scmp.ne.s32.totalorder %s121, %s124
      %p133 = scmp.eq.s32.totalorder %s24, 1
      %p134 = por %p132, %p133
      %p135 = scmp.ne.s32.totalorder %s124, %s125
      %p136 = scmp.eq.s32.totalorder %s24, 0
      %p137 = por %p135, %p136
      %p138 = scmp.ne.s32.totalorder %s124, %s125
      %p139 = scmp.eq.s32.totalorder %s25, 1
      %p140 = por %p138, %p139
      %p142 = scmp.ne.s32.totalorder %s125, %s141
      %p143 = scmp.eq.s32.totalorder %s25, 0
      %p144 = por %p142, %p143
      %s145 = ssub.s32 %s26, %s38
      %p146 = scmp.eq.s32.totalorder %s145, 0
      %s148 = sadd.s32 %s147, 1
      %s149 = scalar_select %p146, %s147, %s148
      %p152 = pneg %p146
      %p153 = scmp.eq.s32.totalorder %s19, 1
      %p154 = por %p152, %p153
      %p155 = scmp.ne.s32.totalorder %s147, %s150
      %p156 = scmp.eq.s32.totalorder %s19, 0
      %p157 = por %p155, %p156
      %p158 = scmp.ne.s32.totalorder %s147, %s150
      %p159 = scmp.eq.s32.totalorder %s24, 1
      %p160 = por %p158, %p159
      %p161 = scmp.ne.s32.totalorder %s150, %s151
      %p162 = scmp.eq.s32.totalorder %s24, 0
      %p163 = por %p161, %p162
      %p164 = scmp.ne.s32.totalorder %s150, %s151
      %p165 = scmp.eq.s32.totalorder %s25, 1
      %p166 = por %p164, %p165
      %p168 = scmp.ne.s32.totalorder %s151, %s167
      %p169 = scmp.eq.s32.totalorder %s25, 0
      %p170 = por %p168, %p169
      %p171 = scmp.le.s32.totalorder 1, %s19
      %p172 = scmp.lt.s32.totalorder %s19, 3
      %p173 = pnand %p171, %p172
      %p174 = pneg %p173
      // Predicated region
      $region9: #{gat_forward.5} parent=5 // pred_check
        _
      $region10: #{gat_forward.5} parent=5 // pred_check_branch
        %176 = sbr.rel (%p173) target = $region12
      $region11: #{gat_forward.5} parent=5 // pred_region
        %s177 = ssub.s32 %s19, 1
        // Predicated region
        $region13: #{gat_forward.5} parent=11 // pred_check
          %p178 = pneg %p57
        $region14: #{gat_forward.5} parent=11 // pred_check_branch
          %180 = sbr.rel (%p178) target = $region16
        $region15: #{gat_forward.5} parent=11 // pred_region
          %s181 = smul.u32 32, %s29
          %p182 = scmp.lt.s32.totalorder %s181, 31
          %s183 = scalar_select %p182, %s181, 31
          %s184 = smul.addr %s183, 8
          %s185 = scalar_lea.vmem %s1, %s184
          %s186 = smul.u32 32, %s29
        $region16: #{gat_forward.5} parent=11 // pred_fallthru
          _
        // Predicated region
        $region17: #{gat_forward.5} parent=11 // pred_check
          %p187 = pneg %p109
        $region18: #{gat_forward.5} parent=11 // pred_check_branch
          %189 = sbr.rel (%p187) target = $region20
        $region19: #{gat_forward.5} parent=11 // pred_region
          %s190 = smul.u32 32, %s29
          %p191 = scmp.lt.s32.totalorder %s190, 31
          %s192 = scalar_select %p191, %s190, 31
          %s193 = smul.addr %s192, 4
          %s194 = scalar_lea.vmem %s3, %s193
          %s195 = smul.u32 32, %s29
        $region20: #{gat_forward.5} parent=11 // pred_fallthru
          _
      $region12: #{gat_forward.5} parent=5 // pred_fallthru
        _
      %p196 = scmp.lt.s32.totalorder %s19, 2
      // Predicated region
      $region21: #{gat_forward.5} parent=5 // pred_check
        %p197 = pneg %p196
      $region22: #{gat_forward.5} parent=5 // pred_check_branch
        %199 = sbr.rel (%p197) target = $region24
      $region23: #{gat_forward.5} parent=5 // pred_region
        // Predicated region
        $region25: #{gat_forward.5} parent=23 // pred_check
          %p200 = pneg %p77
        $region26: #{gat_forward.5} parent=23 // pred_check_branch
          %202 = sbr.rel (%p200) target = $region28
        $region27: #{gat_forward.5} parent=23 // pred_region
          %p203 = scmp.lt.s32.totalorder %s26, 1
          %s204 = scalar_select %p203, %s26, 1
          %s205 = smul.addr %s204, 2
          %s206 = scalar_lea.vmem %s2, %s205
        $region28: #{gat_forward.5} parent=23 // pred_fallthru
          _
        // Predicated region
        $region29: #{gat_forward.5} parent=23 // pred_check
          %p207 = pneg %p131
        $region30: #{gat_forward.5} parent=23 // pred_check_branch
          %209 = sbr.rel (%p207) target = $region32
        $region31: #{gat_forward.5} parent=23 // pred_region
          %s210 = sand.u32 %s121, 1
          %s211 = sand.u32 %s121, 1
          %s212 = smul.addr %s211, 64
          %s213 = scalar_lea.vmem [#allocation7], %s212
          %s214 = smul.u32 8, %s27
          %s215 = smul.addr %s214, 2
          %s216 = sadd.s32 %s26, %s215
          %s217 = smul.addr %s216, 8
          %s218 = scalar_lea.vmem %s4, %s217
          // Predicated region
          $region33: #{gat_forward.5} parent=31 // pred_check
            _
          $region34: #{gat_forward.5} parent=31 // pred_check_branch
            %220 = sbr.rel (0) target = $region36
          $region35: #{gat_forward.5} parent=31 // pred_region
            // Predicated region
            $region37: #{gat_forward.5} parent=35 // pred_check
              _
            $region38: #{gat_forward.5} parent=35 // pred_check_branch
              %222 = sbr.rel (0) target = $region40
            $region39: #{gat_forward.5} parent=35 // pred_region
              // Predicated region
              $region52: #{gat_forward.5} parent=39 // pred_check
                _
              $region53: #{gat_forward.5} parent=39 // pred_check_branch
                %252 = sbr.rel (0) target = $region55
              $region54: #{gat_forward.5} parent=39 // pred_region
                loop: start=0, step=1, limit=1
                $region56: #{gat_forward.5} parent=54 // loop_pre_header
                  _
                $region57: #{gat_forward.5} parent=54 // loop_header
                  %s254 = sphi 0, %s258
                  %p255 = scmp.ge.s32.totalorder %s254, 1
                  %s259 = sphi %s218, %s218
                  %s260 = sphi %s213, %s213
                $region58: #{gat_forward.5} parent=54 // loop_header_branch
                  %257 = sbr.rel (%p255) target = $region62
                $region59: #{gat_forward.5} parent=54 // loop_body
                  %v261 = vld [vmem:[%s259] sm:$0xff]
                  %262 = vst [vmem:[%s260] sm:$0xff] %v261
                  %v263 = vld [vmem:[%s259 + $0x10] sm:$0xff]
                  %264 = vst [vmem:[%s260 + $0x8] sm:$0xff] %v263
                  %v265 = vld [vmem:[%s259 + $0x20] sm:$0xff]
                  %266 = vst [vmem:[%s260 + $0x10] sm:$0xff] %v265
                  %v267 = vld [vmem:[%s259 + $0x30] sm:$0xff]
                  %268 = vst [vmem:[%s260 + $0x18] sm:$0xff] %v267
                  %v269 = vld [vmem:[%s259 + $0x40] sm:$0xff]
                  %270 = vst [vmem:[%s260 + $0x20] sm:$0xff] %v269
                  %v271 = vld [vmem:[%s259 + $0x50] sm:$0xff]
                  %272 = vst [vmem:[%s260 + $0x28] sm:$0xff] %v271
                  %v273 = vld [vmem:[%s259 + $0x60] sm:$0xff]
                  %274 = vst [vmem:[%s260 + $0x30] sm:$0xff] %v273
                  %v275 = vld [vmem:[%s259 + $0x70] sm:$0xff]
                  %276 = vst [vmem:[%s260 + $0x38] sm:$0xff] %v275
                $region60: #{gat_forward.5} parent=54 // loop_footer
                  %s258 = sadd.s32 1, %s254
                $region61: #{gat_forward.5} parent=54 // loop_footer_branch
                  %253 = sbr.rel target = $region57
                $region62: #{gat_forward.5} parent=54 // loop_exit
                  _
              $region55: #{gat_forward.5} parent=39 // pred_fallthru
                _
              // Predicated region
              $region63: #{gat_forward.5} parent=39 // pred_check
                _
              $region64: #{gat_forward.5} parent=39 // pred_check_branch
                %278 = sbr.rel target = $region66
              $region65: #{gat_forward.5} parent=39 // pred_region
                _
              $region66: #{gat_forward.5} parent=39 // pred_fallthru
                _
            $region40: #{gat_forward.5} parent=35 // pred_fallthru
              _
            // Predicated region
            $region41: #{gat_forward.5} parent=35 // pred_check
              _
            $region42: #{gat_forward.5} parent=35 // pred_check_branch
              %224 = sbr.rel target = $region44
            $region43: #{gat_forward.5} parent=35 // pred_region
              %s226 = ssub.s32 256, 1
              loop: start=0, step=1, limit=1
              $region45: #{gat_forward.5} parent=43 // loop_pre_header
                _
              $region46: #{gat_forward.5} parent=43 // loop_header
                %s228 = sphi 0, %s232
                %p229 = scmp.ge.s32.totalorder %s228, 1
                %s233 = sphi %s218, %s218
                %s234 = sphi %s213, %s213
              $region47: #{gat_forward.5} parent=43 // loop_header_branch
                %231 = sbr.rel (%p229) target = $region51
              $region48: #{gat_forward.5} parent=43 // loop_body
                %v235 = vld [vmem:[%s233] sm:%s226]
                %236 = vst [vmem:[%s234] sm:%s226] %v235
                %v237 = vld [vmem:[%s233 + $0x10] sm:%s226]
                %238 = vst [vmem:[%s234 + $0x8] sm:%s226] %v237
                %v239 = vld [vmem:[%s233 + $0x20] sm:%s226]
                %240 = vst [vmem:[%s234 + $0x10] sm:%s226] %v239
                %v241 = vld [vmem:[%s233 + $0x30] sm:%s226]
                %242 = vst [vmem:[%s234 + $0x18] sm:%s226] %v241
                %v243 = vld [vmem:[%s233 + $0x40] sm:%s226]
                %244 = vst [vmem:[%s234 + $0x20] sm:%s226] %v243
                %v245 = vld [vmem:[%s233 + $0x50] sm:%s226]
                %246 = vst [vmem:[%s234 + $0x28] sm:%s226] %v245
                %v247 = vld [vmem:[%s233 + $0x60] sm:%s226]
                %248 = vst [vmem:[%s234 + $0x30] sm:%s226] %v247
                %v249 = vld [vmem:[%s233 + $0x70] sm:%s226]
                %250 = vst [vmem:[%s234 + $0x38] sm:%s226] %v249
              $region49: #{gat_forward.5} parent=43 // loop_footer
                %s232 = sadd.s32 1, %s228
              $region50: #{gat_forward.5} parent=43 // loop_footer_branch
                %227 = sbr.rel target = $region46
              $region51: #{gat_forward.5} parent=43 // loop_exit
                _
            $region44: #{gat_forward.5} parent=35 // pred_fallthru
              _
          $region36: #{gat_forward.5} parent=31 // pred_fallthru
            _
          %279 = vnop
        $region32: #{gat_forward.5} parent=23 // pred_fallthru
          _
      $region24: #{gat_forward.5} parent=5 // pred_fallthru
        _
      %p280 = scmp.le.s32.totalorder 1, %s19
      %p281 = scmp.lt.s32.totalorder %s19, 3
      %p282 = pnand %p280, %p281
      %p283 = pneg %p282
      // Predicated region
      $region67: #{gat_forward.5} parent=5 // pred_check
        _
      $region68: #{gat_forward.5} parent=5 // pred_check_branch
        %285 = sbr.rel (%p282) target = $region70
      $region69: #{gat_forward.5} parent=5 // pred_region
        %s286 = ssub.s32 %s19, 1
        %s287 = sand.u32 %s124, 1
        %s288 = sand.u32 %s124, 1
        %s289 = smul.addr %s288, 64
        %s290 = scalar_lea.vmem [#allocation7], %s289
        // Predicated region
        $region71: #{gat_forward.5} parent=69 // pred_check
          %p291 = pneg %p137
        $region72: #{gat_forward.5} parent=69 // pred_check_branch
          %293 = sbr.rel (%p291) target = $region74
        $region73: #{gat_forward.5} parent=69 // pred_region
          _
        $region74: #{gat_forward.5} parent=69 // pred_fallthru
          _
        %s294 = smul.u32 32, %s29
        %p295 = scmp.lt.s32.totalorder %s294, 31
        %s296 = scalar_select %p295, %s294, 31
        %s297 = smul.addr %s296, 8
        %s298 = scalar_lea.vmem %s1, %s297
        %p299 = pneg %p57
        %p300 = pneg %p54
        %p301 = scmp.lt.s32.totalorder %s28, 1
        %s302 = scalar_select %p301, %s28, 1
        %s303 = smul.addr %s302, 2
        %s304 = scalar_lea.vmem %s2, %s303
        %p305 = pneg %p83
        %p306 = pneg %p80
        %s307 = smul.u32 32, %s29
        %p308 = scmp.lt.s32.totalorder %s307, 31
        %s309 = scalar_select %p308, %s307, 31
        %s310 = smul.addr %s309, 4
        %s311 = scalar_lea.vmem %s3, %s310
        %p312 = pneg %p109
        %p313 = pneg %p106
        %s314 = sand.u32 %s124, 1
        %s315 = sand.u32 %s124, 1
        %s316 = smul.addr %s315, 64
        %s317 = scalar_lea.vmem [#allocation7], %s316
        %p318 = pneg %p137
        %p319 = pneg %p134
        %p320 = pneg %p163
        %p321 = pneg %p160
        %s322 = sand.u32 %s150, 1
        %s323 = sand.u32 %s150, 1
        %s324 = smul.addr %s323, 16
        %s325 = scalar_lea.vmem [#allocation8], %s324
        %s326 = smul.u32 32, %s29
        %p327 = scmp.lt.s32.totalorder %s326, 31
        %s328 = scalar_select %p327, %s326, 31
        %s329 = smul.addr %s328, 8
        %s330 = scalar_lea.vmem %s1, %s329
        %s331 = smul.u32 32, %s29
        %p332 = scmp.lt.s32.totalorder %s28, 1
        %s333 = scalar_select %p332, %s28, 1
        %s334 = smul.addr %s333, 2
        %s335 = scalar_lea.vmem %s2, %s334
        %s336 = smul.u32 32, %s29
        %p337 = scmp.lt.s32.totalorder %s336, 31
        %s338 = scalar_select %p337, %s336, 31
        %s339 = smul.addr %s338, 4
        %s340 = scalar_lea.vmem %s3, %s339
        %s341 = smul.u32 32, %s29
        %s342 = smul.u32 8, %s29
        %p345 = scmp.eq.s32.totalorder %s29, 0
        // Predicated region
        $region75: #{gat_forward.5} parent=69 // pred_check
          %p346 = pneg %p345
        $region76: #{gat_forward.5} parent=69 // pred_check_branch
          %348 = sbr.rel (%p346) target = $region78
        $region77: #{gat_forward.5} parent=69 // pred_region
          %349 = vst [vmem:[#allocation2] sm:$0x1] -1e+30
          %350 = vst [vmem:[#allocation2 + $0x1] sm:$0x1] -1e+30
          %351 = vst [vmem:[#allocation3] sm:$0x1] 0.0
          %352 = vst [vmem:[#allocation3 + $0x1] sm:$0x1] 0.0
          %353 = vst [vmem:[#allocation4] sm:$0xff] 0.0
          %354 = vst [vmem:[#allocation4 + $0x8] sm:$0xff] 0.0
        $region78: #{gat_forward.5} parent=69 // pred_fallthru
          _
        %s355 = sadd.s32 %s28, %s29
        %s356 = sld [smem:[#allocation6 + %s355]]
        %p357 = scmp.gt.s32.totalorder %s356, 0
        // Predicated region
        $region79: #{gat_forward.5} parent=69 // pred_check
          %p358 = pneg %p357
        $region80: #{gat_forward.5} parent=69 // pred_check_branch
          %360 = sbr.rel (%p358) target = $region82
        $region81: #{gat_forward.5} parent=69 // pred_region
          %v361 = vld [vmem:[%s290] sm:$0xff]
          %v362 = vld [vmem:[%s290 + $0x8] sm:$0xff]
          %v363 = vld [vmem:[%s290 + $0x10] sm:$0xff]
          %v364 = vld [vmem:[%s290 + $0x18] sm:$0xff]
          %v365 = vld [vmem:[%s290 + $0x20] sm:$0xff]
          %v366 = vld [vmem:[%s290 + $0x28] sm:$0xff]
          %v367 = vld [vmem:[%s290 + $0x30] sm:$0xff]
          %v368 = vld [vmem:[%s290 + $0x38] sm:$0xff]
          %vm369 = vnez %v361
          %vm370 = vnez %v362
          %vm371 = vnez %v363
          %vm372 = vnez %v364
          %vm373 = vnez %v365
          %vm374 = vnez %v366
          %vm375 = vnez %v367
          %vm376 = vnez %v368
          %v377 = vld [vmem:[%s330] sm:$0xff]
          %v378 = vld [vmem:[%s330 + $0x8] sm:$0xff]
          %v379 = vld [vmem:[%s330 + $0x10] sm:$0xff]
          %v380 = vld [vmem:[%s330 + $0x18] sm:$0xff]
          %v381 = vld [vmem:[%s330 + $0x20] sm:$0xff]
          %v382 = vld [vmem:[%s330 + $0x28] sm:$0xff]
          %v383 = vld [vmem:[%s330 + $0x30] sm:$0xff]
          %v384 = vld [vmem:[%s330 + $0x38] sm:$0xff]
          %v385 = vld [vmem:[%s330 + $0x40] sm:$0xff]
          %v386 = vld [vmem:[%s330 + $0x48] sm:$0xff]
          %v387 = vld [vmem:[%s330 + $0x50] sm:$0xff]
          %v388 = vld [vmem:[%s330 + $0x58] sm:$0xff]
          %v389 = vld [vmem:[%s330 + $0x60] sm:$0xff]
          %v390 = vld [vmem:[%s330 + $0x68] sm:$0xff]
          %v391 = vld [vmem:[%s330 + $0x70] sm:$0xff]
          %v392 = vld [vmem:[%s330 + $0x78] sm:$0xff]
          %v393 = vld [vmem:[%s330 + $0x80] sm:$0xff]
          %v394 = vld [vmem:[%s330 + $0x88] sm:$0xff]
          %v395 = vld [vmem:[%s330 + $0x90] sm:$0xff]
          %v396 = vld [vmem:[%s330 + $0x98] sm:$0xff]
          %v397 = vld [vmem:[%s330 + $0xa0] sm:$0xff]
          %v398 = vld [vmem:[%s330 + $0xa8] sm:$0xff]
          %v399 = vld [vmem:[%s330 + $0xb0] sm:$0xff]
          %v400 = vld [vmem:[%s330 + $0xb8] sm:$0xff]
          %v401 = vld [vmem:[%s330 + $0xc0] sm:$0xff]
          %v402 = vld [vmem:[%s330 + $0xc8] sm:$0xff]
          %v403 = vld [vmem:[%s330 + $0xd0] sm:$0xff]
          %v404 = vld [vmem:[%s330 + $0xd8] sm:$0xff]
          %v405 = vld [vmem:[%s330 + $0xe0] sm:$0xff]
          %v406 = vld [vmem:[%s330 + $0xe8] sm:$0xff]
          %v407 = vld [vmem:[%s330 + $0xf0] sm:$0xff]
          %v408 = vld [vmem:[%s330 + $0xf8] sm:$0xff]
          %v409 = vld [vmem:[%s335] sm:$0x1]
          %411 = vset.pattern.permute.xlu0 0
          %412 = vperm.xlu0 %411, %v377
          %v413 = vpop.permute.xlu0 %412
          %416 = vset.pattern.permute.xlu0 0
          %417 = vperm.xlu0 %416, %v378
          %v418 = vpop.permute.xlu0 %417
          %421 = vset.pattern.permute.xlu0 0
          %422 = vperm.xlu0 %421, %v379
          %v423 = vpop.permute.xlu0 %422
          %426 = vset.pattern.permute.xlu0 0
          %427 = vperm.xlu0 %426, %v380
          %v428 = vpop.permute.xlu0 %427
          %431 = vset.pattern.permute.xlu0 0
          %432 = vperm.xlu0 %431, %v381
          %v433 = vpop.permute.xlu0 %432
          %436 = vset.pattern.permute.xlu0 0
          %437 = vperm.xlu0 %436, %v382
          %v438 = vpop.permute.xlu0 %437
          %441 = vset.pattern.permute.xlu0 0
          %442 = vperm.xlu0 %441, %v383
          %v443 = vpop.permute.xlu0 %442
          %446 = vset.pattern.permute.xlu0 0
          %447 = vperm.xlu0 %446, %v384
          %v448 = vpop.permute.xlu0 %447
          %451 = vset.pattern.permute.xlu0 0
          %452 = vperm.xlu0 %451, %v385
          %v453 = vpop.permute.xlu0 %452
          %456 = vset.pattern.permute.xlu0 0
          %457 = vperm.xlu0 %456, %v386
          %v458 = vpop.permute.xlu0 %457
          %461 = vset.pattern.permute.xlu0 0
          %462 = vperm.xlu0 %461, %v387
          %v463 = vpop.permute.xlu0 %462
          %466 = vset.pattern.permute.xlu0 0
          %467 = vperm.xlu0 %466, %v388
          %v468 = vpop.permute.xlu0 %467
          %471 = vset.pattern.permute.xlu0 0
          %472 = vperm.xlu0 %471, %v389
          %v473 = vpop.permute.xlu0 %472
          %476 = vset.pattern.permute.xlu0 0
          %477 = vperm.xlu0 %476, %v390
          %v478 = vpop.permute.xlu0 %477
          %481 = vset.pattern.permute.xlu0 0
          %482 = vperm.xlu0 %481, %v391
          %v483 = vpop.permute.xlu0 %482
          %486 = vset.pattern.permute.xlu0 0
          %487 = vperm.xlu0 %486, %v392
          %v488 = vpop.permute.xlu0 %487
          %491 = vset.pattern.permute.xlu0 0
          %492 = vperm.xlu0 %491, %v393
          %v493 = vpop.permute.xlu0 %492
          %496 = vset.pattern.permute.xlu0 0
          %497 = vperm.xlu0 %496, %v394
          %v498 = vpop.permute.xlu0 %497
          %501 = vset.pattern.permute.xlu0 0
          %502 = vperm.xlu0 %501, %v395
          %v503 = vpop.permute.xlu0 %502
          %506 = vset.pattern.permute.xlu0 0
          %507 = vperm.xlu0 %506, %v396
          %v508 = vpop.permute.xlu0 %507
          %511 = vset.pattern.permute.xlu0 0
          %512 = vperm.xlu0 %511, %v397
          %v513 = vpop.permute.xlu0 %512
          %516 = vset.pattern.permute.xlu0 0
          %517 = vperm.xlu0 %516, %v398
          %v518 = vpop.permute.xlu0 %517
          %521 = vset.pattern.permute.xlu0 0
          %522 = vperm.xlu0 %521, %v399
          %v523 = vpop.permute.xlu0 %522
          %526 = vset.pattern.permute.xlu0 0
          %527 = vperm.xlu0 %526, %v400
          %v528 = vpop.permute.xlu0 %527
          %531 = vset.pattern.permute.xlu0 0
          %532 = vperm.xlu0 %531, %v401
          %v533 = vpop.permute.xlu0 %532
          %536 = vset.pattern.permute.xlu0 0
          %537 = vperm.xlu0 %536, %v402
          %v538 = vpop.permute.xlu0 %537
          %541 = vset.pattern.permute.xlu0 0
          %542 = vperm.xlu0 %541, %v403
          %v543 = vpop.permute.xlu0 %542
          %546 = vset.pattern.permute.xlu0 0
          %547 = vperm.xlu0 %546, %v404
          %v548 = vpop.permute.xlu0 %547
          %551 = vset.pattern.permute.xlu0 0
          %552 = vperm.xlu0 %551, %v405
          %v553 = vpop.permute.xlu0 %552
          %556 = vset.pattern.permute.xlu0 0
          %557 = vperm.xlu0 %556, %v406
          %v558 = vpop.permute.xlu0 %557
          %561 = vset.pattern.permute.xlu0 0
          %562 = vperm.xlu0 %561, %v407
          %v563 = vpop.permute.xlu0 %562
          %566 = vset.pattern.permute.xlu0 0
          %567 = vperm.xlu0 %566, %v408
          %v568 = vpop.permute.xlu0 %567
          %v570 = vperm.slane %v409, 0
          %v571 = vadd.f32 %v413, %v570
          %v572 = vadd.f32 %v418, %v570
          %v573 = vadd.f32 %v423, %v570
          %v574 = vadd.f32 %v428, %v570
          %v575 = vadd.f32 %v433, %v570
          %v576 = vadd.f32 %v438, %v570
          %v577 = vadd.f32 %v443, %v570
          %v578 = vadd.f32 %v448, %v570
          %v579 = vadd.f32 %v453, %v570
          %v580 = vadd.f32 %v458, %v570
          %v581 = vadd.f32 %v463, %v570
          %v582 = vadd.f32 %v468, %v570
          %v583 = vadd.f32 %v473, %v570
          %v584 = vadd.f32 %v478, %v570
          %v585 = vadd.f32 %v483, %v570
          %v586 = vadd.f32 %v488, %v570
          %v587 = vadd.f32 %v493, %v570
          %v588 = vadd.f32 %v498, %v570
          %v589 = vadd.f32 %v503, %v570
          %v590 = vadd.f32 %v508, %v570
          %v591 = vadd.f32 %v513, %v570
          %v592 = vadd.f32 %v518, %v570
          %v593 = vadd.f32 %v523, %v570
          %v594 = vadd.f32 %v528, %v570
          %v595 = vadd.f32 %v533, %v570
          %v596 = vadd.f32 %v538, %v570
          %v597 = vadd.f32 %v543, %v570
          %v598 = vadd.f32 %v548, %v570
          %v599 = vadd.f32 %v553, %v570
          %v600 = vadd.f32 %v558, %v570
          %v601 = vadd.f32 %v563, %v570
          %v602 = vadd.f32 %v568, %v570
          %v603 = vmul.f32 %v571, 0.01
          %v604 = vmul.f32 %v572, 0.01
          %v605 = vmul.f32 %v573, 0.01
          %v606 = vmul.f32 %v574, 0.01
          %v607 = vmul.f32 %v575, 0.01
          %v608 = vmul.f32 %v576, 0.01
          %v609 = vmul.f32 %v577, 0.01
          %v610 = vmul.f32 %v578, 0.01
          %v611 = vmul.f32 %v579, 0.01
          %v612 = vmul.f32 %v580, 0.01
          %v613 = vmul.f32 %v581, 0.01
          %v614 = vmul.f32 %v582, 0.01
          %v615 = vmul.f32 %v583, 0.01
          %v616 = vmul.f32 %v584, 0.01
          %v617 = vmul.f32 %v585, 0.01
          %v618 = vmul.f32 %v586, 0.01
          %v619 = vmul.f32 %v587, 0.01
          %v620 = vmul.f32 %v588, 0.01
          %v621 = vmul.f32 %v589, 0.01
          %v622 = vmul.f32 %v590, 0.01
          %v623 = vmul.f32 %v591, 0.01
          %v624 = vmul.f32 %v592, 0.01
          %v625 = vmul.f32 %v593, 0.01
          %v626 = vmul.f32 %v594, 0.01
          %v627 = vmul.f32 %v595, 0.01
          %v628 = vmul.f32 %v596, 0.01
          %v629 = vmul.f32 %v597, 0.01
          %v630 = vmul.f32 %v598, 0.01
          %v631 = vmul.f32 %v599, 0.01
          %v632 = vmul.f32 %v600, 0.01
          %v633 = vmul.f32 %v601, 0.01
          %v634 = vmul.f32 %v602, 0.01
          %v635 = vmax.f32 %v571, %v603
          %v636 = vmax.f32 %v572, %v604
          %v637 = vmax.f32 %v573, %v605
          %v638 = vmax.f32 %v574, %v606
          %v639 = vmax.f32 %v575, %v607
          %v640 = vmax.f32 %v576, %v608
          %v641 = vmax.f32 %v577, %v609
          %v642 = vmax.f32 %v578, %v610
          %v643 = vmax.f32 %v579, %v611
          %v644 = vmax.f32 %v580, %v612
          %v645 = vmax.f32 %v581, %v613
          %v646 = vmax.f32 %v582, %v614
          %v647 = vmax.f32 %v583, %v615
          %v648 = vmax.f32 %v584, %v616
          %v649 = vmax.f32 %v585, %v617
          %v650 = vmax.f32 %v586, %v618
          %v651 = vmax.f32 %v587, %v619
          %v652 = vmax.f32 %v588, %v620
          %v653 = vmax.f32 %v589, %v621
          %v654 = vmax.f32 %v590, %v622
          %v655 = vmax.f32 %v591, %v623
          %v656 = vmax.f32 %v592, %v624
          %v657 = vmax.f32 %v593, %v625
          %v658 = vmax.f32 %v594, %v626
          %v659 = vmax.f32 %v595, %v627
          %v660 = vmax.f32 %v596, %v628
          %v661 = vmax.f32 %v597, %v629
          %v662 = vmax.f32 %v598, %v630
          %v663 = vmax.f32 %v599, %v631
          %v664 = vmax.f32 %v600, %v632
          %v665 = vmax.f32 %v601, %v633
          %v666 = vmax.f32 %v602, %v634
          %v667 = vsel %vm369, 16843009, 0
          %v668 = vsel %vm370, 16843009, 0
          %v669 = vsel %vm371, 16843009, 0
          %v670 = vsel %vm372, 16843009, 0
          %v671 = vsel %vm373, 16843009, 0
          %v672 = vsel %vm374, 16843009, 0
          %v673 = vsel %vm375, 16843009, 0
          %v674 = vsel %vm376, 16843009, 0
          %v675 = vunpack.c.0.s8 %v667
          %v676 = vunpack.c.1.s8 %v667
          %v677 = vunpack.c.2.s8 %v667
          %v678 = vunpack.c.3.s8 %v667
          %v679 = vunpack.c.0.s8 %v668
          %v680 = vunpack.c.1.s8 %v668
          %v681 = vunpack.c.2.s8 %v668
          %v682 = vunpack.c.3.s8 %v668
          %v683 = vunpack.c.0.s8 %v669
          %v684 = vunpack.c.1.s8 %v669
          %v685 = vunpack.c.2.s8 %v669
          %v686 = vunpack.c.3.s8 %v669
          %v687 = vunpack.c.0.s8 %v670
          %v688 = vunpack.c.1.s8 %v670
          %v689 = vunpack.c.2.s8 %v670
          %v690 = vunpack.c.3.s8 %v670
          %v691 = vunpack.c.0.s8 %v671
          %v692 = vunpack.c.1.s8 %v671
          %v693 = vunpack.c.2.s8 %v671
          %v694 = vunpack.c.3.s8 %v671
          %v695 = vunpack.c.0.s8 %v672
          %v696 = vunpack.c.1.s8 %v672
          %v697 = vunpack.c.2.s8 %v672
          %v698 = vunpack.c.3.s8 %v672
          %v699 = vunpack.c.0.s8 %v673
          %v700 = vunpack.c.1.s8 %v673
          %v701 = vunpack.c.2.s8 %v673
          %v702 = vunpack.c.3.s8 %v673
          %v703 = vunpack.c.0.s8 %v674
          %v704 = vunpack.c.1.s8 %v674
          %v705 = vunpack.c.2.s8 %v674
          %v706 = vunpack.c.3.s8 %v674
          %v707 = vpack.c.b16 %v675, %v675
          %v708 = vpack.c.b8 %v707, %v707
          %v709 = vpack.c.b16 %v676, %v676
          %v710 = vpack.c.b8 %v709, %v709
          %v711 = vpack.c.b16 %v677, %v677
          %v712 = vpack.c.b8 %v711, %v711
          %v713 = vpack.c.b16 %v678, %v678
          %v714 = vpack.c.b8 %v713, %v713
          %v715 = vpack.c.b16 %v679, %v679
          %v716 = vpack.c.b8 %v715, %v715
          %v717 = vpack.c.b16 %v680, %v680
          %v718 = vpack.c.b8 %v717, %v717
          %v719 = vpack.c.b16 %v681, %v681
          %v720 = vpack.c.b8 %v719, %v719
          %v721 = vpack.c.b16 %v682, %v682
          %v722 = vpack.c.b8 %v721, %v721
          %v723 = vpack.c.b16 %v683, %v683
          %v724 = vpack.c.b8 %v723, %v723
          %v725 = vpack.c.b16 %v684, %v684
          %v726 = vpack.c.b8 %v725, %v725
          %v727 = vpack.c.b16 %v685, %v685
          %v728 = vpack.c.b8 %v727, %v727
          %v729 = vpack.c.b16 %v686, %v686
          %v730 = vpack.c.b8 %v729, %v729
          %v731 = vpack.c.b16 %v687, %v687
          %v732 = vpack.c.b8 %v731, %v731
          %v733 = vpack.c.b16 %v688, %v688
          %v734 = vpack.c.b8 %v733, %v733
          %v735 = vpack.c.b16 %v689, %v689
          %v736 = vpack.c.b8 %v735, %v735
          %v737 = vpack.c.b16 %v690, %v690
          %v738 = vpack.c.b8 %v737, %v737
          %v739 = vpack.c.b16 %v691, %v691
          %v740 = vpack.c.b8 %v739, %v739
          %v741 = vpack.c.b16 %v692, %v692
          %v742 = vpack.c.b8 %v741, %v741
          %v743 = vpack.c.b16 %v693, %v693
          %v744 = vpack.c.b8 %v743, %v743
          %v745 = vpack.c.b16 %v694, %v694
          %v746 = vpack.c.b8 %v745, %v745
          %v747 = vpack.c.b16 %v695, %v695
          %v748 = vpack.c.b8 %v747, %v747
          %v749 = vpack.c.b16 %v696, %v696
          %v750 = vpack.c.b8 %v749, %v749
          %v751 = vpack.c.b16 %v697, %v697
          %v752 = vpack.c.b8 %v751, %v751
          %v753 = vpack.c.b16 %v698, %v698
          %v754 = vpack.c.b8 %v753, %v753
          %v755 = vpack.c.b16 %v699, %v699
          %v756 = vpack.c.b8 %v755, %v755
          %v757 = vpack.c.b16 %v700, %v700
          %v758 = vpack.c.b8 %v757, %v757
          %v759 = vpack.c.b16 %v701, %v701
          %v760 = vpack.c.b8 %v759, %v759
          %v761 = vpack.c.b16 %v702, %v702
          %v762 = vpack.c.b8 %v761, %v761
          %v763 = vpack.c.b16 %v703, %v703
          %v764 = vpack.c.b8 %v763, %v763
          %v765 = vpack.c.b16 %v704, %v704
          %v766 = vpack.c.b8 %v765, %v765
          %v767 = vpack.c.b16 %v705, %v705
          %v768 = vpack.c.b8 %v767, %v767
          %v769 = vpack.c.b16 %v706, %v706
          %v770 = vpack.c.b8 %v769, %v769
          %vm771 = vnez %v708
          %vm772 = vnez %v710
          %vm773 = vnez %v712
          %vm774 = vnez %v714
          %vm775 = vnez %v716
          %vm776 = vnez %v718
          %vm777 = vnez %v720
          %vm778 = vnez %v722
          %vm779 = vnez %v724
          %vm780 = vnez %v726
          %vm781 = vnez %v728
          %vm782 = vnez %v730
          %vm783 = vnez %v732
          %vm784 = vnez %v734
          %vm785 = vnez %v736
          %vm786 = vnez %v738
          %vm787 = vnez %v740
          %vm788 = vnez %v742
          %vm789 = vnez %v744
          %vm790 = vnez %v746
          %vm791 = vnez %v748
          %vm792 = vnez %v750
          %vm793 = vnez %v752
          %vm794 = vnez %v754
          %vm795 = vnez %v756
          %vm796 = vnez %v758
          %vm797 = vnez %v760
          %vm798 = vnez %v762
          %vm799 = vnez %v764
          %vm800 = vnez %v766
          %vm801 = vnez %v768
          %vm802 = vnez %v770
          %v803 = vsel %vm771, 16843009, 0
          %v804 = vsel %vm772, 16843009, 0
          %v805 = vsel %vm773, 16843009, 0
          %v806 = vsel %vm774, 16843009, 0
          %v807 = vsel %vm775, 16843009, 0
          %v808 = vsel %vm776, 16843009, 0
          %v809 = vsel %vm777, 16843009, 0
          %v810 = vsel %vm778, 16843009, 0
          %v811 = vsel %vm779, 16843009, 0
          %v812 = vsel %vm780, 16843009, 0
          %v813 = vsel %vm781, 16843009, 0
          %v814 = vsel %vm782, 16843009, 0
          %v815 = vsel %vm783, 16843009, 0
          %v816 = vsel %vm784, 16843009, 0
          %v817 = vsel %vm785, 16843009, 0
          %v818 = vsel %vm786, 16843009, 0
          %v819 = vsel %vm787, 16843009, 0
          %v820 = vsel %vm788, 16843009, 0
          %v821 = vsel %vm789, 16843009, 0
          %v822 = vsel %vm790, 16843009, 0
          %v823 = vsel %vm791, 16843009, 0
          %v824 = vsel %vm792, 16843009, 0
          %v825 = vsel %vm793, 16843009, 0
          %v826 = vsel %vm794, 16843009, 0
          %v827 = vsel %vm795, 16843009, 0
          %v828 = vsel %vm796, 16843009, 0
          %v829 = vsel %vm797, 16843009, 0
          %v830 = vsel %vm798, 16843009, 0
          %v831 = vsel %vm799, 16843009, 0
          %v832 = vsel %vm800, 16843009, 0
          %v833 = vsel %vm801, 16843009, 0
          %v834 = vsel %vm802, 16843009, 0
          %v835 = vunpack.c.0.s8 %v803
          %v836 = vunpack.c.0.s8 %v804
          %v837 = vunpack.c.0.s8 %v805
          %v838 = vunpack.c.0.s8 %v806
          %v839 = vunpack.c.0.s8 %v807
          %v840 = vunpack.c.0.s8 %v808
          %v841 = vunpack.c.0.s8 %v809
          %v842 = vunpack.c.0.s8 %v810
          %v843 = vunpack.c.0.s8 %v811
          %v844 = vunpack.c.0.s8 %v812
          %v845 = vunpack.c.0.s8 %v813
          %v846 = vunpack.c.0.s8 %v814
          %v847 = vunpack.c.0.s8 %v815
          %v848 = vunpack.c.0.s8 %v816
          %v849 = vunpack.c.0.s8 %v817
          %v850 = vunpack.c.0.s8 %v818
          %v851 = vunpack.c.0.s8 %v819
          %v852 = vunpack.c.0.s8 %v820
          %v853 = vunpack.c.0.s8 %v821
          %v854 = vunpack.c.0.s8 %v822
          %v855 = vunpack.c.0.s8 %v823
          %v856 = vunpack.c.0.s8 %v824
          %v857 = vunpack.c.0.s8 %v825
          %v858 = vunpack.c.0.s8 %v826
          %v859 = vunpack.c.0.s8 %v827
          %v860 = vunpack.c.0.s8 %v828
          %v861 = vunpack.c.0.s8 %v829
          %v862 = vunpack.c.0.s8 %v830
          %v863 = vunpack.c.0.s8 %v831
          %v864 = vunpack.c.0.s8 %v832
          %v865 = vunpack.c.0.s8 %v833
          %v866 = vunpack.c.0.s8 %v834
          %vm867 = vcmp.ne.s32.totalorder %v835, 0
          %vm868 = vcmp.ne.s32.totalorder %v836, 0
          %vm869 = vcmp.ne.s32.totalorder %v837, 0
          %vm870 = vcmp.ne.s32.totalorder %v838, 0
          %vm871 = vcmp.ne.s32.totalorder %v839, 0
          %vm872 = vcmp.ne.s32.totalorder %v840, 0
          %vm873 = vcmp.ne.s32.totalorder %v841, 0
          %vm874 = vcmp.ne.s32.totalorder %v842, 0
          %vm875 = vcmp.ne.s32.totalorder %v843, 0
          %vm876 = vcmp.ne.s32.totalorder %v844, 0
          %vm877 = vcmp.ne.s32.totalorder %v845, 0
          %vm878 = vcmp.ne.s32.totalorder %v846, 0
          %vm879 = vcmp.ne.s32.totalorder %v847, 0
          %vm880 = vcmp.ne.s32.totalorder %v848, 0
          %vm881 = vcmp.ne.s32.totalorder %v849, 0
          %vm882 = vcmp.ne.s32.totalorder %v850, 0
          %vm883 = vcmp.ne.s32.totalorder %v851, 0
          %vm884 = vcmp.ne.s32.totalorder %v852, 0
          %vm885 = vcmp.ne.s32.totalorder %v853, 0
          %vm886 = vcmp.ne.s32.totalorder %v854, 0
          %vm887 = vcmp.ne.s32.totalorder %v855, 0
          %vm888 = vcmp.ne.s32.totalorder %v856, 0
          %vm889 = vcmp.ne.s32.totalorder %v857, 0
          %vm890 = vcmp.ne.s32.totalorder %v858, 0
          %vm891 = vcmp.ne.s32.totalorder %v859, 0
          %vm892 = vcmp.ne.s32.totalorder %v860, 0
          %vm893 = vcmp.ne.s32.totalorder %v861, 0
          %vm894 = vcmp.ne.s32.totalorder %v862, 0
          %vm895 = vcmp.ne.s32.totalorder %v863, 0
          %vm896 = vcmp.ne.s32.totalorder %v864, 0
          %vm897 = vcmp.ne.s32.totalorder %v865, 0
          %vm898 = vcmp.ne.s32.totalorder %v866, 0
          %v899 = vsel %vm867, %v635, -1e+30
          %v900 = vsel %vm868, %v636, -1e+30
          %v901 = vsel %vm869, %v637, -1e+30
          %v902 = vsel %vm870, %v638, -1e+30
          %v903 = vsel %vm871, %v639, -1e+30
          %v904 = vsel %vm872, %v640, -1e+30
          %v905 = vsel %vm873, %v641, -1e+30
          %v906 = vsel %vm874, %v642, -1e+30
          %v907 = vsel %vm875, %v643, -1e+30
          %v908 = vsel %vm876, %v644, -1e+30
          %v909 = vsel %vm877, %v645, -1e+30
          %v910 = vsel %vm878, %v646, -1e+30
          %v911 = vsel %vm879, %v647, -1e+30
          %v912 = vsel %vm880, %v648, -1e+30
          %v913 = vsel %vm881, %v649, -1e+30
          %v914 = vsel %vm882, %v650, -1e+30
          %v915 = vsel %vm883, %v651, -1e+30
          %v916 = vsel %vm884, %v652, -1e+30
          %v917 = vsel %vm885, %v653, -1e+30
          %v918 = vsel %vm886, %v654, -1e+30
          %v919 = vsel %vm887, %v655, -1e+30
          %v920 = vsel %vm888, %v656, -1e+30
          %v921 = vsel %vm889, %v657, -1e+30
          %v922 = vsel %vm890, %v658, -1e+30
          %v923 = vsel %vm891, %v659, -1e+30
          %v924 = vsel %vm892, %v660, -1e+30
          %v925 = vsel %vm893, %v661, -1e+30
          %v926 = vsel %vm894, %v662, -1e+30
          %v927 = vsel %vm895, %v663, -1e+30
          %v928 = vsel %vm896, %v664, -1e+30
          %v929 = vsel %vm897, %v665, -1e+30
          %v930 = vsel %vm898, %v666, -1e+30
          %v931 = vld [vmem:[#allocation2] sm:$0x1]
          %v932 = vmax.f32 %v899, %v903
          %v933 = vmax.f32 %v900, %v904
          %v934 = vmax.f32 %v901, %v905
          %v935 = vmax.f32 %v902, %v906
          %v936 = vmax.f32 %v932, %v907
          %v937 = vmax.f32 %v933, %v908
          %v938 = vmax.f32 %v934, %v909
          %v939 = vmax.f32 %v935, %v910
          %v940 = vmax.f32 %v936, %v911
          %v941 = vmax.f32 %v937, %v912
          %v942 = vmax.f32 %v938, %v913
          %v943 = vmax.f32 %v939, %v914
          %v944 = vmax.f32 %v940, %v915
          %v945 = vmax.f32 %v941, %v916
          %v946 = vmax.f32 %v942, %v917
          %v947 = vmax.f32 %v943, %v918
          %v948 = vmax.f32 %v944, %v919
          %v949 = vmax.f32 %v945, %v920
          %v950 = vmax.f32 %v946, %v921
          %v951 = vmax.f32 %v947, %v922
          %v952 = vmax.f32 %v948, %v923
          %v953 = vmax.f32 %v949, %v924
          %v954 = vmax.f32 %v950, %v925
          %v955 = vmax.f32 %v951, %v926
          %v956 = vmax.f32 %v952, %v927
          %v957 = vmax.f32 %v953, %v928
          %v958 = vmax.f32 %v954, %v929
          %v959 = vmax.f32 %v955, %v930
          %v960 = vmax.f32 %v956, %v957
          %v961 = vmax.f32 %v958, %v959
          %v962 = vmax.f32 %v960, %v961
          %v963 = vrot.slane %v962, 4
          %v964 = vmax.f32 %v962, %v963
          %v965 = vrot.slane %v964, 2
          %v966 = vmax.f32 %v964, %v965
          %v967 = vrot.slane %v966, 1
          %v968 = vmax.f32 %v966, %v967
          %v969 = vmax.f32 %v931, %v968
          %v970 = vsub.f32 %v931, %v969
          %v971 = vmul.f32 %v970, 1.442695
          %v972 = vpow.pop %v971
          %v974 = vperm.slane %v969, 0
          %v976 = vsub.f32 %v899, %v974
          %v977 = vsub.f32 %v900, %v974
          %v978 = vsub.f32 %v901, %v974
          %v979 = vsub.f32 %v902, %v974
          %v980 = vsub.f32 %v903, %v974
          %v981 = vsub.f32 %v904, %v974
          %v982 = vsub.f32 %v905, %v974
          %v983 = vsub.f32 %v906, %v974
          %v984 = vsub.f32 %v907, %v974
          %v985 = vsub.f32 %v908, %v974
          %v986 = vsub.f32 %v909, %v974
          %v987 = vsub.f32 %v910, %v974
          %v988 = vsub.f32 %v911, %v974
          %v989 = vsub.f32 %v912, %v974
          %v990 = vsub.f32 %v913, %v974
          %v991 = vsub.f32 %v914, %v974
          %v992 = vsub.f32 %v915, %v974
          %v993 = vsub.f32 %v916, %v974
          %v994 = vsub.f32 %v917, %v974
          %v995 = vsub.f32 %v918, %v974
          %v996 = vsub.f32 %v919, %v974
          %v997 = vsub.f32 %v920, %v974
          %v998 = vsub.f32 %v921, %v974
          %v999 = vsub.f32 %v922, %v974
          %v1000 = vsub.f32 %v923, %v974
          %v1001 = vsub.f32 %v924, %v974
          %v1002 = vsub.f32 %v925, %v974
          %v1003 = vsub.f32 %v926, %v974
          %v1004 = vsub.f32 %v927, %v974
          %v1005 = vsub.f32 %v928, %v974
          %v1006 = vsub.f32 %v929, %v974
          %v1007 = vsub.f32 %v930, %v974
          %v1008 = vmul.f32 %v976, 1.442695
          %v1009 = vpow.pop %v1008
          %v1010 = vmul.f32 %v977, 1.442695
          %v1011 = vpow.pop %v1010
          %v1012 = vmul.f32 %v978, 1.442695
          %v1013 = vpow.pop %v1012
          %v1014 = vmul.f32 %v979, 1.442695
          %v1015 = vpow.pop %v1014
          %v1016 = vmul.f32 %v980, 1.442695
          %v1017 = vpow.pop %v1016
          %v1018 = vmul.f32 %v981, 1.442695
          %v1019 = vpow.pop %v1018
          %v1020 = vmul.f32 %v982, 1.442695
          %v1021 = vpow.pop %v1020
          %v1022 = vmul.f32 %v983, 1.442695
          %v1023 = vpow.pop %v1022
          %v1024 = vmul.f32 %v984, 1.442695
          %v1025 = vpow.pop %v1024
          %v1026 = vmul.f32 %v985, 1.442695
          %v1027 = vpow.pop %v1026
          %v1028 = vmul.f32 %v986, 1.442695
          %v1029 = vpow.pop %v1028
          %v1030 = vmul.f32 %v987, 1.442695
          %v1031 = vpow.pop %v1030
          %v1032 = vmul.f32 %v988, 1.442695
          %v1033 = vpow.pop %v1032
          %v1034 = vmul.f32 %v989, 1.442695
          %v1035 = vpow.pop %v1034
          %v1036 = vmul.f32 %v990, 1.442695
          %v1037 = vpow.pop %v1036
          %v1038 = vmul.f32 %v991, 1.442695
          %v1039 = vpow.pop %v1038
          %v1040 = vmul.f32 %v992, 1.442695
          %v1041 = vpow.pop %v1040
          %v1042 = vmul.f32 %v993, 1.442695
          %v1043 = vpow.pop %v1042
          %v1044 = vmul.f32 %v994, 1.442695
          %v1045 = vpow.pop %v1044
          %v1046 = vmul.f32 %v995, 1.442695
          %v1047 = vpow.pop %v1046
          %v1048 = vmul.f32 %v996, 1.442695
          %v1049 = vpow.pop %v1048
          %v1050 = vmul.f32 %v997, 1.442695
          %v1051 = vpow.pop %v1050
          %v1052 = vmul.f32 %v998, 1.442695
          %v1053 = vpow.pop %v1052
          %v1054 = vmul.f32 %v999, 1.442695
          %v1055 = vpow.pop %v1054
          %v1056 = vmul.f32 %v1000, 1.442695
          %v1057 = vpow.pop %v1056
          %v1058 = vmul.f32 %v1001, 1.442695
          %v1059 = vpow.pop %v1058
          %v1060 = vmul.f32 %v1002, 1.442695
          %v1061 = vpow.pop %v1060
          %v1062 = vmul.f32 %v1003, 1.442695
          %v1063 = vpow.pop %v1062
          %v1064 = vmul.f32 %v1004, 1.442695
          %v1065 = vpow.pop %v1064
          %v1066 = vmul.f32 %v1005, 1.442695
          %v1067 = vpow.pop %v1066
          %v1068 = vmul.f32 %v1006, 1.442695
          %v1069 = vpow.pop %v1068
          %v1070 = vmul.f32 %v1007, 1.442695
          %v1071 = vpow.pop %v1070
          %v1072 = vsel %vm867, %v1009, 0.0
          %v1073 = vsel %vm868, %v1011, 0.0
          %v1074 = vsel %vm869, %v1013, 0.0
          %v1075 = vsel %vm870, %v1015, 0.0
          %v1076 = vsel %vm871, %v1017, 0.0
          %v1077 = vsel %vm872, %v1019, 0.0
          %v1078 = vsel %vm873, %v1021, 0.0
          %v1079 = vsel %vm874, %v1023, 0.0
          %v1080 = vsel %vm875, %v1025, 0.0
          %v1081 = vsel %vm876, %v1027, 0.0
          %v1082 = vsel %vm877, %v1029, 0.0
          %v1083 = vsel %vm878, %v1031, 0.0
          %v1084 = vsel %vm879, %v1033, 0.0
          %v1085 = vsel %vm880, %v1035, 0.0
          %v1086 = vsel %vm881, %v1037, 0.0
          %v1087 = vsel %vm882, %v1039, 0.0
          %v1088 = vsel %vm883, %v1041, 0.0
          %v1089 = vsel %vm884, %v1043, 0.0
          %v1090 = vsel %vm885, %v1045, 0.0
          %v1091 = vsel %vm886, %v1047, 0.0
          %v1092 = vsel %vm887, %v1049, 0.0
          %v1093 = vsel %vm888, %v1051, 0.0
          %v1094 = vsel %vm889, %v1053, 0.0
          %v1095 = vsel %vm890, %v1055, 0.0
          %v1096 = vsel %vm891, %v1057, 0.0
          %v1097 = vsel %vm892, %v1059, 0.0
          %v1098 = vsel %vm893, %v1061, 0.0
          %v1099 = vsel %vm894, %v1063, 0.0
          %v1100 = vsel %vm895, %v1065, 0.0
          %v1101 = vsel %vm896, %v1067, 0.0
          %v1102 = vsel %vm897, %v1069, 0.0
          %v1103 = vsel %vm898, %v1071, 0.0
          %v1104 = vld [vmem:[#allocation3] sm:$0x1]
          %v1105 = vmul.f32 %v972, %v1104
          %v1106 = vadd.f32 %v1072, %v1073
          %v1107 = vadd.f32 %v1106, %v1074
          %v1108 = vadd.f32 %v1107, %v1075
          %v1109 = vadd.f32 %v1108, %v1076
          %v1110 = vadd.f32 %v1109, %v1077
          %v1111 = vadd.f32 %v1110, %v1078
          %v1112 = vadd.f32 %v1111, %v1079
          %v1113 = vadd.f32 %v1112, %v1080
          %v1114 = vadd.f32 %v1113, %v1081
          %v1115 = vadd.f32 %v1114, %v1082
          %v1116 = vadd.f32 %v1115, %v1083
          %v1117 = vadd.f32 %v1116, %v1084
          %v1118 = vadd.f32 %v1117, %v1085
          %v1119 = vadd.f32 %v1118, %v1086
          %v1120 = vadd.f32 %v1119, %v1087
          %v1121 = vadd.f32 %v1120, %v1088
          %v1122 = vadd.f32 %v1121, %v1089
          %v1123 = vadd.f32 %v1122, %v1090
          %v1124 = vadd.f32 %v1123, %v1091
          %v1125 = vadd.f32 %v1124, %v1092
          %v1126 = vadd.f32 %v1125, %v1093
          %v1127 = vadd.f32 %v1126, %v1094
          %v1128 = vadd.f32 %v1127, %v1095
          %v1129 = vadd.f32 %v1128, %v1096
          %v1130 = vadd.f32 %v1129, %v1097
          %v1131 = vadd.f32 %v1130, %v1098
          %v1132 = vadd.f32 %v1131, %v1099
          %v1133 = vadd.f32 %v1132, %v1100
          %v1134 = vadd.f32 %v1133, %v1101
          %v1135 = vadd.f32 %v1134, %v1102
          %v1136 = vadd.f32 %v1135, %v1103
          %v1137 = vrot.slane %v1136, 4
          %v1138 = vadd.f32 %v1136, %v1137
          %v1139 = vrot.slane %v1138, 2
          %v1140 = vadd.f32 %v1138, %v1139
          %v1141 = vrot.slane %v1140, 1
          %v1142 = vadd.f32 %v1140, %v1141
          %v1143 = vadd.f32 %v1105, %v1142
          %1144 = vst [vmem:[#allocation3] sm:$0x1] %v1143
          %1145 = vst [vmem:[#allocation2] sm:$0x1] %v969
          %v1146 = vld [vmem:[%s340] sm:$0xf]
          %v1147 = vld [vmem:[%s340 + $0x4] sm:$0xf]
          %v1148 = vld [vmem:[%s340 + $0x8] sm:$0xf]
          %v1149 = vld [vmem:[%s340 + $0xc] sm:$0xf]
          %v1150 = vld [vmem:[%s340 + $0x10] sm:$0xf]
          %v1151 = vld [vmem:[%s340 + $0x14] sm:$0xf]
          %v1152 = vld [vmem:[%s340 + $0x18] sm:$0xf]
          %v1153 = vld [vmem:[%s340 + $0x1c] sm:$0xf]
          %v1154 = vld [vmem:[%s340 + $0x20] sm:$0xf]
          %v1155 = vld [vmem:[%s340 + $0x24] sm:$0xf]
          %v1156 = vld [vmem:[%s340 + $0x28] sm:$0xf]
          %v1157 = vld [vmem:[%s340 + $0x2c] sm:$0xf]
          %v1158 = vld [vmem:[%s340 + $0x30] sm:$0xf]
          %v1159 = vld [vmem:[%s340 + $0x34] sm:$0xf]
          %v1160 = vld [vmem:[%s340 + $0x38] sm:$0xf]
          %v1161 = vld [vmem:[%s340 + $0x3c] sm:$0xf]
          %v1162 = vld [vmem:[%s340 + $0x40] sm:$0xf]
          %v1163 = vld [vmem:[%s340 + $0x44] sm:$0xf]
          %v1164 = vld [vmem:[%s340 + $0x48] sm:$0xf]
          %v1165 = vld [vmem:[%s340 + $0x4c] sm:$0xf]
          %v1166 = vld [vmem:[%s340 + $0x50] sm:$0xf]
          %v1167 = vld [vmem:[%s340 + $0x54] sm:$0xf]
          %v1168 = vld [vmem:[%s340 + $0x58] sm:$0xf]
          %v1169 = vld [vmem:[%s340 + $0x5c] sm:$0xf]
          %v1170 = vld [vmem:[%s340 + $0x60] sm:$0xf]
          %v1171 = vld [vmem:[%s340 + $0x64] sm:$0xf]
          %v1172 = vld [vmem:[%s340 + $0x68] sm:$0xf]
          %v1173 = vld [vmem:[%s340 + $0x6c] sm:$0xf]
          %v1174 = vld [vmem:[%s340 + $0x70] sm:$0xf]
          %v1175 = vld [vmem:[%s340 + $0x74] sm:$0xf]
          %v1176 = vld [vmem:[%s340 + $0x78] sm:$0xf]
          %v1177 = vld [vmem:[%s340 + $0x7c] sm:$0xf]
          %v1178 = vpack.c.bf16 %v1073, %v1072
          %v1179 = vpack.c.bf16 %v1075, %v1074
          %v1180 = vpack.c.bf16 %v1077, %v1076
          %v1181 = vpack.c.bf16 %v1079, %v1078
          %v1182 = vpack.c.bf16 %v1081, %v1080
          %v1183 = vpack.c.bf16 %v1083, %v1082
          %v1184 = vpack.c.bf16 %v1085, %v1084
          %v1185 = vpack.c.bf16 %v1087, %v1086
          %v1186 = vpack.c.bf16 %v1089, %v1088
          %v1187 = vpack.c.bf16 %v1091, %v1090
          %v1188 = vpack.c.bf16 %v1093, %v1092
          %v1189 = vpack.c.bf16 %v1095, %v1094
          %v1190 = vpack.c.bf16 %v1097, %v1096
          %v1191 = vpack.c.bf16 %v1099, %v1098
          %v1192 = vpack.c.bf16 %v1101, %v1100
          %v1193 = vpack.c.bf16 %v1103, %v1102
          %v1226 = vunpack.c.l.b16 %v1146
          %v1227 = vunpack.c.l.b16 %v1147
          %v1228 = vunpack.c.l.b16 %v1148
          %v1229 = vunpack.c.l.b16 %v1149
          %v1230 = vunpack.c.l.b16 %v1150
          %v1231 = vunpack.c.l.b16 %v1151
          %v1232 = vunpack.c.l.b16 %v1152
          %v1233 = vunpack.c.l.b16 %v1153
          %v1234 = vunpack.c.l.b16 %v1154
          %v1235 = vunpack.c.l.b16 %v1155
          %v1236 = vunpack.c.l.b16 %v1156
          %v1237 = vunpack.c.l.b16 %v1157
          %v1238 = vunpack.c.l.b16 %v1158
          %v1239 = vunpack.c.l.b16 %v1159
          %v1240 = vunpack.c.l.b16 %v1160
          %v1241 = vunpack.c.l.b16 %v1161
          %v1242 = vunpack.c.l.b16 %v1162
          %v1243 = vunpack.c.l.b16 %v1163
          %v1244 = vunpack.c.l.b16 %v1164
          %v1245 = vunpack.c.l.b16 %v1165
          %v1246 = vunpack.c.l.b16 %v1166
          %v1247 = vunpack.c.l.b16 %v1167
          %v1248 = vunpack.c.l.b16 %v1168
          %v1249 = vunpack.c.l.b16 %v1169
          %v1250 = vunpack.c.l.b16 %v1170
          %v1251 = vunpack.c.l.b16 %v1171
          %v1252 = vunpack.c.l.b16 %v1172
          %v1253 = vunpack.c.l.b16 %v1173
          %v1254 = vunpack.c.l.b16 %v1174
          %v1255 = vunpack.c.l.b16 %v1175
          %v1256 = vunpack.c.l.b16 %v1176
          %v1257 = vunpack.c.l.b16 %v1177
          %v1258 = vpack.c.b16 %v1227, %v1226
          %v1259 = vpack.c.b16 %v1229, %v1228
          %v1260 = vpack.c.b16 %v1231, %v1230
          %v1261 = vpack.c.b16 %v1233, %v1232
          %v1262 = vpack.c.b16 %v1235, %v1234
          %v1263 = vpack.c.b16 %v1237, %v1236
          %v1264 = vpack.c.b16 %v1239, %v1238
          %v1265 = vpack.c.b16 %v1241, %v1240
          %v1266 = vpack.c.b16 %v1243, %v1242
          %v1267 = vpack.c.b16 %v1245, %v1244
          %v1268 = vpack.c.b16 %v1247, %v1246
          %v1269 = vpack.c.b16 %v1249, %v1248
          %v1270 = vpack.c.b16 %v1251, %v1250
          %v1271 = vpack.c.b16 %v1253, %v1252
          %v1272 = vpack.c.b16 %v1255, %v1254
          %v1273 = vpack.c.b16 %v1257, %v1256
          %1290 = vxpose.xlu0.c.b16.start [1/8] %v1258, 128
          %1291 = vxpose.xlu0.c.b16.cont [2/8] %v1259, 128
          %1292 = vxpose.xlu0.c.b16.cont [3/8] %v1260, 128
          %1293 = vxpose.xlu0.c.b16.cont [4/8] %v1261, 128
          %1294 = vxpose.xlu0.c.b16.cont [5/8] %v1262, 128
          %1295 = vxpose.xlu0.c.b16.cont [6/8] %v1263, 128
          %1296 = vxpose.xlu0.c.b16.cont [7/8] %v1264, 128
          %1297 = vxpose.xlu0.c.b16.end [8/8] %v1265, 128
          %v1298 = vpop.trf.xlu0
          %v1299 = vpop.trf.xlu0
          %v1300 = vpop.trf.xlu0
          %v1301 = vpop.trf.xlu0
          %v1302 = vpop.trf.xlu0
          %v1303 = vpop.trf.xlu0
          %v1304 = vpop.trf.xlu0
          %v1305 = vpop.trf.xlu0
          %1306 = vxpose.xlu0.c.b16.start [1/8] %v1266, 128
          %1307 = vxpose.xlu0.c.b16.cont [2/8] %v1267, 128
          %1308 = vxpose.xlu0.c.b16.cont [3/8] %v1268, 128
          %1309 = vxpose.xlu0.c.b16.cont [4/8] %v1269, 128
          %1310 = vxpose.xlu0.c.b16.cont [5/8] %v1270, 128
          %1311 = vxpose.xlu0.c.b16.cont [6/8] %v1271, 128
          %1312 = vxpose.xlu0.c.b16.cont [7/8] %v1272, 128
          %1313 = vxpose.xlu0.c.b16.end [8/8] %v1273, 128
          %v1314 = vpop.trf.xlu0
          %v1315 = vpop.trf.xlu0
          %v1316 = vpop.trf.xlu0
          %v1317 = vpop.trf.xlu0
          %v1318 = vpop.trf.xlu0
          %v1319 = vpop.trf.xlu0
          %v1320 = vpop.trf.xlu0
          %v1321 = vpop.trf.xlu0
          %1322 = vmatpush.bf16.msra.mxu0 %v1185
          %1323 = vmatpush.bf16.msra.mxu0 %v1184
          %1324 = vmatpush.bf16.msra.mxu0 %v1183
          %1325 = vmatpush.bf16.msra.mxu0 %v1182
          %1326 = vmatpush.bf16.msra.mxu0 %v1181
          %1327 = vmatpush.bf16.msra.mxu0 %v1180
          %1328 = vmatpush.bf16.msra.mxu0 %v1179
          %1329 = vmatpush.bf16.msra.mxu0 %v1178
          %1330 = vmatmul.bf16.gmra.mxu0 %v1298
          %v1331 = vpop.f32.mrf.mxu0
          %v1332 = vadd.f32 0.0, %v1331
          %v1333 = vpop.f32.mrf.mxu0
          %1334 = vdwg.mxu0
          %1335 = vmatpush.bf16.msra.mxu0 %v1193
          %1336 = vmatpush.bf16.msra.mxu0 %v1192
          %1337 = vmatpush.bf16.msra.mxu0 %v1191
          %1338 = vmatpush.bf16.msra.mxu0 %v1190
          %1339 = vmatpush.bf16.msra.mxu0 %v1189
          %1340 = vmatpush.bf16.msra.mxu0 %v1188
          %1341 = vmatpush.bf16.msra.mxu0 %v1187
          %1342 = vmatpush.bf16.msra.mxu0 %v1186
          %1343 = vmatmul.bf16.gmra.mxu0 %v1314
          %v1344 = vpop.f32.mrf.mxu0
          %v1345 = vadd.f32 %v1332, %v1344
          %v1346 = vpop.f32.mrf.mxu0
          %1347 = vdwg.mxu0
          %v1348 = vld [vmem:[#allocation4] sm:$0xff]
          %v1350 = vperm.slane %v972, 0
          %v1352 = vmul.f32 %v1348, %v1350
          %v1353 = vadd.f32 %v1352, %v1345
          %1354 = vst [vmem:[#allocation4] sm:$0xff] %v1353
          %v1355 = vld [vmem:[%s330] sm:$0xff]
          %v1356 = vld [vmem:[%s330 + $0x8] sm:$0xff]
          %v1357 = vld [vmem:[%s330 + $0x10] sm:$0xff]
          %v1358 = vld [vmem:[%s330 + $0x18] sm:$0xff]
          %v1359 = vld [vmem:[%s330 + $0x20] sm:$0xff]
          %v1360 = vld [vmem:[%s330 + $0x28] sm:$0xff]
          %v1361 = vld [vmem:[%s330 + $0x30] sm:$0xff]
          %v1362 = vld [vmem:[%s330 + $0x38] sm:$0xff]
          %v1363 = vld [vmem:[%s330 + $0x40] sm:$0xff]
          %v1364 = vld [vmem:[%s330 + $0x48] sm:$0xff]
          %v1365 = vld [vmem:[%s330 + $0x50] sm:$0xff]
          %v1366 = vld [vmem:[%s330 + $0x58] sm:$0xff]
          %v1367 = vld [vmem:[%s330 + $0x60] sm:$0xff]
          %v1368 = vld [vmem:[%s330 + $0x68] sm:$0xff]
          %v1369 = vld [vmem:[%s330 + $0x70] sm:$0xff]
          %v1370 = vld [vmem:[%s330 + $0x78] sm:$0xff]
          %v1371 = vld [vmem:[%s330 + $0x80] sm:$0xff]
          %v1372 = vld [vmem:[%s330 + $0x88] sm:$0xff]
          %v1373 = vld [vmem:[%s330 + $0x90] sm:$0xff]
          %v1374 = vld [vmem:[%s330 + $0x98] sm:$0xff]
          %v1375 = vld [vmem:[%s330 + $0xa0] sm:$0xff]
          %v1376 = vld [vmem:[%s330 + $0xa8] sm:$0xff]
          %v1377 = vld [vmem:[%s330 + $0xb0] sm:$0xff]
          %v1378 = vld [vmem:[%s330 + $0xb8] sm:$0xff]
          %v1379 = vld [vmem:[%s330 + $0xc0] sm:$0xff]
          %v1380 = vld [vmem:[%s330 + $0xc8] sm:$0xff]
          %v1381 = vld [vmem:[%s330 + $0xd0] sm:$0xff]
          %v1382 = vld [vmem:[%s330 + $0xd8] sm:$0xff]
          %v1383 = vld [vmem:[%s330 + $0xe0] sm:$0xff]
          %v1384 = vld [vmem:[%s330 + $0xe8] sm:$0xff]
          %v1385 = vld [vmem:[%s330 + $0xf0] sm:$0xff]
          %v1386 = vld [vmem:[%s330 + $0xf8] sm:$0xff]
          %v1387 = vld [vmem:[%s335 + $0x1] sm:$0x1]
          %1389 = vset.pattern.permute.xlu0 1
          %1390 = vperm.xlu0 %1389, %v1355
          %v1391 = vpop.permute.xlu0 %1390
          %1394 = vset.pattern.permute.xlu0 1
          %1395 = vperm.xlu0 %1394, %v1356
          %v1396 = vpop.permute.xlu0 %1395
          %1399 = vset.pattern.permute.xlu0 1
          %1400 = vperm.xlu0 %1399, %v1357
          %v1401 = vpop.permute.xlu0 %1400
          %1404 = vset.pattern.permute.xlu0 1
          %1405 = vperm.xlu0 %1404, %v1358
          %v1406 = vpop.permute.xlu0 %1405
          %1409 = vset.pattern.permute.xlu0 1
          %1410 = vperm.xlu0 %1409, %v1359
          %v1411 = vpop.permute.xlu0 %1410
          %1414 = vset.pattern.permute.xlu0 1
          %1415 = vperm.xlu0 %1414, %v1360
          %v1416 = vpop.permute.xlu0 %1415
          %1419 = vset.pattern.permute.xlu0 1
          %1420 = vperm.xlu0 %1419, %v1361
          %v1421 = vpop.permute.xlu0 %1420
          %1424 = vset.pattern.permute.xlu0 1
          %1425 = vperm.xlu0 %1424, %v1362
          %v1426 = vpop.permute.xlu0 %1425
          %1429 = vset.pattern.permute.xlu0 1
          %1430 = vperm.xlu0 %1429, %v1363
          %v1431 = vpop.permute.xlu0 %1430
          %1434 = vset.pattern.permute.xlu0 1
          %1435 = vperm.xlu0 %1434, %v1364
          %v1436 = vpop.permute.xlu0 %1435
          %1439 = vset.pattern.permute.xlu0 1
          %1440 = vperm.xlu0 %1439, %v1365
          %v1441 = vpop.permute.xlu0 %1440
          %1444 = vset.pattern.permute.xlu0 1
          %1445 = vperm.xlu0 %1444, %v1366
          %v1446 = vpop.permute.xlu0 %1445
          %1449 = vset.pattern.permute.xlu0 1
          %1450 = vperm.xlu0 %1449, %v1367
          %v1451 = vpop.permute.xlu0 %1450
          %1454 = vset.pattern.permute.xlu0 1
          %1455 = vperm.xlu0 %1454, %v1368
          %v1456 = vpop.permute.xlu0 %1455
          %1459 = vset.pattern.permute.xlu0 1
          %1460 = vperm.xlu0 %1459, %v1369
          %v1461 = vpop.permute.xlu0 %1460
          %1464 = vset.pattern.permute.xlu0 1
          %1465 = vperm.xlu0 %1464, %v1370
          %v1466 = vpop.permute.xlu0 %1465
          %1469 = vset.pattern.permute.xlu0 1
          %1470 = vperm.xlu0 %1469, %v1371
          %v1471 = vpop.permute.xlu0 %1470
          %1474 = vset.pattern.permute.xlu0 1
          %1475 = vperm.xlu0 %1474, %v1372
          %v1476 = vpop.permute.xlu0 %1475
          %1479 = vset.pattern.permute.xlu0 1
          %1480 = vperm.xlu0 %1479, %v1373
          %v1481 = vpop.permute.xlu0 %1480
          %1484 = vset.pattern.permute.xlu0 1
          %1485 = vperm.xlu0 %1484, %v1374
          %v1486 = vpop.permute.xlu0 %1485
          %1489 = vset.pattern.permute.xlu0 1
          %1490 = vperm.xlu0 %1489, %v1375
          %v1491 = vpop.permute.xlu0 %1490
          %1494 = vset.pattern.permute.xlu0 1
          %1495 = vperm.xlu0 %1494, %v1376
          %v1496 = vpop.permute.xlu0 %1495
          %1499 = vset.pattern.permute.xlu0 1
          %1500 = vperm.xlu0 %1499, %v1377
          %v1501 = vpop.permute.xlu0 %1500
          %1504 = vset.pattern.permute.xlu0 1
          %1505 = vperm.xlu0 %1504, %v1378
          %v1506 = vpop.permute.xlu0 %1505
          %1509 = vset.pattern.permute.xlu0 1
          %1510 = vperm.xlu0 %1509, %v1379
          %v1511 = vpop.permute.xlu0 %1510
          %1514 = vset.pattern.permute.xlu0 1
          %1515 = vperm.xlu0 %1514, %v1380
          %v1516 = vpop.permute.xlu0 %1515
          %1519 = vset.pattern.permute.xlu0 1
          %1520 = vperm.xlu0 %1519, %v1381
          %v1521 = vpop.permute.xlu0 %1520
          %1524 = vset.pattern.permute.xlu0 1
          %1525 = vperm.xlu0 %1524, %v1382
          %v1526 = vpop.permute.xlu0 %1525
          %1529 = vset.pattern.permute.xlu0 1
          %1530 = vperm.xlu0 %1529, %v1383
          %v1531 = vpop.permute.xlu0 %1530
          %1534 = vset.pattern.permute.xlu0 1
          %1535 = vperm.xlu0 %1534, %v1384
          %v1536 = vpop.permute.xlu0 %1535
          %1539 = vset.pattern.permute.xlu0 1
          %1540 = vperm.xlu0 %1539, %v1385
          %v1541 = vpop.permute.xlu0 %1540
          %1544 = vset.pattern.permute.xlu0 1
          %1545 = vperm.xlu0 %1544, %v1386
          %v1546 = vpop.permute.xlu0 %1545
          %v1548 = vperm.slane %v1387, 0
          %v1549 = vadd.f32 %v1391, %v1548
          %v1550 = vadd.f32 %v1396, %v1548
          %v1551 = vadd.f32 %v1401, %v1548
          %v1552 = vadd.f32 %v1406, %v1548
          %v1553 = vadd.f32 %v1411, %v1548
          %v1554 = vadd.f32 %v1416, %v1548
          %v1555 = vadd.f32 %v1421, %v1548
          %v1556 = vadd.f32 %v1426, %v1548
          %v1557 = vadd.f32 %v1431, %v1548
          %v1558 = vadd.f32 %v1436, %v1548
          %v1559 = vadd.f32 %v1441, %v1548
          %v1560 = vadd.f32 %v1446, %v1548
          %v1561 = vadd.f32 %v1451, %v1548
          %v1562 = vadd.f32 %v1456, %v1548
          %v1563 = vadd.f32 %v1461, %v1548
          %v1564 = vadd.f32 %v1466, %v1548
          %v1565 = vadd.f32 %v1471, %v1548
          %v1566 = vadd.f32 %v1476, %v1548
          %v1567 = vadd.f32 %v1481, %v1548
          %v1568 = vadd.f32 %v1486, %v1548
          %v1569 = vadd.f32 %v1491, %v1548
          %v1570 = vadd.f32 %v1496, %v1548
          %v1571 = vadd.f32 %v1501, %v1548
          %v1572 = vadd.f32 %v1506, %v1548
          %v1573 = vadd.f32 %v1511, %v1548
          %v1574 = vadd.f32 %v1516, %v1548
          %v1575 = vadd.f32 %v1521, %v1548
          %v1576 = vadd.f32 %v1526, %v1548
          %v1577 = vadd.f32 %v1531, %v1548
          %v1578 = vadd.f32 %v1536, %v1548
          %v1579 = vadd.f32 %v1541, %v1548
          %v1580 = vadd.f32 %v1546, %v1548
          %v1581 = vmul.f32 %v1549, 0.01
          %v1582 = vmul.f32 %v1550, 0.01
          %v1583 = vmul.f32 %v1551, 0.01
          %v1584 = vmul.f32 %v1552, 0.01
          %v1585 = vmul.f32 %v1553, 0.01
          %v1586 = vmul.f32 %v1554, 0.01
          %v1587 = vmul.f32 %v1555, 0.01
          %v1588 = vmul.f32 %v1556, 0.01
          %v1589 = vmul.f32 %v1557, 0.01
          %v1590 = vmul.f32 %v1558, 0.01
          %v1591 = vmul.f32 %v1559, 0.01
          %v1592 = vmul.f32 %v1560, 0.01
          %v1593 = vmul.f32 %v1561, 0.01
          %v1594 = vmul.f32 %v1562, 0.01
          %v1595 = vmul.f32 %v1563, 0.01
          %v1596 = vmul.f32 %v1564, 0.01
          %v1597 = vmul.f32 %v1565, 0.01
          %v1598 = vmul.f32 %v1566, 0.01
          %v1599 = vmul.f32 %v1567, 0.01
          %v1600 = vmul.f32 %v1568, 0.01
          %v1601 = vmul.f32 %v1569, 0.01
          %v1602 = vmul.f32 %v1570, 0.01
          %v1603 = vmul.f32 %v1571, 0.01
          %v1604 = vmul.f32 %v1572, 0.01
          %v1605 = vmul.f32 %v1573, 0.01
          %v1606 = vmul.f32 %v1574, 0.01
          %v1607 = vmul.f32 %v1575, 0.01
          %v1608 = vmul.f32 %v1576, 0.01
          %v1609 = vmul.f32 %v1577, 0.01
          %v1610 = vmul.f32 %v1578, 0.01
          %v1611 = vmul.f32 %v1579, 0.01
          %v1612 = vmul.f32 %v1580, 0.01
          %v1613 = vmax.f32 %v1549, %v1581
          %v1614 = vmax.f32 %v1550, %v1582
          %v1615 = vmax.f32 %v1551, %v1583
          %v1616 = vmax.f32 %v1552, %v1584
          %v1617 = vmax.f32 %v1553, %v1585
          %v1618 = vmax.f32 %v1554, %v1586
          %v1619 = vmax.f32 %v1555, %v1587
          %v1620 = vmax.f32 %v1556, %v1588
          %v1621 = vmax.f32 %v1557, %v1589
          %v1622 = vmax.f32 %v1558, %v1590
          %v1623 = vmax.f32 %v1559, %v1591
          %v1624 = vmax.f32 %v1560, %v1592
          %v1625 = vmax.f32 %v1561, %v1593
          %v1626 = vmax.f32 %v1562, %v1594
          %v1627 = vmax.f32 %v1563, %v1595
          %v1628 = vmax.f32 %v1564, %v1596
          %v1629 = vmax.f32 %v1565, %v1597
          %v1630 = vmax.f32 %v1566, %v1598
          %v1631 = vmax.f32 %v1567, %v1599
          %v1632 = vmax.f32 %v1568, %v1600
          %v1633 = vmax.f32 %v1569, %v1601
          %v1634 = vmax.f32 %v1570, %v1602
          %v1635 = vmax.f32 %v1571, %v1603
          %v1636 = vmax.f32 %v1572, %v1604
          %v1637 = vmax.f32 %v1573, %v1605
          %v1638 = vmax.f32 %v1574, %v1606
          %v1639 = vmax.f32 %v1575, %v1607
          %v1640 = vmax.f32 %v1576, %v1608
          %v1641 = vmax.f32 %v1577, %v1609
          %v1642 = vmax.f32 %v1578, %v1610
          %v1643 = vmax.f32 %v1579, %v1611
          %v1644 = vmax.f32 %v1580, %v1612
          %v1645 = vsel %vm867, %v1613, -1e+30
          %v1646 = vsel %vm868, %v1614, -1e+30
          %v1647 = vsel %vm869, %v1615, -1e+30
          %v1648 = vsel %vm870, %v1616, -1e+30
          %v1649 = vsel %vm871, %v1617, -1e+30
          %v1650 = vsel %vm872, %v1618, -1e+30
          %v1651 = vsel %vm873, %v1619, -1e+30
          %v1652 = vsel %vm874, %v1620, -1e+30
          %v1653 = vsel %vm875, %v1621, -1e+30
          %v1654 = vsel %vm876, %v1622, -1e+30
          %v1655 = vsel %vm877, %v1623, -1e+30
          %v1656 = vsel %vm878, %v1624, -1e+30
          %v1657 = vsel %vm879, %v1625, -1e+30
          %v1658 = vsel %vm880, %v1626, -1e+30
          %v1659 = vsel %vm881, %v1627, -1e+30
          %v1660 = vsel %vm882, %v1628, -1e+30
          %v1661 = vsel %vm883, %v1629, -1e+30
          %v1662 = vsel %vm884, %v1630, -1e+30
          %v1663 = vsel %vm885, %v1631, -1e+30
          %v1664 = vsel %vm886, %v1632, -1e+30
          %v1665 = vsel %vm887, %v1633, -1e+30
          %v1666 = vsel %vm888, %v1634, -1e+30
          %v1667 = vsel %vm889, %v1635, -1e+30
          %v1668 = vsel %vm890, %v1636, -1e+30
          %v1669 = vsel %vm891, %v1637, -1e+30
          %v1670 = vsel %vm892, %v1638, -1e+30
          %v1671 = vsel %vm893, %v1639, -1e+30
          %v1672 = vsel %vm894, %v1640, -1e+30
          %v1673 = vsel %vm895, %v1641, -1e+30
          %v1674 = vsel %vm896, %v1642, -1e+30
          %v1675 = vsel %vm897, %v1643, -1e+30
          %v1676 = vsel %vm898, %v1644, -1e+30
          %s1677 = scalar_lea.vmem [#allocation2], 1
          %v1678 = vld [vmem:[%s1677] sm:$0x1]
          %v1679 = vmax.f32 %v1645, %v1649
          %v1680 = vmax.f32 %v1646, %v1650
          %v1681 = vmax.f32 %v1647, %v1651
          %v1682 = vmax.f32 %v1648, %v1652
          %v1683 = vmax.f32 %v1679, %v1653
          %v1684 = vmax.f32 %v1680, %v1654
          %v1685 = vmax.f32 %v1681, %v1655
          %v1686 = vmax.f32 %v1682, %v1656
          %v1687 = vmax.f32 %v1683, %v1657
          %v1688 = vmax.f32 %v1684, %v1658
          %v1689 = vmax.f32 %v1685, %v1659
          %v1690 = vmax.f32 %v1686, %v1660
          %v1691 = vmax.f32 %v1687, %v1661
          %v1692 = vmax.f32 %v1688, %v1662
          %v1693 = vmax.f32 %v1689, %v1663
          %v1694 = vmax.f32 %v1690, %v1664
          %v1695 = vmax.f32 %v1691, %v1665
          %v1696 = vmax.f32 %v1692, %v1666
          %v1697 = vmax.f32 %v1693, %v1667
          %v1698 = vmax.f32 %v1694, %v1668
          %v1699 = vmax.f32 %v1695, %v1669
          %v1700 = vmax.f32 %v1696, %v1670
          %v1701 = vmax.f32 %v1697, %v1671
          %v1702 = vmax.f32 %v1698, %v1672
          %v1703 = vmax.f32 %v1699, %v1673
          %v1704 = vmax.f32 %v1700, %v1674
          %v1705 = vmax.f32 %v1701, %v1675
          %v1706 = vmax.f32 %v1702, %v1676
          %v1707 = vmax.f32 %v1703, %v1704
          %v1708 = vmax.f32 %v1705, %v1706
          %v1709 = vmax.f32 %v1707, %v1708
          %v1710 = vrot.slane %v1709, 4
          %v1711 = vmax.f32 %v1709, %v1710
          %v1712 = vrot.slane %v1711, 2
          %v1713 = vmax.f32 %v1711, %v1712
          %v1714 = vrot.slane %v1713, 1
          %v1715 = vmax.f32 %v1713, %v1714
          %v1716 = vmax.f32 %v1678, %v1715
          %v1717 = vsub.f32 %v1678, %v1716
          %v1718 = vmul.f32 %v1717, 1.442695
          %v1719 = vpow.pop %v1718
          %v1721 = vperm.slane %v1716, 0
          %v1723 = vsub.f32 %v1645, %v1721
          %v1724 = vsub.f32 %v1646, %v1721
          %v1725 = vsub.f32 %v1647, %v1721
          %v1726 = vsub.f32 %v1648, %v1721
          %v1727 = vsub.f32 %v1649, %v1721
          %v1728 = vsub.f32 %v1650, %v1721
          %v1729 = vsub.f32 %v1651, %v1721
          %v1730 = vsub.f32 %v1652, %v1721
          %v1731 = vsub.f32 %v1653, %v1721
          %v1732 = vsub.f32 %v1654, %v1721
          %v1733 = vsub.f32 %v1655, %v1721
          %v1734 = vsub.f32 %v1656, %v1721
          %v1735 = vsub.f32 %v1657, %v1721
          %v1736 = vsub.f32 %v1658, %v1721
          %v1737 = vsub.f32 %v1659, %v1721
          %v1738 = vsub.f32 %v1660, %v1721
          %v1739 = vsub.f32 %v1661, %v1721
          %v1740 = vsub.f32 %v1662, %v1721
          %v1741 = vsub.f32 %v1663, %v1721
          %v1742 = vsub.f32 %v1664, %v1721
          %v1743 = vsub.f32 %v1665, %v1721
          %v1744 = vsub.f32 %v1666, %v1721
          %v1745 = vsub.f32 %v1667, %v1721
          %v1746 = vsub.f32 %v1668, %v1721
          %v1747 = vsub.f32 %v1669, %v1721
          %v1748 = vsub.f32 %v1670, %v1721
          %v1749 = vsub.f32 %v1671, %v1721
          %v1750 = vsub.f32 %v1672, %v1721
          %v1751 = vsub.f32 %v1673, %v1721
          %v1752 = vsub.f32 %v1674, %v1721
          %v1753 = vsub.f32 %v1675, %v1721
          %v1754 = vsub.f32 %v1676, %v1721
          %v1755 = vmul.f32 %v1723, 1.442695
          %v1756 = vpow.pop %v1755
          %v1757 = vmul.f32 %v1724, 1.442695
          %v1758 = vpow.pop %v1757
          %v1759 = vmul.f32 %v1725, 1.442695
          %v1760 = vpow.pop %v1759
          %v1761 = vmul.f32 %v1726, 1.442695
          %v1762 = vpow.pop %v1761
          %v1763 = vmul.f32 %v1727, 1.442695
          %v1764 = vpow.pop %v1763
          %v1765 = vmul.f32 %v1728, 1.442695
          %v1766 = vpow.pop %v1765
          %v1767 = vmul.f32 %v1729, 1.442695
          %v1768 = vpow.pop %v1767
          %v1769 = vmul.f32 %v1730, 1.442695
          %v1770 = vpow.pop %v1769
          %v1771 = vmul.f32 %v1731, 1.442695
          %v1772 = vpow.pop %v1771
          %v1773 = vmul.f32 %v1732, 1.442695
          %v1774 = vpow.pop %v1773
          %v1775 = vmul.f32 %v1733, 1.442695
          %v1776 = vpow.pop %v1775
          %v1777 = vmul.f32 %v1734, 1.442695
          %v1778 = vpow.pop %v1777
          %v1779 = vmul.f32 %v1735, 1.442695
          %v1780 = vpow.pop %v1779
          %v1781 = vmul.f32 %v1736, 1.442695
          %v1782 = vpow.pop %v1781
          %v1783 = vmul.f32 %v1737, 1.442695
          %v1784 = vpow.pop %v1783
          %v1785 = vmul.f32 %v1738, 1.442695
          %v1786 = vpow.pop %v1785
          %v1787 = vmul.f32 %v1739, 1.442695
          %v1788 = vpow.pop %v1787
          %v1789 = vmul.f32 %v1740, 1.442695
          %v1790 = vpow.pop %v1789
          %v1791 = vmul.f32 %v1741, 1.442695
          %v1792 = vpow.pop %v1791
          %v1793 = vmul.f32 %v1742, 1.442695
          %v1794 = vpow.pop %v1793
          %v1795 = vmul.f32 %v1743, 1.442695
          %v1796 = vpow.pop %v1795
          %v1797 = vmul.f32 %v1744, 1.442695
          %v1798 = vpow.pop %v1797
          %v1799 = vmul.f32 %v1745, 1.442695
          %v1800 = vpow.pop %v1799
          %v1801 = vmul.f32 %v1746, 1.442695
          %v1802 = vpow.pop %v1801
          %v1803 = vmul.f32 %v1747, 1.442695
          %v1804 = vpow.pop %v1803
          %v1805 = vmul.f32 %v1748, 1.442695
          %v1806 = vpow.pop %v1805
          %v1807 = vmul.f32 %v1749, 1.442695
          %v1808 = vpow.pop %v1807
          %v1809 = vmul.f32 %v1750, 1.442695
          %v1810 = vpow.pop %v1809
          %v1811 = vmul.f32 %v1751, 1.442695
          %v1812 = vpow.pop %v1811
          %v1813 = vmul.f32 %v1752, 1.442695
          %v1814 = vpow.pop %v1813
          %v1815 = vmul.f32 %v1753, 1.442695
          %v1816 = vpow.pop %v1815
          %v1817 = vmul.f32 %v1754, 1.442695
          %v1818 = vpow.pop %v1817
          %v1819 = vsel %vm867, %v1756, 0.0
          %v1820 = vsel %vm868, %v1758, 0.0
          %v1821 = vsel %vm869, %v1760, 0.0
          %v1822 = vsel %vm870, %v1762, 0.0
          %v1823 = vsel %vm871, %v1764, 0.0
          %v1824 = vsel %vm872, %v1766, 0.0
          %v1825 = vsel %vm873, %v1768, 0.0
          %v1826 = vsel %vm874, %v1770, 0.0
          %v1827 = vsel %vm875, %v1772, 0.0
          %v1828 = vsel %vm876, %v1774, 0.0
          %v1829 = vsel %vm877, %v1776, 0.0
          %v1830 = vsel %vm878, %v1778, 0.0
          %v1831 = vsel %vm879, %v1780, 0.0
          %v1832 = vsel %vm880, %v1782, 0.0
          %v1833 = vsel %vm881, %v1784, 0.0
          %v1834 = vsel %vm882, %v1786, 0.0
          %v1835 = vsel %vm883, %v1788, 0.0
          %v1836 = vsel %vm884, %v1790, 0.0
          %v1837 = vsel %vm885, %v1792, 0.0
          %v1838 = vsel %vm886, %v1794, 0.0
          %v1839 = vsel %vm887, %v1796, 0.0
          %v1840 = vsel %vm888, %v1798, 0.0
          %v1841 = vsel %vm889, %v1800, 0.0
          %v1842 = vsel %vm890, %v1802, 0.0
          %v1843 = vsel %vm891, %v1804, 0.0
          %v1844 = vsel %vm892, %v1806, 0.0
          %v1845 = vsel %vm893, %v1808, 0.0
          %v1846 = vsel %vm894, %v1810, 0.0
          %v1847 = vsel %vm895, %v1812, 0.0
          %v1848 = vsel %vm896, %v1814, 0.0
          %v1849 = vsel %vm897, %v1816, 0.0
          %v1850 = vsel %vm898, %v1818, 0.0
          %s1851 = scalar_lea.vmem [#allocation3], 1
          %v1852 = vld [vmem:[%s1851] sm:$0x1]
          %v1853 = vmul.f32 %v1719, %v1852
          %v1854 = vadd.f32 %v1819, %v1820
          %v1855 = vadd.f32 %v1854, %v1821
          %v1856 = vadd.f32 %v1855, %v1822
          %v1857 = vadd.f32 %v1856, %v1823
          %v1858 = vadd.f32 %v1857, %v1824
          %v1859 = vadd.f32 %v1858, %v1825
          %v1860 = vadd.f32 %v1859, %v1826
          %v1861 = vadd.f32 %v1860, %v1827
          %v1862 = vadd.f32 %v1861, %v1828
          %v1863 = vadd.f32 %v1862, %v1829
          %v1864 = vadd.f32 %v1863, %v1830
          %v1865 = vadd.f32 %v1864, %v1831
          %v1866 = vadd.f32 %v1865, %v1832
          %v1867 = vadd.f32 %v1866, %v1833
          %v1868 = vadd.f32 %v1867, %v1834
          %v1869 = vadd.f32 %v1868, %v1835
          %v1870 = vadd.f32 %v1869, %v1836
          %v1871 = vadd.f32 %v1870, %v1837
          %v1872 = vadd.f32 %v1871, %v1838
          %v1873 = vadd.f32 %v1872, %v1839
          %v1874 = vadd.f32 %v1873, %v1840
          %v1875 = vadd.f32 %v1874, %v1841
          %v1876 = vadd.f32 %v1875, %v1842
          %v1877 = vadd.f32 %v1876, %v1843
          %v1878 = vadd.f32 %v1877, %v1844
          %v1879 = vadd.f32 %v1878, %v1845
          %v1880 = vadd.f32 %v1879, %v1846
          %v1881 = vadd.f32 %v1880, %v1847
          %v1882 = vadd.f32 %v1881, %v1848
          %v1883 = vadd.f32 %v1882, %v1849
          %v1884 = vadd.f32 %v1883, %v1850
          %v1885 = vrot.slane %v1884, 4
          %v1886 = vadd.f32 %v1884, %v1885
          %v1887 = vrot.slane %v1886, 2
          %v1888 = vadd.f32 %v1886, %v1887
          %v1889 = vrot.slane %v1888, 1
          %v1890 = vadd.f32 %v1888, %v1889
          %v1891 = vadd.f32 %v1853, %v1890
          %1892 = vst [vmem:[%s1851] sm:$0x1] %v1891
          %1893 = vst [vmem:[%s1677] sm:$0x1] %v1716
          %v1894 = vld [vmem:[%s340] sm:$0xf]
          %v1895 = vld [vmem:[%s340 + $0x4] sm:$0xf]
          %v1896 = vld [vmem:[%s340 + $0x8] sm:$0xf]
          %v1897 = vld [vmem:[%s340 + $0xc] sm:$0xf]
          %v1898 = vld [vmem:[%s340 + $0x10] sm:$0xf]
          %v1899 = vld [vmem:[%s340 + $0x14] sm:$0xf]
          %v1900 = vld [vmem:[%s340 + $0x18] sm:$0xf]
          %v1901 = vld [vmem:[%s340 + $0x1c] sm:$0xf]
          %v1902 = vld [vmem:[%s340 + $0x20] sm:$0xf]
          %v1903 = vld [vmem:[%s340 + $0x24] sm:$0xf]
          %v1904 = vld [vmem:[%s340 + $0x28] sm:$0xf]
          %v1905 = vld [vmem:[%s340 + $0x2c] sm:$0xf]
          %v1906 = vld [vmem:[%s340 + $0x30] sm:$0xf]
          %v1907 = vld [vmem:[%s340 + $0x34] sm:$0xf]
          %v1908 = vld [vmem:[%s340 + $0x38] sm:$0xf]
          %v1909 = vld [vmem:[%s340 + $0x3c] sm:$0xf]
          %v1910 = vld [vmem:[%s340 + $0x40] sm:$0xf]
          %v1911 = vld [vmem:[%s340 + $0x44] sm:$0xf]
          %v1912 = vld [vmem:[%s340 + $0x48] sm:$0xf]
          %v1913 = vld [vmem:[%s340 + $0x4c] sm:$0xf]
          %v1914 = vld [vmem:[%s340 + $0x50] sm:$0xf]
          %v1915 = vld [vmem:[%s340 + $0x54] sm:$0xf]
          %v1916 = vld [vmem:[%s340 + $0x58] sm:$0xf]
          %v1917 = vld [vmem:[%s340 + $0x5c] sm:$0xf]
          %v1918 = vld [vmem:[%s340 + $0x60] sm:$0xf]
          %v1919 = vld [vmem:[%s340 + $0x64] sm:$0xf]
          %v1920 = vld [vmem:[%s340 + $0x68] sm:$0xf]
          %v1921 = vld [vmem:[%s340 + $0x6c] sm:$0xf]
          %v1922 = vld [vmem:[%s340 + $0x70] sm:$0xf]
          %v1923 = vld [vmem:[%s340 + $0x74] sm:$0xf]
          %v1924 = vld [vmem:[%s340 + $0x78] sm:$0xf]
          %v1925 = vld [vmem:[%s340 + $0x7c] sm:$0xf]
          %v1926 = vpack.c.bf16 %v1820, %v1819
          %v1927 = vpack.c.bf16 %v1822, %v1821
          %v1928 = vpack.c.bf16 %v1824, %v1823
          %v1929 = vpack.c.bf16 %v1826, %v1825
          %v1930 = vpack.c.bf16 %v1828, %v1827
          %v1931 = vpack.c.bf16 %v1830, %v1829
          %v1932 = vpack.c.bf16 %v1832, %v1831
          %v1933 = vpack.c.bf16 %v1834, %v1833
          %v1934 = vpack.c.bf16 %v1836, %v1835
          %v1935 = vpack.c.bf16 %v1838, %v1837
          %v1936 = vpack.c.bf16 %v1840, %v1839
          %v1937 = vpack.c.bf16 %v1842, %v1841
          %v1938 = vpack.c.bf16 %v1844, %v1843
          %v1939 = vpack.c.bf16 %v1846, %v1845
          %v1940 = vpack.c.bf16 %v1848, %v1847
          %v1941 = vpack.c.bf16 %v1850, %v1849
          %v1974 = vunpack.c.l.b16 %v1894
          %v1975 = vunpack.c.l.b16 %v1895
          %v1976 = vunpack.c.l.b16 %v1896
          %v1977 = vunpack.c.l.b16 %v1897
          %v1978 = vunpack.c.l.b16 %v1898
          %v1979 = vunpack.c.l.b16 %v1899
          %v1980 = vunpack.c.l.b16 %v1900
          %v1981 = vunpack.c.l.b16 %v1901
          %v1982 = vunpack.c.l.b16 %v1902
          %v1983 = vunpack.c.l.b16 %v1903
          %v1984 = vunpack.c.l.b16 %v1904
          %v1985 = vunpack.c.l.b16 %v1905
          %v1986 = vunpack.c.l.b16 %v1906
          %v1987 = vunpack.c.l.b16 %v1907
          %v1988 = vunpack.c.l.b16 %v1908
          %v1989 = vunpack.c.l.b16 %v1909
          %v1990 = vunpack.c.l.b16 %v1910
          %v1991 = vunpack.c.l.b16 %v1911
          %v1992 = vunpack.c.l.b16 %v1912
          %v1993 = vunpack.c.l.b16 %v1913
          %v1994 = vunpack.c.l.b16 %v1914
          %v1995 = vunpack.c.l.b16 %v1915
          %v1996 = vunpack.c.l.b16 %v1916
          %v1997 = vunpack.c.l.b16 %v1917
          %v1998 = vunpack.c.l.b16 %v1918
          %v1999 = vunpack.c.l.b16 %v1919
          %v2000 = vunpack.c.l.b16 %v1920
          %v2001 = vunpack.c.l.b16 %v1921
          %v2002 = vunpack.c.l.b16 %v1922
          %v2003 = vunpack.c.l.b16 %v1923
          %v2004 = vunpack.c.l.b16 %v1924
          %v2005 = vunpack.c.l.b16 %v1925
          %v2006 = vpack.c.b16 %v1975, %v1974
          %v2007 = vpack.c.b16 %v1977, %v1976
          %v2008 = vpack.c.b16 %v1979, %v1978
          %v2009 = vpack.c.b16 %v1981, %v1980
          %v2010 = vpack.c.b16 %v1983, %v1982
          %v2011 = vpack.c.b16 %v1985, %v1984
          %v2012 = vpack.c.b16 %v1987, %v1986
          %v2013 = vpack.c.b16 %v1989, %v1988
          %v2014 = vpack.c.b16 %v1991, %v1990
          %v2015 = vpack.c.b16 %v1993, %v1992
          %v2016 = vpack.c.b16 %v1995, %v1994
          %v2017 = vpack.c.b16 %v1997, %v1996
          %v2018 = vpack.c.b16 %v1999, %v1998
          %v2019 = vpack.c.b16 %v2001, %v2000
          %v2020 = vpack.c.b16 %v2003, %v2002
          %v2021 = vpack.c.b16 %v2005, %v2004
          %2022 = vrot.lane.b32.xlu0 %v2006, 120
          %v2023 = vpop.permute.xlu0 %2022
          %2024 = vrot.lane.b32.xlu0 %v2007, 120
          %v2025 = vpop.permute.xlu0 %2024
          %2026 = vrot.lane.b32.xlu0 %v2008, 120
          %v2027 = vpop.permute.xlu0 %2026
          %2028 = vrot.lane.b32.xlu0 %v2009, 120
          %v2029 = vpop.permute.xlu0 %2028
          %2030 = vrot.lane.b32.xlu0 %v2010, 120
          %v2031 = vpop.permute.xlu0 %2030
          %2032 = vrot.lane.b32.xlu0 %v2011, 120
          %v2033 = vpop.permute.xlu0 %2032
          %2034 = vrot.lane.b32.xlu0 %v2012, 120
          %v2035 = vpop.permute.xlu0 %2034
          %2036 = vrot.lane.b32.xlu0 %v2013, 120
          %v2037 = vpop.permute.xlu0 %2036
          %2038 = vrot.lane.b32.xlu0 %v2014, 120
          %v2039 = vpop.permute.xlu0 %2038
          %2040 = vrot.lane.b32.xlu0 %v2015, 120
          %v2041 = vpop.permute.xlu0 %2040
          %2042 = vrot.lane.b32.xlu0 %v2016, 120
          %v2043 = vpop.permute.xlu0 %2042
          %2044 = vrot.lane.b32.xlu0 %v2017, 120
          %v2045 = vpop.permute.xlu0 %2044
          %2046 = vrot.lane.b32.xlu0 %v2018, 120
          %v2047 = vpop.permute.xlu0 %2046
          %2048 = vrot.lane.b32.xlu0 %v2019, 120
          %v2049 = vpop.permute.xlu0 %2048
          %2050 = vrot.lane.b32.xlu0 %v2020, 120
          %v2051 = vpop.permute.xlu0 %2050
          %2052 = vrot.lane.b32.xlu0 %v2021, 120
          %v2053 = vpop.permute.xlu0 %2052
          %2070 = vxpose.xlu0.c.b16.start [1/8] %v2023, 128
          %2071 = vxpose.xlu0.c.b16.cont [2/8] %v2025, 128
          %2072 = vxpose.xlu0.c.b16.cont [3/8] %v2027, 128
          %2073 = vxpose.xlu0.c.b16.cont [4/8] %v2029, 128
          %2074 = vxpose.xlu0.c.b16.cont [5/8] %v2031, 128
          %2075 = vxpose.xlu0.c.b16.cont [6/8] %v2033, 128
          %2076 = vxpose.xlu0.c.b16.cont [7/8] %v2035, 128
          %2077 = vxpose.xlu0.c.b16.end [8/8] %v2037, 128
          %v2078 = vpop.trf.xlu0
          %v2079 = vpop.trf.xlu0
          %v2080 = vpop.trf.xlu0
          %v2081 = vpop.trf.xlu0
          %v2082 = vpop.trf.xlu0
          %v2083 = vpop.trf.xlu0
          %v2084 = vpop.trf.xlu0
          %v2085 = vpop.trf.xlu0
          %2086 = vxpose.xlu0.c.b16.start [1/8] %v2039, 128
          %2087 = vxpose.xlu0.c.b16.cont [2/8] %v2041, 128
          %2088 = vxpose.xlu0.c.b16.cont [3/8] %v2043, 128
          %2089 = vxpose.xlu0.c.b16.cont [4/8] %v2045, 128
          %2090 = vxpose.xlu0.c.b16.cont [5/8] %v2047, 128
          %2091 = vxpose.xlu0.c.b16.cont [6/8] %v2049, 128
          %2092 = vxpose.xlu0.c.b16.cont [7/8] %v2051, 128
          %2093 = vxpose.xlu0.c.b16.end [8/8] %v2053, 128
          %v2094 = vpop.trf.xlu0
          %v2095 = vpop.trf.xlu0
          %v2096 = vpop.trf.xlu0
          %v2097 = vpop.trf.xlu0
          %v2098 = vpop.trf.xlu0
          %v2099 = vpop.trf.xlu0
          %v2100 = vpop.trf.xlu0
          %v2101 = vpop.trf.xlu0
          %2102 = vmatpush.bf16.msra.mxu0 %v1933
          %2103 = vmatpush.bf16.msra.mxu0 %v1932
          %2104 = vmatpush.bf16.msra.mxu0 %v1931
          %2105 = vmatpush.bf16.msra.mxu0 %v1930
          %2106 = vmatpush.bf16.msra.mxu0 %v1929
          %2107 = vmatpush.bf16.msra.mxu0 %v1928
          %2108 = vmatpush.bf16.msra.mxu0 %v1927
          %2109 = vmatpush.bf16.msra.mxu0 %v1926
          %2110 = vmatmul.bf16.gmra.mxu0 %v2078
          %v2111 = vpop.f32.mrf.mxu0
          %v2112 = vadd.f32 0.0, %v2111
          %v2113 = vpop.f32.mrf.mxu0
          %2114 = vdwg.mxu0
          %2115 = vmatpush.bf16.msra.mxu0 %v1941
          %2116 = vmatpush.bf16.msra.mxu0 %v1940
          %2117 = vmatpush.bf16.msra.mxu0 %v1939
          %2118 = vmatpush.bf16.msra.mxu0 %v1938
          %2119 = vmatpush.bf16.msra.mxu0 %v1937
          %2120 = vmatpush.bf16.msra.mxu0 %v1936
          %2121 = vmatpush.bf16.msra.mxu0 %v1935
          %2122 = vmatpush.bf16.msra.mxu0 %v1934
          %2123 = vmatmul.bf16.gmra.mxu0 %v2094
          %v2124 = vpop.f32.mrf.mxu0
          %v2125 = vadd.f32 %v2112, %v2124
          %v2126 = vpop.f32.mrf.mxu0
          %2127 = vdwg.mxu0
          %s2128 = scalar_lea.vmem [#allocation4], 8
          %v2129 = vld [vmem:[%s2128] sm:$0xff]
          %v2131 = vperm.slane %v1719, 0
          %v2133 = vmul.f32 %v2129, %v2131
          %v2134 = vadd.f32 %v2133, %v2125
          %2135 = vst [vmem:[%s2128] sm:$0xff] %v2134
        $region82: #{gat_forward.5} parent=69 // pred_fallthru
          _
        // Predicated region
        $region83: #{gat_forward.5} parent=69 // pred_check
          %p2136 = pneg %p345
        $region84: #{gat_forward.5} parent=69 // pred_check_branch
          %2138 = sbr.rel (%p2136) target = $region86
        $region85: #{gat_forward.5} parent=69 // pred_region
          %v2139 = vld [vmem:[#allocation3] sm:$0x1]
          %v2140 = vmax.f32 %v2139, 1e-20
          %v2141 = vrcp.pop %v2140
          %v2142 = vld [vmem:[#allocation4] sm:$0xff]
          %v2144 = vperm.slane %v2141, 0
          %v2146 = vmul.f32 %v2142, %v2144
          %s2147 = scalar_lea.vmem [#allocation3], 1
          %v2148 = vld [vmem:[%s2147] sm:$0x1]
          %v2149 = vmax.f32 %v2148, 1e-20
          %v2150 = vrcp.pop %v2149
          %s2151 = scalar_lea.vmem [#allocation4], 8
          %v2152 = vld [vmem:[%s2151] sm:$0xff]
          %v2154 = vperm.slane %v2150, 0
          %v2156 = vmul.f32 %v2152, %v2154
          %2157 = vst [vmem:[%s325] sm:$0xff] %v2146
          %2158 = vst [vmem:[%s325 + $0x8] sm:$0xff] %v2156
        $region86: #{gat_forward.5} parent=69 // pred_fallthru
          _
        %s2159 = sand.u32 %s150, 1
        %s2160 = sand.u32 %s150, 1
        %s2161 = smul.addr %s2160, 16
        %s2162 = scalar_lea.vmem [#allocation8], %s2161
        // Predicated region
        $region87: #{gat_forward.5} parent=69 // pred_check
          %p2163 = pneg %p160
        $region88: #{gat_forward.5} parent=69 // pred_check_branch
          %2165 = sbr.rel (%p2163) target = $region90
        $region89: #{gat_forward.5} parent=69 // pred_region
          %s2166 = smul.addr %s28, 8
          %s2167 = scalar_lea.vmem %s5, %s2166
          // Predicated region
          $region91: #{gat_forward.5} parent=89 // pred_check
            _
          $region92: #{gat_forward.5} parent=89 // pred_check_branch
            %2169 = sbr.rel (0) target = $region94
          $region93: #{gat_forward.5} parent=89 // pred_region
            // Predicated region
            $region95: #{gat_forward.5} parent=93 // pred_check
              _
            $region96: #{gat_forward.5} parent=93 // pred_check_branch
              %2171 = sbr.rel (0) target = $region98
            $region97: #{gat_forward.5} parent=93 // pred_region
              // Predicated region
              $region110: #{gat_forward.5} parent=97 // pred_check
                _
              $region111: #{gat_forward.5} parent=97 // pred_check_branch
                %2189 = sbr.rel (0) target = $region113
              $region112: #{gat_forward.5} parent=97 // pred_region
                loop: start=0, step=1, limit=1
                $region114: #{gat_forward.5} parent=112 // loop_pre_header
                  _
                $region115: #{gat_forward.5} parent=112 // loop_header
                  %s2191 = sphi 0, %s2195
                  %p2192 = scmp.ge.s32.totalorder %s2191, 1
                  %s2196 = sphi %s2162, %s2162
                  %s2197 = sphi %s2167, %s2167
                $region116: #{gat_forward.5} parent=112 // loop_header_branch
                  %2194 = sbr.rel (%p2192) target = $region120
                $region117: #{gat_forward.5} parent=112 // loop_body
                  %v2198 = vld [vmem:[%s2196] sm:$0xff]
                  %2199 = vst [vmem:[%s2197] sm:$0xff] %v2198
                  %v2200 = vld [vmem:[%s2196 + $0x8] sm:$0xff]
                  %2201 = vst [vmem:[%s2197 + $0x10] sm:$0xff] %v2200
                $region118: #{gat_forward.5} parent=112 // loop_footer
                  %s2195 = sadd.s32 1, %s2191
                $region119: #{gat_forward.5} parent=112 // loop_footer_branch
                  %2190 = sbr.rel target = $region115
                $region120: #{gat_forward.5} parent=112 // loop_exit
                  _
              $region113: #{gat_forward.5} parent=97 // pred_fallthru
                _
              // Predicated region
              $region121: #{gat_forward.5} parent=97 // pred_check
                _
              $region122: #{gat_forward.5} parent=97 // pred_check_branch
                %2203 = sbr.rel target = $region124
              $region123: #{gat_forward.5} parent=97 // pred_region
                _
              $region124: #{gat_forward.5} parent=97 // pred_fallthru
                _
            $region98: #{gat_forward.5} parent=93 // pred_fallthru
              _
            // Predicated region
            $region99: #{gat_forward.5} parent=93 // pred_check
              _
            $region100: #{gat_forward.5} parent=93 // pred_check_branch
              %2173 = sbr.rel target = $region102
            $region101: #{gat_forward.5} parent=93 // pred_region
              %s2175 = ssub.s32 256, 1
              loop: start=0, step=1, limit=1
              $region103: #{gat_forward.5} parent=101 // loop_pre_header
                _
              $region104: #{gat_forward.5} parent=101 // loop_header
                %s2177 = sphi 0, %s2181
                %p2178 = scmp.ge.s32.totalorder %s2177, 1
                %s2182 = sphi %s2162, %s2162
                %s2183 = sphi %s2167, %s2167
              $region105: #{gat_forward.5} parent=101 // loop_header_branch
                %2180 = sbr.rel (%p2178) target = $region109
              $region106: #{gat_forward.5} parent=101 // loop_body
                %v2184 = vld [vmem:[%s2182] sm:%s2175]
                %2185 = vst [vmem:[%s2183] sm:%s2175] %v2184
                %v2186 = vld [vmem:[%s2182 + $0x8] sm:%s2175]
                %2187 = vst [vmem:[%s2183 + $0x10] sm:%s2175] %v2186
              $region107: #{gat_forward.5} parent=101 // loop_footer
                %s2181 = sadd.s32 1, %s2177
              $region108: #{gat_forward.5} parent=101 // loop_footer_branch
                %2176 = sbr.rel target = $region104
              $region109: #{gat_forward.5} parent=101 // loop_exit
                _
            $region102: #{gat_forward.5} parent=93 // pred_fallthru
              _
          $region94: #{gat_forward.5} parent=89 // pred_fallthru
            _
          %2204 = vnop
        $region90: #{gat_forward.5} parent=69 // pred_fallthru
          _
      $region70: #{gat_forward.5} parent=5 // pred_fallthru
        _
      %p2205 = scmp.le.s32.totalorder 2, %s19
      // Predicated region
      $region125: #{gat_forward.5} parent=5 // pred_check
        %p2206 = pneg %p2205
      $region126: #{gat_forward.5} parent=5 // pred_check_branch
        %2208 = sbr.rel (%p2206) target = $region128
      $region127: #{gat_forward.5} parent=5 // pred_region
        %s2209 = ssub.s32 %s19, 2
        // Predicated region
        $region129: #{gat_forward.5} parent=127 // pred_check
          %p2210 = pneg %p166
        $region130: #{gat_forward.5} parent=127 // pred_check_branch
          %2212 = sbr.rel (%p2210) target = $region132
        $region131: #{gat_forward.5} parent=127 // pred_region
          %s2213 = sand.u32 %s151, 1
          %s2214 = sand.u32 %s151, 1
          %s2215 = smul.addr %s2214, 16
          %s2216 = scalar_lea.vmem [#allocation8], %s2215
        $region132: #{gat_forward.5} parent=127 // pred_fallthru
          _
      $region128: #{gat_forward.5} parent=5 // pred_fallthru
        _
    $region6: #{gat_forward.5} parent=1 // loop_footer
      %s23 = sadd.s32 1, %s19
    $region7: #{gat_forward.5} parent=1 // loop_footer_branch
      %18 = sbr.rel target = $region3
    $region8: #{gat_forward.5} parent=1 // loop_exit
      _

// kernel: gat_forward.7
$region0: #{gat_forward.7}
  #allocation0 [shape = 'u32[]', space=smem, size = 0x4, offset = 0x4, fixed_abs, tag = 'smem constant byte address 0x4 - core index']
  #allocation1 [shape = 'u32[72,128]{1,0:T(1,128)}', space=vmem, size = 0x9000, scoped, tag = 'internal scratch']
  #allocation2 [shape = 'f32[1,1,128]{2,1,0:T(1,128)}', space=vmem, size = 0x200, scoped, tag = 'scratch operand']
  #allocation3 [shape = 'f32[1,1,128]{2,1,0:T(1,128)}', space=vmem, size = 0x200, scoped, tag = 'scratch operand']
  #allocation4 [shape = 'f32[1,4,128]{2,1,0:T(4,128)}', space=vmem, size = 0x800, scoped, tag = 'scratch operand']
  #allocation5 [shape = 's32[1]{0}', space=sflag, size = 0x4, scoped, tag = 'scoped memory for gat_forward.7']
  #allocation6 [shape = 'u8[512]{0}', space=smem, size = 0x200, scoped, tag = 'prefetched SMEM operand 0']
  %s0 = inlined_call_operand.vmem [shape: s32[2], index: 0, kind: input, shape index: {}]
  %s1 = inlined_call_operand.vmem [shape: f32[256,1], index: 1, kind: input, shape index: {}]
  %s2 = inlined_call_operand.vmem [shape: f32[1,256], index: 2, kind: input, shape index: {}]
  %s3 = inlined_call_operand.vmem [shape: bf16[256,4], index: 3, kind: input, shape index: {}]
  %s4 = inlined_call_operand.vmem [shape: s8[256,256], index: 4, kind: input, shape index: {}]
  %s5 = inlined_call_operand.vmem [shape: f32[4,256], index: 5, kind: output, shape index: {}]
  %s6 = sld [smem:[#allocation0]]
  $region99: #{gat_forward.7} parent=0
    _
  %s8 = ssub.s32 1, %s6
  %s9 = scalar_select 0, %s8, %s6
  %s11 = sshll.u32 %s0, 4
  %s12 = int_to_ptr.vmem [resolvable:$true] %s11
  %14 = dma.vmem_to_smem %s12, 16, [#allocation6], [#allocation5]
  %16 = dma.done [#allocation5], 16
  %17 = sfence
  $region1: #{gat_forward.7} parent=0
    #allocation7 [shape = 'u8[65536]{0}', space=vmem, size = 0x10000, scoped, tag = 'input window, operand 4']
    loop: start=0, step=1, limit=4
    $region2: #{gat_forward.7} parent=1 // loop_pre_header
      _
    $region3: #{gat_forward.7} parent=1 // loop_header
      %s19 = sphi 0, %s23
      %p20 = scmp.ge.s32.totalorder %s19, 4
      %s26 = sphi 0, %s38
      %s27 = sphi 0, %s34
      %s28 = sphi 0, %s26
      %s29 = sphi 0, %s27
      %s30 = sphi 0, %s28
      %s31 = sphi 0, %s29
      %s41 = sphi 0, %s43
      %s44 = sphi 0, %s41
      %s45 = sphi 0, %s44
      %s61 = sphi 0, %s45
      %s67 = sphi 0, %s69
      %s70 = sphi 0, %s67
      %s71 = sphi 0, %s70
      %s87 = sphi 0, %s71
      %s93 = sphi 0, %s95
      %s96 = sphi 0, %s93
      %s97 = sphi 0, %s96
      %s113 = sphi 0, %s97
      %s121 = sphi 0, %s123
      %s124 = sphi 0, %s121
      %s125 = sphi 0, %s124
      %s141 = sphi 0, %s125
      %s147 = sphi 0, %s149
      %s150 = sphi 0, %s147
      %s151 = sphi 0, %s150
      %s167 = sphi 0, %s151
    $region4: #{gat_forward.7} parent=1 // loop_header_branch
      %22 = sbr.rel (%p20) target = $region8
    $region5: #{gat_forward.7} parent=1 // loop_body
      %s24 = ssub.s32 %s19, 1
      %s25 = ssub.s32 %s19, 2
      %s32 = sadd.s32 1, %s27
      %p33 = scmp.ge.s32.totalorder %s32, 1
      %s34 = scalar_select %p33, 0, %s32
      %s35 = sadd.s32 1, %s26
      %s36 = scalar_select %p33, %s35, %s26
      %p37 = scmp.ge.s32.totalorder %s36, 2
      %s38 = scalar_select %p37, 0, %s36
      %s39 = ssub.s32 %s27, %s34
      %p40 = scmp.eq.s32.totalorder %s39, 0
      %s42 = sadd.s32 %s41, 1
      %s43 = scalar_select %p40, %s41, %s42
      %p46 = pneg %p40
      %p47 = scmp.eq.s32.totalorder %s19, 1
      %p48 = por %p46, %p47
      %p49 = scmp.ne.s32.totalorder %s41, %s44
      %p50 = scmp.eq.s32.totalorder %s19, 0
      %p51 = por %p49, %p50
      %p52 = scmp.ne.s32.totalorder %s41, %s44
      %p53 = scmp.eq.s32.totalorder %s24, 1
      %p54 = por %p52, %p53
      %p55 = scmp.ne.s32.totalorder %s44, %s45
      %p56 = scmp.eq.s32.totalorder %s24, 0
      %p57 = por %p55, %p56
      %p58 = scmp.ne.s32.totalorder %s44, %s45
      %p59 = scmp.eq.s32.totalorder %s25, 1
      %p60 = por %p58, %p59
      %p62 = scmp.ne.s32.totalorder %s45, %s61
      %p63 = scmp.eq.s32.totalorder %s25, 0
      %p64 = por %p62, %p63
      %s65 = ssub.s32 %s26, %s38
      %p66 = scmp.eq.s32.totalorder %s65, 0
      %s68 = sadd.s32 %s67, 1
      %s69 = scalar_select %p66, %s67, %s68
      %p72 = pneg %p66
      %p73 = scmp.eq.s32.totalorder %s19, 1
      %p74 = por %p72, %p73
      %p75 = scmp.ne.s32.totalorder %s67, %s70
      %p76 = scmp.eq.s32.totalorder %s19, 0
      %p77 = por %p75, %p76
      %p78 = scmp.ne.s32.totalorder %s67, %s70
      %p79 = scmp.eq.s32.totalorder %s24, 1
      %p80 = por %p78, %p79
      %p81 = scmp.ne.s32.totalorder %s70, %s71
      %p82 = scmp.eq.s32.totalorder %s24, 0
      %p83 = por %p81, %p82
      %p84 = scmp.ne.s32.totalorder %s70, %s71
      %p85 = scmp.eq.s32.totalorder %s25, 1
      %p86 = por %p84, %p85
      %p88 = scmp.ne.s32.totalorder %s71, %s87
      %p89 = scmp.eq.s32.totalorder %s25, 0
      %p90 = por %p88, %p89
      %s91 = ssub.s32 %s27, %s34
      %p92 = scmp.eq.s32.totalorder %s91, 0
      %s94 = sadd.s32 %s93, 1
      %s95 = scalar_select %p92, %s93, %s94
      %p98 = pneg %p92
      %p99 = scmp.eq.s32.totalorder %s19, 1
      %p100 = por %p98, %p99
      %p101 = scmp.ne.s32.totalorder %s93, %s96
      %p102 = scmp.eq.s32.totalorder %s19, 0
      %p103 = por %p101, %p102
      %p104 = scmp.ne.s32.totalorder %s93, %s96
      %p105 = scmp.eq.s32.totalorder %s24, 1
      %p106 = por %p104, %p105
      %p107 = scmp.ne.s32.totalorder %s96, %s97
      %p108 = scmp.eq.s32.totalorder %s24, 0
      %p109 = por %p107, %p108
      %p110 = scmp.ne.s32.totalorder %s96, %s97
      %p111 = scmp.eq.s32.totalorder %s25, 1
      %p112 = por %p110, %p111
      %p114 = scmp.ne.s32.totalorder %s97, %s113
      %p115 = scmp.eq.s32.totalorder %s25, 0
      %p116 = por %p114, %p115
      %s117 = ssub.s32 %s27, %s34
      %s118 = ssub.s32 %s26, %s38
      %s119 = sor.u32 %s117, %s118
      %p120 = scmp.eq.s32.totalorder %s119, 0
      %s122 = sadd.s32 %s121, 1
      %s123 = scalar_select %p120, %s121, %s122
      %p126 = pneg %p120
      %p127 = scmp.eq.s32.totalorder %s19, 1
      %p128 = por %p126, %p127
      %p129 = scmp.ne.s32.totalorder %s121, %s124
      %p130 = scmp.eq.s32.totalorder %s19, 0
      %p131 = por %p129, %p130
      %p132 = scmp.ne.s32.totalorder %s121, %s124
      %p133 = scmp.eq.s32.totalorder %s24, 1
      %p134 = por %p132, %p133
      %p135 = scmp.ne.s32.totalorder %s124, %s125
      %p136 = scmp.eq.s32.totalorder %s24, 0
      %p137 = por %p135, %p136
      %p138 = scmp.ne.s32.totalorder %s124, %s125
      %p139 = scmp.eq.s32.totalorder %s25, 1
      %p140 = por %p138, %p139
      %p142 = scmp.ne.s32.totalorder %s125, %s141
      %p143 = scmp.eq.s32.totalorder %s25, 0
      %p144 = por %p142, %p143
      %s145 = ssub.s32 %s26, %s38
      %p146 = scmp.eq.s32.totalorder %s145, 0
      %s148 = sadd.s32 %s147, 1
      %s149 = scalar_select %p146, %s147, %s148
      %p152 = pneg %p146
      %p153 = scmp.eq.s32.totalorder %s19, 1
      %p154 = por %p152, %p153
      %p155 = scmp.ne.s32.totalorder %s147, %s150
      %p156 = scmp.eq.s32.totalorder %s19, 0
      %p157 = por %p155, %p156
      %p158 = scmp.ne.s32.totalorder %s147, %s150
      %p159 = scmp.eq.s32.totalorder %s24, 1
      %p160 = por %p158, %p159
      %p161 = scmp.ne.s32.totalorder %s150, %s151
      %p162 = scmp.eq.s32.totalorder %s24, 0
      %p163 = por %p161, %p162
      %p164 = scmp.ne.s32.totalorder %s150, %s151
      %p165 = scmp.eq.s32.totalorder %s25, 1
      %p166 = por %p164, %p165
      %p168 = scmp.ne.s32.totalorder %s151, %s167
      %p169 = scmp.eq.s32.totalorder %s25, 0
      %p170 = por %p168, %p169
      %p171 = scmp.le.s32.totalorder 1, %s19
      %p172 = scmp.lt.s32.totalorder %s19, 3
      %p173 = pnand %p171, %p172
      %p174 = pneg %p173
      // Predicated region
      $region9: #{gat_forward.7} parent=5 // pred_check
        _
      $region10: #{gat_forward.7} parent=5 // pred_check_branch
        %176 = sbr.rel (%p173) target = $region12
      $region11: #{gat_forward.7} parent=5 // pred_region
        %s177 = ssub.s32 %s19, 1
        // Predicated region
        $region13: #{gat_forward.7} parent=11 // pred_check
          %p178 = pneg %p57
        $region14: #{gat_forward.7} parent=11 // pred_check_branch
          %180 = sbr.rel (%p178) target = $region16
        $region15: #{gat_forward.7} parent=11 // pred_region
          %s181 = smul.u32 32, %s29
          %p182 = scmp.lt.s32.totalorder %s181, 31
          %s183 = scalar_select %p182, %s181, 31
          %s184 = smul.addr %s183, 8
          %s185 = scalar_lea.vmem %s1, %s184
          %s186 = smul.u32 32, %s29
        $region16: #{gat_forward.7} parent=11 // pred_fallthru
          _
        // Predicated region
        $region17: #{gat_forward.7} parent=11 // pred_check
          %p187 = pneg %p109
        $region18: #{gat_forward.7} parent=11 // pred_check_branch
          %189 = sbr.rel (%p187) target = $region20
        $region19: #{gat_forward.7} parent=11 // pred_region
          %s190 = smul.u32 32, %s29
          %p191 = scmp.lt.s32.totalorder %s190, 31
          %s192 = scalar_select %p191, %s190, 31
          %s193 = smul.addr %s192, 4
          %s194 = scalar_lea.vmem %s3, %s193
          %s195 = smul.u32 32, %s29
        $region20: #{gat_forward.7} parent=11 // pred_fallthru
          _
      $region12: #{gat_forward.7} parent=5 // pred_fallthru
        _
      %p196 = scmp.lt.s32.totalorder %s19, 2
      // Predicated region
      $region21: #{gat_forward.7} parent=5 // pred_check
        %p197 = pneg %p196
      $region22: #{gat_forward.7} parent=5 // pred_check_branch
        %199 = sbr.rel (%p197) target = $region24
      $region23: #{gat_forward.7} parent=5 // pred_region
        // Predicated region
        $region25: #{gat_forward.7} parent=23 // pred_check
          %p200 = pneg %p77
        $region26: #{gat_forward.7} parent=23 // pred_check_branch
          %202 = sbr.rel (%p200) target = $region28
        $region27: #{gat_forward.7} parent=23 // pred_region
          %p203 = scmp.lt.s32.totalorder %s26, 1
          %s204 = scalar_select %p203, %s26, 1
          %s205 = scalar_lea.vmem %s2, %s204
        $region28: #{gat_forward.7} parent=23 // pred_fallthru
          _
        // Predicated region
        $region29: #{gat_forward.7} parent=23 // pred_check
          %p206 = pneg %p131
        $region30: #{gat_forward.7} parent=23 // pred_check_branch
          %208 = sbr.rel (%p206) target = $region32
        $region31: #{gat_forward.7} parent=23 // pred_region
          %s209 = sand.u32 %s121, 1
          %s210 = sand.u32 %s121, 1
          %s211 = smul.addr %s210, 64
          %s212 = scalar_lea.vmem [#allocation7], %s211
          %s213 = smul.u32 8, %s27
          %s214 = smul.addr %s213, 2
          %s215 = sadd.s32 %s26, %s214
          %s216 = smul.addr %s215, 8
          %s217 = scalar_lea.vmem %s4, %s216
          // Predicated region
          $region33: #{gat_forward.7} parent=31 // pred_check
            _
          $region34: #{gat_forward.7} parent=31 // pred_check_branch
            %219 = sbr.rel (0) target = $region36
          $region35: #{gat_forward.7} parent=31 // pred_region
            // Predicated region
            $region37: #{gat_forward.7} parent=35 // pred_check
              _
            $region38: #{gat_forward.7} parent=35 // pred_check_branch
              %221 = sbr.rel (0) target = $region40
            $region39: #{gat_forward.7} parent=35 // pred_region
              // Predicated region
              $region52: #{gat_forward.7} parent=39 // pred_check
                _
              $region53: #{gat_forward.7} parent=39 // pred_check_branch
                %251 = sbr.rel (0) target = $region55
              $region54: #{gat_forward.7} parent=39 // pred_region
                loop: start=0, step=1, limit=1
                $region56: #{gat_forward.7} parent=54 // loop_pre_header
                  _
                $region57: #{gat_forward.7} parent=54 // loop_header
                  %s253 = sphi 0, %s257
                  %p254 = scmp.ge.s32.totalorder %s253, 1
                  %s258 = sphi %s217, %s217
                  %s259 = sphi %s212, %s212
                $region58: #{gat_forward.7} parent=54 // loop_header_branch
                  %256 = sbr.rel (%p254) target = $region62
                $region59: #{gat_forward.7} parent=54 // loop_body
                  %v260 = vld [vmem:[%s258] sm:$0xff]
                  %261 = vst [vmem:[%s259] sm:$0xff] %v260
                  %v262 = vld [vmem:[%s258 + $0x10] sm:$0xff]
                  %263 = vst [vmem:[%s259 + $0x8] sm:$0xff] %v262
                  %v264 = vld [vmem:[%s258 + $0x20] sm:$0xff]
                  %265 = vst [vmem:[%s259 + $0x10] sm:$0xff] %v264
                  %v266 = vld [vmem:[%s258 + $0x30] sm:$0xff]
                  %267 = vst [vmem:[%s259 + $0x18] sm:$0xff] %v266
                  %v268 = vld [vmem:[%s258 + $0x40] sm:$0xff]
                  %269 = vst [vmem:[%s259 + $0x20] sm:$0xff] %v268
                  %v270 = vld [vmem:[%s258 + $0x50] sm:$0xff]
                  %271 = vst [vmem:[%s259 + $0x28] sm:$0xff] %v270
                  %v272 = vld [vmem:[%s258 + $0x60] sm:$0xff]
                  %273 = vst [vmem:[%s259 + $0x30] sm:$0xff] %v272
                  %v274 = vld [vmem:[%s258 + $0x70] sm:$0xff]
                  %275 = vst [vmem:[%s259 + $0x38] sm:$0xff] %v274
                $region60: #{gat_forward.7} parent=54 // loop_footer
                  %s257 = sadd.s32 1, %s253
                $region61: #{gat_forward.7} parent=54 // loop_footer_branch
                  %252 = sbr.rel target = $region57
                $region62: #{gat_forward.7} parent=54 // loop_exit
                  _
              $region55: #{gat_forward.7} parent=39 // pred_fallthru
                _
              // Predicated region
              $region63: #{gat_forward.7} parent=39 // pred_check
                _
              $region64: #{gat_forward.7} parent=39 // pred_check_branch
                %277 = sbr.rel target = $region66
              $region65: #{gat_forward.7} parent=39 // pred_region
                _
              $region66: #{gat_forward.7} parent=39 // pred_fallthru
                _
            $region40: #{gat_forward.7} parent=35 // pred_fallthru
              _
            // Predicated region
            $region41: #{gat_forward.7} parent=35 // pred_check
              _
            $region42: #{gat_forward.7} parent=35 // pred_check_branch
              %223 = sbr.rel target = $region44
            $region43: #{gat_forward.7} parent=35 // pred_region
              %s225 = ssub.s32 256, 1
              loop: start=0, step=1, limit=1
              $region45: #{gat_forward.7} parent=43 // loop_pre_header
                _
              $region46: #{gat_forward.7} parent=43 // loop_header
                %s227 = sphi 0, %s231
                %p228 = scmp.ge.s32.totalorder %s227, 1
                %s232 = sphi %s217, %s217
                %s233 = sphi %s212, %s212
              $region47: #{gat_forward.7} parent=43 // loop_header_branch
                %230 = sbr.rel (%p228) target = $region51
              $region48: #{gat_forward.7} parent=43 // loop_body
                %v234 = vld [vmem:[%s232] sm:%s225]
                %235 = vst [vmem:[%s233] sm:%s225] %v234
                %v236 = vld [vmem:[%s232 + $0x10] sm:%s225]
                %237 = vst [vmem:[%s233 + $0x8] sm:%s225] %v236
                %v238 = vld [vmem:[%s232 + $0x20] sm:%s225]
                %239 = vst [vmem:[%s233 + $0x10] sm:%s225] %v238
                %v240 = vld [vmem:[%s232 + $0x30] sm:%s225]
                %241 = vst [vmem:[%s233 + $0x18] sm:%s225] %v240
                %v242 = vld [vmem:[%s232 + $0x40] sm:%s225]
                %243 = vst [vmem:[%s233 + $0x20] sm:%s225] %v242
                %v244 = vld [vmem:[%s232 + $0x50] sm:%s225]
                %245 = vst [vmem:[%s233 + $0x28] sm:%s225] %v244
                %v246 = vld [vmem:[%s232 + $0x60] sm:%s225]
                %247 = vst [vmem:[%s233 + $0x30] sm:%s225] %v246
                %v248 = vld [vmem:[%s232 + $0x70] sm:%s225]
                %249 = vst [vmem:[%s233 + $0x38] sm:%s225] %v248
              $region49: #{gat_forward.7} parent=43 // loop_footer
                %s231 = sadd.s32 1, %s227
              $region50: #{gat_forward.7} parent=43 // loop_footer_branch
                %226 = sbr.rel target = $region46
              $region51: #{gat_forward.7} parent=43 // loop_exit
                _
            $region44: #{gat_forward.7} parent=35 // pred_fallthru
              _
          $region36: #{gat_forward.7} parent=31 // pred_fallthru
            _
          %278 = vnop
        $region32: #{gat_forward.7} parent=23 // pred_fallthru
          _
      $region24: #{gat_forward.7} parent=5 // pred_fallthru
        _
      %p279 = scmp.le.s32.totalorder 1, %s19
      %p280 = scmp.lt.s32.totalorder %s19, 3
      %p281 = pnand %p279, %p280
      %p282 = pneg %p281
      // Predicated region
      $region67: #{gat_forward.7} parent=5 // pred_check
        _
      $region68: #{gat_forward.7} parent=5 // pred_check_branch
        %284 = sbr.rel (%p281) target = $region70
      $region69: #{gat_forward.7} parent=5 // pred_region
        %s285 = ssub.s32 %s19, 1
        %s286 = sand.u32 %s124, 1
        %s287 = sand.u32 %s124, 1
        %s288 = smul.addr %s287, 64
        %s289 = scalar_lea.vmem [#allocation7], %s288
        // Predicated region
        $region71: #{gat_forward.7} parent=69 // pred_check
          %p290 = pneg %p137
        $region72: #{gat_forward.7} parent=69 // pred_check_branch
          %292 = sbr.rel (%p290) target = $region74
        $region73: #{gat_forward.7} parent=69 // pred_region
          _
        $region74: #{gat_forward.7} parent=69 // pred_fallthru
          _
        %s293 = smul.u32 32, %s29
        %p294 = scmp.lt.s32.totalorder %s293, 31
        %s295 = scalar_select %p294, %s293, 31
        %s296 = smul.addr %s295, 8
        %s297 = scalar_lea.vmem %s1, %s296
        %p298 = pneg %p57
        %p299 = pneg %p54
        %p300 = scmp.lt.s32.totalorder %s28, 1
        %s301 = scalar_select %p300, %s28, 1
        %s302 = scalar_lea.vmem %s2, %s301
        %p303 = pneg %p83
        %p304 = pneg %p80
        %s305 = smul.u32 32, %s29
        %p306 = scmp.lt.s32.totalorder %s305, 31
        %s307 = scalar_select %p306, %s305, 31
        %s308 = smul.addr %s307, 4
        %s309 = scalar_lea.vmem %s3, %s308
        %p310 = pneg %p109
        %p311 = pneg %p106
        %s312 = sand.u32 %s124, 1
        %s313 = sand.u32 %s124, 1
        %s314 = smul.addr %s313, 64
        %s315 = scalar_lea.vmem [#allocation7], %s314
        %p316 = pneg %p137
        %p317 = pneg %p134
        %p318 = pneg %p163
        %p319 = pneg %p160
        %p320 = scmp.lt.s32.totalorder %s28, 1
        %s321 = scalar_select %p320, %s28, 1
        %s322 = smul.addr %s321, 4
        %s323 = scalar_lea.vmem %s5, %s322
        %s324 = smul.u32 32, %s29
        %p325 = scmp.lt.s32.totalorder %s324, 31
        %s326 = scalar_select %p325, %s324, 31
        %s327 = smul.addr %s326, 8
        %s328 = scalar_lea.vmem %s1, %s327
        %s329 = smul.u32 32, %s29
        %p330 = scmp.lt.s32.totalorder %s28, 1
        %s331 = scalar_select %p330, %s28, 1
        %s332 = scalar_lea.vmem %s2, %s331
        %s333 = smul.u32 32, %s29
        %p334 = scmp.lt.s32.totalorder %s333, 31
        %s335 = scalar_select %p334, %s333, 31
        %s336 = smul.addr %s335, 4
        %s337 = scalar_lea.vmem %s3, %s336
        %s338 = smul.u32 32, %s29
        %s339 = smul.u32 8, %s29
        %p340 = scmp.lt.s32.totalorder %s28, 1
        %s341 = scalar_select %p340, %s28, 1
        %s342 = smul.addr %s341, 4
        %s343 = scalar_lea.vmem %s5, %s342
        %p346 = scmp.eq.s32.totalorder %s29, 0
        // Predicated region
        $region75: #{gat_forward.7} parent=69 // pred_check
          %p347 = pneg %p346
        $region76: #{gat_forward.7} parent=69 // pred_check_branch
          %349 = sbr.rel (%p347) target = $region78
        $region77: #{gat_forward.7} parent=69 // pred_region
          %350 = vst [vmem:[#allocation2] sm:$0x1] -1e+30
          %351 = vst [vmem:[#allocation3] sm:$0x1] 0.0
          %352 = vst [vmem:[#allocation4] sm:$0xf] 0.0
        $region78: #{gat_forward.7} parent=69 // pred_fallthru
          _
        %s353 = sadd.s32 %s28, %s29
        %s354 = sld [smem:[#allocation6 + %s353]]
        %p355 = scmp.gt.s32.totalorder %s354, 0
        // Predicated region
        $region79: #{gat_forward.7} parent=69 // pred_check
          %p356 = pneg %p355
        $region80: #{gat_forward.7} parent=69 // pred_check_branch
          %358 = sbr.rel (%p356) target = $region82
        $region81: #{gat_forward.7} parent=69 // pred_region
          %v359 = vld [vmem:[%s289] sm:$0xff]
          %v360 = vld [vmem:[%s289 + $0x8] sm:$0xff]
          %v361 = vld [vmem:[%s289 + $0x10] sm:$0xff]
          %v362 = vld [vmem:[%s289 + $0x18] sm:$0xff]
          %v363 = vld [vmem:[%s289 + $0x20] sm:$0xff]
          %v364 = vld [vmem:[%s289 + $0x28] sm:$0xff]
          %v365 = vld [vmem:[%s289 + $0x30] sm:$0xff]
          %v366 = vld [vmem:[%s289 + $0x38] sm:$0xff]
          %vm367 = vnez %v359
          %vm368 = vnez %v360
          %vm369 = vnez %v361
          %vm370 = vnez %v362
          %vm371 = vnez %v363
          %vm372 = vnez %v364
          %vm373 = vnez %v365
          %vm374 = vnez %v366
          %v375 = vld [vmem:[%s328] sm:$0xff]
          %v376 = vld [vmem:[%s328 + $0x8] sm:$0xff]
          %v377 = vld [vmem:[%s328 + $0x10] sm:$0xff]
          %v378 = vld [vmem:[%s328 + $0x18] sm:$0xff]
          %v379 = vld [vmem:[%s328 + $0x20] sm:$0xff]
          %v380 = vld [vmem:[%s328 + $0x28] sm:$0xff]
          %v381 = vld [vmem:[%s328 + $0x30] sm:$0xff]
          %v382 = vld [vmem:[%s328 + $0x38] sm:$0xff]
          %v383 = vld [vmem:[%s328 + $0x40] sm:$0xff]
          %v384 = vld [vmem:[%s328 + $0x48] sm:$0xff]
          %v385 = vld [vmem:[%s328 + $0x50] sm:$0xff]
          %v386 = vld [vmem:[%s328 + $0x58] sm:$0xff]
          %v387 = vld [vmem:[%s328 + $0x60] sm:$0xff]
          %v388 = vld [vmem:[%s328 + $0x68] sm:$0xff]
          %v389 = vld [vmem:[%s328 + $0x70] sm:$0xff]
          %v390 = vld [vmem:[%s328 + $0x78] sm:$0xff]
          %v391 = vld [vmem:[%s328 + $0x80] sm:$0xff]
          %v392 = vld [vmem:[%s328 + $0x88] sm:$0xff]
          %v393 = vld [vmem:[%s328 + $0x90] sm:$0xff]
          %v394 = vld [vmem:[%s328 + $0x98] sm:$0xff]
          %v395 = vld [vmem:[%s328 + $0xa0] sm:$0xff]
          %v396 = vld [vmem:[%s328 + $0xa8] sm:$0xff]
          %v397 = vld [vmem:[%s328 + $0xb0] sm:$0xff]
          %v398 = vld [vmem:[%s328 + $0xb8] sm:$0xff]
          %v399 = vld [vmem:[%s328 + $0xc0] sm:$0xff]
          %v400 = vld [vmem:[%s328 + $0xc8] sm:$0xff]
          %v401 = vld [vmem:[%s328 + $0xd0] sm:$0xff]
          %v402 = vld [vmem:[%s328 + $0xd8] sm:$0xff]
          %v403 = vld [vmem:[%s328 + $0xe0] sm:$0xff]
          %v404 = vld [vmem:[%s328 + $0xe8] sm:$0xff]
          %v405 = vld [vmem:[%s328 + $0xf0] sm:$0xff]
          %v406 = vld [vmem:[%s328 + $0xf8] sm:$0xff]
          %v407 = vld [vmem:[%s332] sm:$0x1]
          %409 = vset.pattern.permute.xlu0 0
          %410 = vperm.xlu0 %409, %v375
          %v411 = vpop.permute.xlu0 %410
          %414 = vset.pattern.permute.xlu0 0
          %415 = vperm.xlu0 %414, %v376
          %v416 = vpop.permute.xlu0 %415
          %419 = vset.pattern.permute.xlu0 0
          %420 = vperm.xlu0 %419, %v377
          %v421 = vpop.permute.xlu0 %420
          %424 = vset.pattern.permute.xlu0 0
          %425 = vperm.xlu0 %424, %v378
          %v426 = vpop.permute.xlu0 %425
          %429 = vset.pattern.permute.xlu0 0
          %430 = vperm.xlu0 %429, %v379
          %v431 = vpop.permute.xlu0 %430
          %434 = vset.pattern.permute.xlu0 0
          %435 = vperm.xlu0 %434, %v380
          %v436 = vpop.permute.xlu0 %435
          %439 = vset.pattern.permute.xlu0 0
          %440 = vperm.xlu0 %439, %v381
          %v441 = vpop.permute.xlu0 %440
          %444 = vset.pattern.permute.xlu0 0
          %445 = vperm.xlu0 %444, %v382
          %v446 = vpop.permute.xlu0 %445
          %449 = vset.pattern.permute.xlu0 0
          %450 = vperm.xlu0 %449, %v383
          %v451 = vpop.permute.xlu0 %450
          %454 = vset.pattern.permute.xlu0 0
          %455 = vperm.xlu0 %454, %v384
          %v456 = vpop.permute.xlu0 %455
          %459 = vset.pattern.permute.xlu0 0
          %460 = vperm.xlu0 %459, %v385
          %v461 = vpop.permute.xlu0 %460
          %464 = vset.pattern.permute.xlu0 0
          %465 = vperm.xlu0 %464, %v386
          %v466 = vpop.permute.xlu0 %465
          %469 = vset.pattern.permute.xlu0 0
          %470 = vperm.xlu0 %469, %v387
          %v471 = vpop.permute.xlu0 %470
          %474 = vset.pattern.permute.xlu0 0
          %475 = vperm.xlu0 %474, %v388
          %v476 = vpop.permute.xlu0 %475
          %479 = vset.pattern.permute.xlu0 0
          %480 = vperm.xlu0 %479, %v389
          %v481 = vpop.permute.xlu0 %480
          %484 = vset.pattern.permute.xlu0 0
          %485 = vperm.xlu0 %484, %v390
          %v486 = vpop.permute.xlu0 %485
          %489 = vset.pattern.permute.xlu0 0
          %490 = vperm.xlu0 %489, %v391
          %v491 = vpop.permute.xlu0 %490
          %494 = vset.pattern.permute.xlu0 0
          %495 = vperm.xlu0 %494, %v392
          %v496 = vpop.permute.xlu0 %495
          %499 = vset.pattern.permute.xlu0 0
          %500 = vperm.xlu0 %499, %v393
          %v501 = vpop.permute.xlu0 %500
          %504 = vset.pattern.permute.xlu0 0
          %505 = vperm.xlu0 %504, %v394
          %v506 = vpop.permute.xlu0 %505
          %509 = vset.pattern.permute.xlu0 0
          %510 = vperm.xlu0 %509, %v395
          %v511 = vpop.permute.xlu0 %510
          %514 = vset.pattern.permute.xlu0 0
          %515 = vperm.xlu0 %514, %v396
          %v516 = vpop.permute.xlu0 %515
          %519 = vset.pattern.permute.xlu0 0
          %520 = vperm.xlu0 %519, %v397
          %v521 = vpop.permute.xlu0 %520
          %524 = vset.pattern.permute.xlu0 0
          %525 = vperm.xlu0 %524, %v398
          %v526 = vpop.permute.xlu0 %525
          %529 = vset.pattern.permute.xlu0 0
          %530 = vperm.xlu0 %529, %v399
          %v531 = vpop.permute.xlu0 %530
          %534 = vset.pattern.permute.xlu0 0
          %535 = vperm.xlu0 %534, %v400
          %v536 = vpop.permute.xlu0 %535
          %539 = vset.pattern.permute.xlu0 0
          %540 = vperm.xlu0 %539, %v401
          %v541 = vpop.permute.xlu0 %540
          %544 = vset.pattern.permute.xlu0 0
          %545 = vperm.xlu0 %544, %v402
          %v546 = vpop.permute.xlu0 %545
          %549 = vset.pattern.permute.xlu0 0
          %550 = vperm.xlu0 %549, %v403
          %v551 = vpop.permute.xlu0 %550
          %554 = vset.pattern.permute.xlu0 0
          %555 = vperm.xlu0 %554, %v404
          %v556 = vpop.permute.xlu0 %555
          %559 = vset.pattern.permute.xlu0 0
          %560 = vperm.xlu0 %559, %v405
          %v561 = vpop.permute.xlu0 %560
          %564 = vset.pattern.permute.xlu0 0
          %565 = vperm.xlu0 %564, %v406
          %v566 = vpop.permute.xlu0 %565
          %v569 = vperm.slane %v407, 0
          %v571 = vadd.f32 %v411, %v569
          %v572 = vadd.f32 %v416, %v569
          %v573 = vadd.f32 %v421, %v569
          %v574 = vadd.f32 %v426, %v569
          %v575 = vadd.f32 %v431, %v569
          %v576 = vadd.f32 %v436, %v569
          %v577 = vadd.f32 %v441, %v569
          %v578 = vadd.f32 %v446, %v569
          %v579 = vadd.f32 %v451, %v569
          %v580 = vadd.f32 %v456, %v569
          %v581 = vadd.f32 %v461, %v569
          %v582 = vadd.f32 %v466, %v569
          %v583 = vadd.f32 %v471, %v569
          %v584 = vadd.f32 %v476, %v569
          %v585 = vadd.f32 %v481, %v569
          %v586 = vadd.f32 %v486, %v569
          %v587 = vadd.f32 %v491, %v569
          %v588 = vadd.f32 %v496, %v569
          %v589 = vadd.f32 %v501, %v569
          %v590 = vadd.f32 %v506, %v569
          %v591 = vadd.f32 %v511, %v569
          %v592 = vadd.f32 %v516, %v569
          %v593 = vadd.f32 %v521, %v569
          %v594 = vadd.f32 %v526, %v569
          %v595 = vadd.f32 %v531, %v569
          %v596 = vadd.f32 %v536, %v569
          %v597 = vadd.f32 %v541, %v569
          %v598 = vadd.f32 %v546, %v569
          %v599 = vadd.f32 %v551, %v569
          %v600 = vadd.f32 %v556, %v569
          %v601 = vadd.f32 %v561, %v569
          %v602 = vadd.f32 %v566, %v569
          %v603 = vmul.f32 %v571, 0.01
          %v604 = vmul.f32 %v572, 0.01
          %v605 = vmul.f32 %v573, 0.01
          %v606 = vmul.f32 %v574, 0.01
          %v607 = vmul.f32 %v575, 0.01
          %v608 = vmul.f32 %v576, 0.01
          %v609 = vmul.f32 %v577, 0.01
          %v610 = vmul.f32 %v578, 0.01
          %v611 = vmul.f32 %v579, 0.01
          %v612 = vmul.f32 %v580, 0.01
          %v613 = vmul.f32 %v581, 0.01
          %v614 = vmul.f32 %v582, 0.01
          %v615 = vmul.f32 %v583, 0.01
          %v616 = vmul.f32 %v584, 0.01
          %v617 = vmul.f32 %v585, 0.01
          %v618 = vmul.f32 %v586, 0.01
          %v619 = vmul.f32 %v587, 0.01
          %v620 = vmul.f32 %v588, 0.01
          %v621 = vmul.f32 %v589, 0.01
          %v622 = vmul.f32 %v590, 0.01
          %v623 = vmul.f32 %v591, 0.01
          %v624 = vmul.f32 %v592, 0.01
          %v625 = vmul.f32 %v593, 0.01
          %v626 = vmul.f32 %v594, 0.01
          %v627 = vmul.f32 %v595, 0.01
          %v628 = vmul.f32 %v596, 0.01
          %v629 = vmul.f32 %v597, 0.01
          %v630 = vmul.f32 %v598, 0.01
          %v631 = vmul.f32 %v599, 0.01
          %v632 = vmul.f32 %v600, 0.01
          %v633 = vmul.f32 %v601, 0.01
          %v634 = vmul.f32 %v602, 0.01
          %v635 = vmax.f32 %v571, %v603
          %v636 = vmax.f32 %v572, %v604
          %v637 = vmax.f32 %v573, %v605
          %v638 = vmax.f32 %v574, %v606
          %v639 = vmax.f32 %v575, %v607
          %v640 = vmax.f32 %v576, %v608
          %v641 = vmax.f32 %v577, %v609
          %v642 = vmax.f32 %v578, %v610
          %v643 = vmax.f32 %v579, %v611
          %v644 = vmax.f32 %v580, %v612
          %v645 = vmax.f32 %v581, %v613
          %v646 = vmax.f32 %v582, %v614
          %v647 = vmax.f32 %v583, %v615
          %v648 = vmax.f32 %v584, %v616
          %v649 = vmax.f32 %v585, %v617
          %v650 = vmax.f32 %v586, %v618
          %v651 = vmax.f32 %v587, %v619
          %v652 = vmax.f32 %v588, %v620
          %v653 = vmax.f32 %v589, %v621
          %v654 = vmax.f32 %v590, %v622
          %v655 = vmax.f32 %v591, %v623
          %v656 = vmax.f32 %v592, %v624
          %v657 = vmax.f32 %v593, %v625
          %v658 = vmax.f32 %v594, %v626
          %v659 = vmax.f32 %v595, %v627
          %v660 = vmax.f32 %v596, %v628
          %v661 = vmax.f32 %v597, %v629
          %v662 = vmax.f32 %v598, %v630
          %v663 = vmax.f32 %v599, %v631
          %v664 = vmax.f32 %v600, %v632
          %v665 = vmax.f32 %v601, %v633
          %v666 = vmax.f32 %v602, %v634
          %v667 = vsel %vm367, 16843009, 0
          %v668 = vsel %vm368, 16843009, 0
          %v669 = vsel %vm369, 16843009, 0
          %v670 = vsel %vm370, 16843009, 0
          %v671 = vsel %vm371, 16843009, 0
          %v672 = vsel %vm372, 16843009, 0
          %v673 = vsel %vm373, 16843009, 0
          %v674 = vsel %vm374, 16843009, 0
          %v675 = vunpack.c.0.s8 %v667
          %v676 = vunpack.c.1.s8 %v667
          %v677 = vunpack.c.2.s8 %v667
          %v678 = vunpack.c.3.s8 %v667
          %v679 = vunpack.c.0.s8 %v668
          %v680 = vunpack.c.1.s8 %v668
          %v681 = vunpack.c.2.s8 %v668
          %v682 = vunpack.c.3.s8 %v668
          %v683 = vunpack.c.0.s8 %v669
          %v684 = vunpack.c.1.s8 %v669
          %v685 = vunpack.c.2.s8 %v669
          %v686 = vunpack.c.3.s8 %v669
          %v687 = vunpack.c.0.s8 %v670
          %v688 = vunpack.c.1.s8 %v670
          %v689 = vunpack.c.2.s8 %v670
          %v690 = vunpack.c.3.s8 %v670
          %v691 = vunpack.c.0.s8 %v671
          %v692 = vunpack.c.1.s8 %v671
          %v693 = vunpack.c.2.s8 %v671
          %v694 = vunpack.c.3.s8 %v671
          %v695 = vunpack.c.0.s8 %v672
          %v696 = vunpack.c.1.s8 %v672
          %v697 = vunpack.c.2.s8 %v672
          %v698 = vunpack.c.3.s8 %v672
          %v699 = vunpack.c.0.s8 %v673
          %v700 = vunpack.c.1.s8 %v673
          %v701 = vunpack.c.2.s8 %v673
          %v702 = vunpack.c.3.s8 %v673
          %v703 = vunpack.c.0.s8 %v674
          %v704 = vunpack.c.1.s8 %v674
          %v705 = vunpack.c.2.s8 %v674
          %v706 = vunpack.c.3.s8 %v674
          %v707 = vpack.c.b16 %v675, %v675
          %v708 = vpack.c.b8 %v707, %v707
          %v709 = vpack.c.b16 %v676, %v676
          %v710 = vpack.c.b8 %v709, %v709
          %v711 = vpack.c.b16 %v677, %v677
          %v712 = vpack.c.b8 %v711, %v711
          %v713 = vpack.c.b16 %v678, %v678
          %v714 = vpack.c.b8 %v713, %v713
          %v715 = vpack.c.b16 %v679, %v679
          %v716 = vpack.c.b8 %v715, %v715
          %v717 = vpack.c.b16 %v680, %v680
          %v718 = vpack.c.b8 %v717, %v717
          %v719 = vpack.c.b16 %v681, %v681
          %v720 = vpack.c.b8 %v719, %v719
          %v721 = vpack.c.b16 %v682, %v682
          %v722 = vpack.c.b8 %v721, %v721
          %v723 = vpack.c.b16 %v683, %v683
          %v724 = vpack.c.b8 %v723, %v723
          %v725 = vpack.c.b16 %v684, %v684
          %v726 = vpack.c.b8 %v725, %v725
          %v727 = vpack.c.b16 %v685, %v685
          %v728 = vpack.c.b8 %v727, %v727
          %v729 = vpack.c.b16 %v686, %v686
          %v730 = vpack.c.b8 %v729, %v729
          %v731 = vpack.c.b16 %v687, %v687
          %v732 = vpack.c.b8 %v731, %v731
          %v733 = vpack.c.b16 %v688, %v688
          %v734 = vpack.c.b8 %v733, %v733
          %v735 = vpack.c.b16 %v689, %v689
          %v736 = vpack.c.b8 %v735, %v735
          %v737 = vpack.c.b16 %v690, %v690
          %v738 = vpack.c.b8 %v737, %v737
          %v739 = vpack.c.b16 %v691, %v691
          %v740 = vpack.c.b8 %v739, %v739
          %v741 = vpack.c.b16 %v692, %v692
          %v742 = vpack.c.b8 %v741, %v741
          %v743 = vpack.c.b16 %v693, %v693
          %v744 = vpack.c.b8 %v743, %v743
          %v745 = vpack.c.b16 %v694, %v694
          %v746 = vpack.c.b8 %v745, %v745
          %v747 = vpack.c.b16 %v695, %v695
          %v748 = vpack.c.b8 %v747, %v747
          %v749 = vpack.c.b16 %v696, %v696
          %v750 = vpack.c.b8 %v749, %v749
          %v751 = vpack.c.b16 %v697, %v697
          %v752 = vpack.c.b8 %v751, %v751
          %v753 = vpack.c.b16 %v698, %v698
          %v754 = vpack.c.b8 %v753, %v753
          %v755 = vpack.c.b16 %v699, %v699
          %v756 = vpack.c.b8 %v755, %v755
          %v757 = vpack.c.b16 %v700, %v700
          %v758 = vpack.c.b8 %v757, %v757
          %v759 = vpack.c.b16 %v701, %v701
          %v760 = vpack.c.b8 %v759, %v759
          %v761 = vpack.c.b16 %v702, %v702
          %v762 = vpack.c.b8 %v761, %v761
          %v763 = vpack.c.b16 %v703, %v703
          %v764 = vpack.c.b8 %v763, %v763
          %v765 = vpack.c.b16 %v704, %v704
          %v766 = vpack.c.b8 %v765, %v765
          %v767 = vpack.c.b16 %v705, %v705
          %v768 = vpack.c.b8 %v767, %v767
          %v769 = vpack.c.b16 %v706, %v706
          %v770 = vpack.c.b8 %v769, %v769
          %vm771 = vnez %v708
          %vm772 = vnez %v710
          %vm773 = vnez %v712
          %vm774 = vnez %v714
          %vm775 = vnez %v716
          %vm776 = vnez %v718
          %vm777 = vnez %v720
          %vm778 = vnez %v722
          %vm779 = vnez %v724
          %vm780 = vnez %v726
          %vm781 = vnez %v728
          %vm782 = vnez %v730
          %vm783 = vnez %v732
          %vm784 = vnez %v734
          %vm785 = vnez %v736
          %vm786 = vnez %v738
          %vm787 = vnez %v740
          %vm788 = vnez %v742
          %vm789 = vnez %v744
          %vm790 = vnez %v746
          %vm791 = vnez %v748
          %vm792 = vnez %v750
          %vm793 = vnez %v752
          %vm794 = vnez %v754
          %vm795 = vnez %v756
          %vm796 = vnez %v758
          %vm797 = vnez %v760
          %vm798 = vnez %v762
          %vm799 = vnez %v764
          %vm800 = vnez %v766
          %vm801 = vnez %v768
          %vm802 = vnez %v770
          %v803 = vsel %vm771, 16843009, 0
          %v804 = vsel %vm772, 16843009, 0
          %v805 = vsel %vm773, 16843009, 0
          %v806 = vsel %vm774, 16843009, 0
          %v807 = vsel %vm775, 16843009, 0
          %v808 = vsel %vm776, 16843009, 0
          %v809 = vsel %vm777, 16843009, 0
          %v810 = vsel %vm778, 16843009, 0
          %v811 = vsel %vm779, 16843009, 0
          %v812 = vsel %vm780, 16843009, 0
          %v813 = vsel %vm781, 16843009, 0
          %v814 = vsel %vm782, 16843009, 0
          %v815 = vsel %vm783, 16843009, 0
          %v816 = vsel %vm784, 16843009, 0
          %v817 = vsel %vm785, 16843009, 0
          %v818 = vsel %vm786, 16843009, 0
          %v819 = vsel %vm787, 16843009, 0
          %v820 = vsel %vm788, 16843009, 0
          %v821 = vsel %vm789, 16843009, 0
          %v822 = vsel %vm790, 16843009, 0
          %v823 = vsel %vm791, 16843009, 0
          %v824 = vsel %vm792, 16843009, 0
          %v825 = vsel %vm793, 16843009, 0
          %v826 = vsel %vm794, 16843009, 0
          %v827 = vsel %vm795, 16843009, 0
          %v828 = vsel %vm796, 16843009, 0
          %v829 = vsel %vm797, 16843009, 0
          %v830 = vsel %vm798, 16843009, 0
          %v831 = vsel %vm799, 16843009, 0
          %v832 = vsel %vm800, 16843009, 0
          %v833 = vsel %vm801, 16843009, 0
          %v834 = vsel %vm802, 16843009, 0
          %v835 = vunpack.c.0.s8 %v803
          %v836 = vunpack.c.0.s8 %v804
          %v837 = vunpack.c.0.s8 %v805
          %v838 = vunpack.c.0.s8 %v806
          %v839 = vunpack.c.0.s8 %v807
          %v840 = vunpack.c.0.s8 %v808
          %v841 = vunpack.c.0.s8 %v809
          %v842 = vunpack.c.0.s8 %v810
          %v843 = vunpack.c.0.s8 %v811
          %v844 = vunpack.c.0.s8 %v812
          %v845 = vunpack.c.0.s8 %v813
          %v846 = vunpack.c.0.s8 %v814
          %v847 = vunpack.c.0.s8 %v815
          %v848 = vunpack.c.0.s8 %v816
          %v849 = vunpack.c.0.s8 %v817
          %v850 = vunpack.c.0.s8 %v818
          %v851 = vunpack.c.0.s8 %v819
          %v852 = vunpack.c.0.s8 %v820
          %v853 = vunpack.c.0.s8 %v821
          %v854 = vunpack.c.0.s8 %v822
          %v855 = vunpack.c.0.s8 %v823
          %v856 = vunpack.c.0.s8 %v824
          %v857 = vunpack.c.0.s8 %v825
          %v858 = vunpack.c.0.s8 %v826
          %v859 = vunpack.c.0.s8 %v827
          %v860 = vunpack.c.0.s8 %v828
          %v861 = vunpack.c.0.s8 %v829
          %v862 = vunpack.c.0.s8 %v830
          %v863 = vunpack.c.0.s8 %v831
          %v864 = vunpack.c.0.s8 %v832
          %v865 = vunpack.c.0.s8 %v833
          %v866 = vunpack.c.0.s8 %v834
          %vm867 = vcmp.ne.s32.totalorder %v835, 0
          %vm868 = vcmp.ne.s32.totalorder %v836, 0
          %vm869 = vcmp.ne.s32.totalorder %v837, 0
          %vm870 = vcmp.ne.s32.totalorder %v838, 0
          %vm871 = vcmp.ne.s32.totalorder %v839, 0
          %vm872 = vcmp.ne.s32.totalorder %v840, 0
          %vm873 = vcmp.ne.s32.totalorder %v841, 0
          %vm874 = vcmp.ne.s32.totalorder %v842, 0
          %vm875 = vcmp.ne.s32.totalorder %v843, 0
          %vm876 = vcmp.ne.s32.totalorder %v844, 0
          %vm877 = vcmp.ne.s32.totalorder %v845, 0
          %vm878 = vcmp.ne.s32.totalorder %v846, 0
          %vm879 = vcmp.ne.s32.totalorder %v847, 0
          %vm880 = vcmp.ne.s32.totalorder %v848, 0
          %vm881 = vcmp.ne.s32.totalorder %v849, 0
          %vm882 = vcmp.ne.s32.totalorder %v850, 0
          %vm883 = vcmp.ne.s32.totalorder %v851, 0
          %vm884 = vcmp.ne.s32.totalorder %v852, 0
          %vm885 = vcmp.ne.s32.totalorder %v853, 0
          %vm886 = vcmp.ne.s32.totalorder %v854, 0
          %vm887 = vcmp.ne.s32.totalorder %v855, 0
          %vm888 = vcmp.ne.s32.totalorder %v856, 0
          %vm889 = vcmp.ne.s32.totalorder %v857, 0
          %vm890 = vcmp.ne.s32.totalorder %v858, 0
          %vm891 = vcmp.ne.s32.totalorder %v859, 0
          %vm892 = vcmp.ne.s32.totalorder %v860, 0
          %vm893 = vcmp.ne.s32.totalorder %v861, 0
          %vm894 = vcmp.ne.s32.totalorder %v862, 0
          %vm895 = vcmp.ne.s32.totalorder %v863, 0
          %vm896 = vcmp.ne.s32.totalorder %v864, 0
          %vm897 = vcmp.ne.s32.totalorder %v865, 0
          %vm898 = vcmp.ne.s32.totalorder %v866, 0
          %v899 = vsel %vm867, %v635, -1e+30
          %v900 = vsel %vm868, %v636, -1e+30
          %v901 = vsel %vm869, %v637, -1e+30
          %v902 = vsel %vm870, %v638, -1e+30
          %v903 = vsel %vm871, %v639, -1e+30
          %v904 = vsel %vm872, %v640, -1e+30
          %v905 = vsel %vm873, %v641, -1e+30
          %v906 = vsel %vm874, %v642, -1e+30
          %v907 = vsel %vm875, %v643, -1e+30
          %v908 = vsel %vm876, %v644, -1e+30
          %v909 = vsel %vm877, %v645, -1e+30
          %v910 = vsel %vm878, %v646, -1e+30
          %v911 = vsel %vm879, %v647, -1e+30
          %v912 = vsel %vm880, %v648, -1e+30
          %v913 = vsel %vm881, %v649, -1e+30
          %v914 = vsel %vm882, %v650, -1e+30
          %v915 = vsel %vm883, %v651, -1e+30
          %v916 = vsel %vm884, %v652, -1e+30
          %v917 = vsel %vm885, %v653, -1e+30
          %v918 = vsel %vm886, %v654, -1e+30
          %v919 = vsel %vm887, %v655, -1e+30
          %v920 = vsel %vm888, %v656, -1e+30
          %v921 = vsel %vm889, %v657, -1e+30
          %v922 = vsel %vm890, %v658, -1e+30
          %v923 = vsel %vm891, %v659, -1e+30
          %v924 = vsel %vm892, %v660, -1e+30
          %v925 = vsel %vm893, %v661, -1e+30
          %v926 = vsel %vm894, %v662, -1e+30
          %v927 = vsel %vm895, %v663, -1e+30
          %v928 = vsel %vm896, %v664, -1e+30
          %v929 = vsel %vm897, %v665, -1e+30
          %v930 = vsel %vm898, %v666, -1e+30
          %v931 = vld [vmem:[#allocation2] sm:$0x1]
          %v932 = vmax.f32 %v899, %v903
          %v933 = vmax.f32 %v900, %v904
          %v934 = vmax.f32 %v901, %v905
          %v935 = vmax.f32 %v902, %v906
          %v936 = vmax.f32 %v932, %v907
          %v937 = vmax.f32 %v933, %v908
          %v938 = vmax.f32 %v934, %v909
          %v939 = vmax.f32 %v935, %v910
          %v940 = vmax.f32 %v936, %v911
          %v941 = vmax.f32 %v937, %v912
          %v942 = vmax.f32 %v938, %v913
          %v943 = vmax.f32 %v939, %v914
          %v944 = vmax.f32 %v940, %v915
          %v945 = vmax.f32 %v941, %v916
          %v946 = vmax.f32 %v942, %v917
          %v947 = vmax.f32 %v943, %v918
          %v948 = vmax.f32 %v944, %v919
          %v949 = vmax.f32 %v945, %v920
          %v950 = vmax.f32 %v946, %v921
          %v951 = vmax.f32 %v947, %v922
          %v952 = vmax.f32 %v948, %v923
          %v953 = vmax.f32 %v949, %v924
          %v954 = vmax.f32 %v950, %v925
          %v955 = vmax.f32 %v951, %v926
          %v956 = vmax.f32 %v952, %v927
          %v957 = vmax.f32 %v953, %v928
          %v958 = vmax.f32 %v954, %v929
          %v959 = vmax.f32 %v955, %v930
          %v960 = vmax.f32 %v956, %v957
          %v961 = vmax.f32 %v958, %v959
          %v962 = vmax.f32 %v960, %v961
          %v963 = vrot.slane %v962, 4
          %v964 = vmax.f32 %v962, %v963
          %v965 = vrot.slane %v964, 2
          %v966 = vmax.f32 %v964, %v965
          %v967 = vrot.slane %v966, 1
          %v968 = vmax.f32 %v966, %v967
          %v969 = vmax.f32 %v931, %v968
          %v970 = vsub.f32 %v931, %v969
          %v971 = vmul.f32 %v970, 1.442695
          %v972 = vpow.pop %v971
          %v974 = vperm.slane %v969, 0
          %v976 = vsub.f32 %v899, %v974
          %v977 = vsub.f32 %v900, %v974
          %v978 = vsub.f32 %v901, %v974
          %v979 = vsub.f32 %v902, %v974
          %v980 = vsub.f32 %v903, %v974
          %v981 = vsub.f32 %v904, %v974
          %v982 = vsub.f32 %v905, %v974
          %v983 = vsub.f32 %v906, %v974
          %v984 = vsub.f32 %v907, %v974
          %v985 = vsub.f32 %v908, %v974
          %v986 = vsub.f32 %v909, %v974
          %v987 = vsub.f32 %v910, %v974
          %v988 = vsub.f32 %v911, %v974
          %v989 = vsub.f32 %v912, %v974
          %v990 = vsub.f32 %v913, %v974
          %v991 = vsub.f32 %v914, %v974
          %v992 = vsub.f32 %v915, %v974
          %v993 = vsub.f32 %v916, %v974
          %v994 = vsub.f32 %v917, %v974
          %v995 = vsub.f32 %v918, %v974
          %v996 = vsub.f32 %v919, %v974
          %v997 = vsub.f32 %v920, %v974
          %v998 = vsub.f32 %v921, %v974
          %v999 = vsub.f32 %v922, %v974
          %v1000 = vsub.f32 %v923, %v974
          %v1001 = vsub.f32 %v924, %v974
          %v1002 = vsub.f32 %v925, %v974
          %v1003 = vsub.f32 %v926, %v974
          %v1004 = vsub.f32 %v927, %v974
          %v1005 = vsub.f32 %v928, %v974
          %v1006 = vsub.f32 %v929, %v974
          %v1007 = vsub.f32 %v930, %v974
          %v1008 = vmul.f32 %v976, 1.442695
          %v1009 = vpow.pop %v1008
          %v1010 = vmul.f32 %v977, 1.442695
          %v1011 = vpow.pop %v1010
          %v1012 = vmul.f32 %v978, 1.442695
          %v1013 = vpow.pop %v1012
          %v1014 = vmul.f32 %v979, 1.442695
          %v1015 = vpow.pop %v1014
          %v1016 = vmul.f32 %v980, 1.442695
          %v1017 = vpow.pop %v1016
          %v1018 = vmul.f32 %v981, 1.442695
          %v1019 = vpow.pop %v1018
          %v1020 = vmul.f32 %v982, 1.442695
          %v1021 = vpow.pop %v1020
          %v1022 = vmul.f32 %v983, 1.442695
          %v1023 = vpow.pop %v1022
          %v1024 = vmul.f32 %v984, 1.442695
          %v1025 = vpow.pop %v1024
          %v1026 = vmul.f32 %v985, 1.442695
          %v1027 = vpow.pop %v1026
          %v1028 = vmul.f32 %v986, 1.442695
          %v1029 = vpow.pop %v1028
          %v1030 = vmul.f32 %v987, 1.442695
          %v1031 = vpow.pop %v1030
          %v1032 = vmul.f32 %v988, 1.442695
          %v1033 = vpow.pop %v1032
          %v1034 = vmul.f32 %v989, 1.442695
          %v1035 = vpow.pop %v1034
          %v1036 = vmul.f32 %v990, 1.442695
          %v1037 = vpow.pop %v1036
          %v1038 = vmul.f32 %v991, 1.442695
          %v1039 = vpow.pop %v1038
          %v1040 = vmul.f32 %v992, 1.442695
          %v1041 = vpow.pop %v1040
          %v1042 = vmul.f32 %v993, 1.442695
          %v1043 = vpow.pop %v1042
          %v1044 = vmul.f32 %v994, 1.442695
          %v1045 = vpow.pop %v1044
          %v1046 = vmul.f32 %v995, 1.442695
          %v1047 = vpow.pop %v1046
          %v1048 = vmul.f32 %v996, 1.442695
          %v1049 = vpow.pop %v1048
          %v1050 = vmul.f32 %v997, 1.442695
          %v1051 = vpow.pop %v1050
          %v1052 = vmul.f32 %v998, 1.442695
          %v1053 = vpow.pop %v1052
          %v1054 = vmul.f32 %v999, 1.442695
          %v1055 = vpow.pop %v1054
          %v1056 = vmul.f32 %v1000, 1.442695
          %v1057 = vpow.pop %v1056
          %v1058 = vmul.f32 %v1001, 1.442695
          %v1059 = vpow.pop %v1058
          %v1060 = vmul.f32 %v1002, 1.442695
          %v1061 = vpow.pop %v1060
          %v1062 = vmul.f32 %v1003, 1.442695
          %v1063 = vpow.pop %v1062
          %v1064 = vmul.f32 %v1004, 1.442695
          %v1065 = vpow.pop %v1064
          %v1066 = vmul.f32 %v1005, 1.442695
          %v1067 = vpow.pop %v1066
          %v1068 = vmul.f32 %v1006, 1.442695
          %v1069 = vpow.pop %v1068
          %v1070 = vmul.f32 %v1007, 1.442695
          %v1071 = vpow.pop %v1070
          %v1072 = vsel %vm867, %v1009, 0.0
          %v1073 = vsel %vm868, %v1011, 0.0
          %v1074 = vsel %vm869, %v1013, 0.0
          %v1075 = vsel %vm870, %v1015, 0.0
          %v1076 = vsel %vm871, %v1017, 0.0
          %v1077 = vsel %vm872, %v1019, 0.0
          %v1078 = vsel %vm873, %v1021, 0.0
          %v1079 = vsel %vm874, %v1023, 0.0
          %v1080 = vsel %vm875, %v1025, 0.0
          %v1081 = vsel %vm876, %v1027, 0.0
          %v1082 = vsel %vm877, %v1029, 0.0
          %v1083 = vsel %vm878, %v1031, 0.0
          %v1084 = vsel %vm879, %v1033, 0.0
          %v1085 = vsel %vm880, %v1035, 0.0
          %v1086 = vsel %vm881, %v1037, 0.0
          %v1087 = vsel %vm882, %v1039, 0.0
          %v1088 = vsel %vm883, %v1041, 0.0
          %v1089 = vsel %vm884, %v1043, 0.0
          %v1090 = vsel %vm885, %v1045, 0.0
          %v1091 = vsel %vm886, %v1047, 0.0
          %v1092 = vsel %vm887, %v1049, 0.0
          %v1093 = vsel %vm888, %v1051, 0.0
          %v1094 = vsel %vm889, %v1053, 0.0
          %v1095 = vsel %vm890, %v1055, 0.0
          %v1096 = vsel %vm891, %v1057, 0.0
          %v1097 = vsel %vm892, %v1059, 0.0
          %v1098 = vsel %vm893, %v1061, 0.0
          %v1099 = vsel %vm894, %v1063, 0.0
          %v1100 = vsel %vm895, %v1065, 0.0
          %v1101 = vsel %vm896, %v1067, 0.0
          %v1102 = vsel %vm897, %v1069, 0.0
          %v1103 = vsel %vm898, %v1071, 0.0
          %v1104 = vld [vmem:[#allocation3] sm:$0x1]
          %v1105 = vmul.f32 %v972, %v1104
          %v1106 = vadd.f32 %v1072, %v1073
          %v1107 = vadd.f32 %v1106, %v1074
          %v1108 = vadd.f32 %v1107, %v1075
          %v1109 = vadd.f32 %v1108, %v1076
          %v1110 = vadd.f32 %v1109, %v1077
          %v1111 = vadd.f32 %v1110, %v1078
          %v1112 = vadd.f32 %v1111, %v1079
          %v1113 = vadd.f32 %v1112, %v1080
          %v1114 = vadd.f32 %v1113, %v1081
          %v1115 = vadd.f32 %v1114, %v1082
          %v1116 = vadd.f32 %v1115, %v1083
          %v1117 = vadd.f32 %v1116, %v1084
          %v1118 = vadd.f32 %v1117, %v1085
          %v1119 = vadd.f32 %v1118, %v1086
          %v1120 = vadd.f32 %v1119, %v1087
          %v1121 = vadd.f32 %v1120, %v1088
          %v1122 = vadd.f32 %v1121, %v1089
          %v1123 = vadd.f32 %v1122, %v1090
          %v1124 = vadd.f32 %v1123, %v1091
          %v1125 = vadd.f32 %v1124, %v1092
          %v1126 = vadd.f32 %v1125, %v1093
          %v1127 = vadd.f32 %v1126, %v1094
          %v1128 = vadd.f32 %v1127, %v1095
          %v1129 = vadd.f32 %v1128, %v1096
          %v1130 = vadd.f32 %v1129, %v1097
          %v1131 = vadd.f32 %v1130, %v1098
          %v1132 = vadd.f32 %v1131, %v1099
          %v1133 = vadd.f32 %v1132, %v1100
          %v1134 = vadd.f32 %v1133, %v1101
          %v1135 = vadd.f32 %v1134, %v1102
          %v1136 = vadd.f32 %v1135, %v1103
          %v1137 = vrot.slane %v1136, 4
          %v1138 = vadd.f32 %v1136, %v1137
          %v1139 = vrot.slane %v1138, 2
          %v1140 = vadd.f32 %v1138, %v1139
          %v1141 = vrot.slane %v1140, 1
          %v1142 = vadd.f32 %v1140, %v1141
          %v1143 = vadd.f32 %v1105, %v1142
          %1144 = vst [vmem:[#allocation3] sm:$0x1] %v1143
          %1145 = vst [vmem:[#allocation2] sm:$0x1] %v969
          %v1146 = vld [vmem:[%s337] sm:$0xf]
          %v1147 = vld [vmem:[%s337 + $0x4] sm:$0xf]
          %v1148 = vld [vmem:[%s337 + $0x8] sm:$0xf]
          %v1149 = vld [vmem:[%s337 + $0xc] sm:$0xf]
          %v1150 = vld [vmem:[%s337 + $0x10] sm:$0xf]
          %v1151 = vld [vmem:[%s337 + $0x14] sm:$0xf]
          %v1152 = vld [vmem:[%s337 + $0x18] sm:$0xf]
          %v1153 = vld [vmem:[%s337 + $0x1c] sm:$0xf]
          %v1154 = vld [vmem:[%s337 + $0x20] sm:$0xf]
          %v1155 = vld [vmem:[%s337 + $0x24] sm:$0xf]
          %v1156 = vld [vmem:[%s337 + $0x28] sm:$0xf]
          %v1157 = vld [vmem:[%s337 + $0x2c] sm:$0xf]
          %v1158 = vld [vmem:[%s337 + $0x30] sm:$0xf]
          %v1159 = vld [vmem:[%s337 + $0x34] sm:$0xf]
          %v1160 = vld [vmem:[%s337 + $0x38] sm:$0xf]
          %v1161 = vld [vmem:[%s337 + $0x3c] sm:$0xf]
          %v1162 = vld [vmem:[%s337 + $0x40] sm:$0xf]
          %v1163 = vld [vmem:[%s337 + $0x44] sm:$0xf]
          %v1164 = vld [vmem:[%s337 + $0x48] sm:$0xf]
          %v1165 = vld [vmem:[%s337 + $0x4c] sm:$0xf]
          %v1166 = vld [vmem:[%s337 + $0x50] sm:$0xf]
          %v1167 = vld [vmem:[%s337 + $0x54] sm:$0xf]
          %v1168 = vld [vmem:[%s337 + $0x58] sm:$0xf]
          %v1169 = vld [vmem:[%s337 + $0x5c] sm:$0xf]
          %v1170 = vld [vmem:[%s337 + $0x60] sm:$0xf]
          %v1171 = vld [vmem:[%s337 + $0x64] sm:$0xf]
          %v1172 = vld [vmem:[%s337 + $0x68] sm:$0xf]
          %v1173 = vld [vmem:[%s337 + $0x6c] sm:$0xf]
          %v1174 = vld [vmem:[%s337 + $0x70] sm:$0xf]
          %v1175 = vld [vmem:[%s337 + $0x74] sm:$0xf]
          %v1176 = vld [vmem:[%s337 + $0x78] sm:$0xf]
          %v1177 = vld [vmem:[%s337 + $0x7c] sm:$0xf]
          %v1178 = vpack.c.bf16 %v1073, %v1072
          %v1179 = vpack.c.bf16 %v1075, %v1074
          %v1180 = vpack.c.bf16 %v1077, %v1076
          %v1181 = vpack.c.bf16 %v1079, %v1078
          %v1182 = vpack.c.bf16 %v1081, %v1080
          %v1183 = vpack.c.bf16 %v1083, %v1082
          %v1184 = vpack.c.bf16 %v1085, %v1084
          %v1185 = vpack.c.bf16 %v1087, %v1086
          %v1186 = vpack.c.bf16 %v1089, %v1088
          %v1187 = vpack.c.bf16 %v1091, %v1090
          %v1188 = vpack.c.bf16 %v1093, %v1092
          %v1189 = vpack.c.bf16 %v1095, %v1094
          %v1190 = vpack.c.bf16 %v1097, %v1096
          %v1191 = vpack.c.bf16 %v1099, %v1098
          %v1192 = vpack.c.bf16 %v1101, %v1100
          %v1193 = vpack.c.bf16 %v1103, %v1102
          %v1226 = vunpack.c.l.b16 %v1146
          %v1227 = vunpack.c.l.b16 %v1147
          %v1228 = vunpack.c.l.b16 %v1148
          %v1229 = vunpack.c.l.b16 %v1149
          %v1230 = vunpack.c.l.b16 %v1150
          %v1231 = vunpack.c.l.b16 %v1151
          %v1232 = vunpack.c.l.b16 %v1152
          %v1233 = vunpack.c.l.b16 %v1153
          %v1234 = vunpack.c.l.b16 %v1154
          %v1235 = vunpack.c.l.b16 %v1155
          %v1236 = vunpack.c.l.b16 %v1156
          %v1237 = vunpack.c.l.b16 %v1157
          %v1238 = vunpack.c.l.b16 %v1158
          %v1239 = vunpack.c.l.b16 %v1159
          %v1240 = vunpack.c.l.b16 %v1160
          %v1241 = vunpack.c.l.b16 %v1161
          %v1242 = vunpack.c.l.b16 %v1162
          %v1243 = vunpack.c.l.b16 %v1163
          %v1244 = vunpack.c.l.b16 %v1164
          %v1245 = vunpack.c.l.b16 %v1165
          %v1246 = vunpack.c.l.b16 %v1166
          %v1247 = vunpack.c.l.b16 %v1167
          %v1248 = vunpack.c.l.b16 %v1168
          %v1249 = vunpack.c.l.b16 %v1169
          %v1250 = vunpack.c.l.b16 %v1170
          %v1251 = vunpack.c.l.b16 %v1171
          %v1252 = vunpack.c.l.b16 %v1172
          %v1253 = vunpack.c.l.b16 %v1173
          %v1254 = vunpack.c.l.b16 %v1174
          %v1255 = vunpack.c.l.b16 %v1175
          %v1256 = vunpack.c.l.b16 %v1176
          %v1257 = vunpack.c.l.b16 %v1177
          %v1258 = vpack.c.b16 %v1227, %v1226
          %v1259 = vpack.c.b16 %v1229, %v1228
          %v1260 = vpack.c.b16 %v1231, %v1230
          %v1261 = vpack.c.b16 %v1233, %v1232
          %v1262 = vpack.c.b16 %v1235, %v1234
          %v1263 = vpack.c.b16 %v1237, %v1236
          %v1264 = vpack.c.b16 %v1239, %v1238
          %v1265 = vpack.c.b16 %v1241, %v1240
          %v1266 = vpack.c.b16 %v1243, %v1242
          %v1267 = vpack.c.b16 %v1245, %v1244
          %v1268 = vpack.c.b16 %v1247, %v1246
          %v1269 = vpack.c.b16 %v1249, %v1248
          %v1270 = vpack.c.b16 %v1251, %v1250
          %v1271 = vpack.c.b16 %v1253, %v1252
          %v1272 = vpack.c.b16 %v1255, %v1254
          %v1273 = vpack.c.b16 %v1257, %v1256
          %1290 = vxpose.xlu0.c.b16.start [1/8] %v1258, 128
          %1291 = vxpose.xlu0.c.b16.cont [2/8] %v1259, 128
          %1292 = vxpose.xlu0.c.b16.cont [3/8] %v1260, 128
          %1293 = vxpose.xlu0.c.b16.cont [4/8] %v1261, 128
          %1294 = vxpose.xlu0.c.b16.cont [5/8] %v1262, 128
          %1295 = vxpose.xlu0.c.b16.cont [6/8] %v1263, 128
          %1296 = vxpose.xlu0.c.b16.cont [7/8] %v1264, 128
          %1297 = vxpose.xlu0.c.b16.end [8/8] %v1265, 128
          %v1298 = vpop.trf.xlu0
          %v1299 = vpop.trf.xlu0
          %v1300 = vpop.trf.xlu0
          %v1301 = vpop.trf.xlu0
          %v1302 = vpop.trf.xlu0
          %v1303 = vpop.trf.xlu0
          %v1304 = vpop.trf.xlu0
          %v1305 = vpop.trf.xlu0
          %1306 = vxpose.xlu0.c.b16.start [1/8] %v1266, 128
          %1307 = vxpose.xlu0.c.b16.cont [2/8] %v1267, 128
          %1308 = vxpose.xlu0.c.b16.cont [3/8] %v1268, 128
          %1309 = vxpose.xlu0.c.b16.cont [4/8] %v1269, 128
          %1310 = vxpose.xlu0.c.b16.cont [5/8] %v1270, 128
          %1311 = vxpose.xlu0.c.b16.cont [6/8] %v1271, 128
          %1312 = vxpose.xlu0.c.b16.cont [7/8] %v1272, 128
          %1313 = vxpose.xlu0.c.b16.end [8/8] %v1273, 128
          %v1314 = vpop.trf.xlu0
          %v1315 = vpop.trf.xlu0
          %v1316 = vpop.trf.xlu0
          %v1317 = vpop.trf.xlu0
          %v1318 = vpop.trf.xlu0
          %v1319 = vpop.trf.xlu0
          %v1320 = vpop.trf.xlu0
          %v1321 = vpop.trf.xlu0
          %1322 = vmatpush.bf16.msra.mxu0 %v1185
          %1323 = vmatpush.bf16.msra.mxu0 %v1184
          %1324 = vmatpush.bf16.msra.mxu0 %v1183
          %1325 = vmatpush.bf16.msra.mxu0 %v1182
          %1326 = vmatpush.bf16.msra.mxu0 %v1181
          %1327 = vmatpush.bf16.msra.mxu0 %v1180
          %1328 = vmatpush.bf16.msra.mxu0 %v1179
          %1329 = vmatpush.bf16.msra.mxu0 %v1178
          %1330 = vmatmul.bf16.gmra.mxu0 %v1298
          %v1331 = vpop.f32.mrf.mxu0
          %v1332 = vadd.f32 0.0, %v1331
          %v1333 = vpop.f32.mrf.mxu0
          %1334 = vdwg.mxu0
          %1335 = vmatpush.bf16.msra.mxu0 %v1193
          %1336 = vmatpush.bf16.msra.mxu0 %v1192
          %1337 = vmatpush.bf16.msra.mxu0 %v1191
          %1338 = vmatpush.bf16.msra.mxu0 %v1190
          %1339 = vmatpush.bf16.msra.mxu0 %v1189
          %1340 = vmatpush.bf16.msra.mxu0 %v1188
          %1341 = vmatpush.bf16.msra.mxu0 %v1187
          %1342 = vmatpush.bf16.msra.mxu0 %v1186
          %1343 = vmatmul.bf16.gmra.mxu0 %v1314
          %v1344 = vpop.f32.mrf.mxu0
          %v1345 = vadd.f32 %v1332, %v1344
          %v1346 = vpop.f32.mrf.mxu0
          %1347 = vdwg.mxu0
          %v1348 = vld [vmem:[#allocation4] sm:$0xf]
          %v1350 = vperm.slane %v972, 0
          %v1352 = vmul.f32 %v1348, %v1350
          %v1353 = vadd.f32 %v1352, %v1345
          %1354 = vst [vmem:[#allocation4] sm:$0xf] %v1353
        $region82: #{gat_forward.7} parent=69 // pred_fallthru
          _
        // Predicated region
        $region83: #{gat_forward.7} parent=69 // pred_check
          %p1355 = pneg %p346
        $region84: #{gat_forward.7} parent=69 // pred_check_branch
          %1357 = sbr.rel (%p1355) target = $region86
        $region85: #{gat_forward.7} parent=69 // pred_region
          %v1358 = vld [vmem:[#allocation3] sm:$0x1]
          %v1359 = vmax.f32 %v1358, 1e-20
          %v1360 = vrcp.pop %v1359
          %v1361 = vld [vmem:[#allocation4] sm:$0xf]
          %v1363 = vperm.slane %v1360, 0
          %v1365 = vmul.f32 %v1361, %v1363
          %1366 = vst [vmem:[%s343] sm:$0xf] %v1365
        $region86: #{gat_forward.7} parent=69 // pred_fallthru
          _
        %p1367 = scmp.lt.s32.totalorder %s28, 1
        %s1368 = scalar_select %p1367, %s28, 1
        %s1369 = smul.addr %s1368, 4
        %s1370 = scalar_lea.vmem %s5, %s1369
        // Predicated region
        $region87: #{gat_forward.7} parent=69 // pred_check
          %p1371 = pneg %p160
        $region88: #{gat_forward.7} parent=69 // pred_check_branch
          %1373 = sbr.rel (%p1371) target = $region90
        $region89: #{gat_forward.7} parent=69 // pred_region
          _
        $region90: #{gat_forward.7} parent=69 // pred_fallthru
          _
      $region70: #{gat_forward.7} parent=5 // pred_fallthru
        _
      %p1374 = scmp.le.s32.totalorder 2, %s19
      // Predicated region
      $region91: #{gat_forward.7} parent=5 // pred_check
        %p1375 = pneg %p1374
      $region92: #{gat_forward.7} parent=5 // pred_check_branch
        %1377 = sbr.rel (%p1375) target = $region94
      $region93: #{gat_forward.7} parent=5 // pred_region
        %s1378 = ssub.s32 %s19, 2
        // Predicated region
        $region95: #{gat_forward.7} parent=93 // pred_check
          %p1379 = pneg %p166
        $region96: #{gat_forward.7} parent=93 // pred_check_branch
          %1381 = sbr.rel (%p1379) target = $region98
        $region97: #{gat_forward.7} parent=93 // pred_region
          %p1382 = scmp.lt.s32.totalorder %s30, 1
          %s1383 = scalar_select %p1382, %s30, 1
          %s1384 = smul.addr %s1383, 4
          %s1385 = scalar_lea.vmem %s5, %s1384
        $region98: #{gat_forward.7} parent=93 // pred_fallthru
          _
      $region94: #{gat_forward.7} parent=5 // pred_fallthru
        _
    $region6: #{gat_forward.7} parent=1 // loop_footer
      %s23 = sadd.s32 1, %s19
    $region7: #{gat_forward.7} parent=1 // loop_footer_branch
      %18 = sbr.rel target = $region3
    $region8: #{gat_forward.7} parent=1 // loop_exit
      _

</llo_original>
